<compile_context>
chip_gen: v5e
topology: v5e:2x2
jax: 0.10.0
libtpu: 0.0.40
codegen_flags: <defaults>
</compile_context>

<pallas_src>
import math

import jax
import jax.numpy as jnp
from jax.experimental import pallas as pl
from jax.experimental.pallas import tpu as pltpu

# ---- model config (small but TPU-tile-friendly shapes) ----
BATCH = 2
SEQ = 128          # T
EMBD = 128         # C  (n_embd)
N_HEAD = 4         # head_dim = 32
HEAD_DIM = EMBD // N_HEAD
LN_EPS = 1e-5


def _layernorm(z, gamma, beta):
    mu = jnp.mean(z, axis=-1, keepdims=True)
    var = jnp.mean((z - mu) ** 2, axis=-1, keepdims=True)
    return (z - mu) * jax.lax.rsqrt(var + LN_EPS) * gamma + beta


def block_kernel(x_ref, mask_ref,
                 w_attn_ref, b_attn_ref, w_aproj_ref, b_aproj_ref,
                 g1_ref, be1_ref, g2_ref, be2_ref,
                 w_fc_ref, b_fc_ref, w_mproj_ref, b_mproj_ref,
                 o_ref):
    # One batch element per grid step; everything lives in VMEM.
    bf16 = jnp.bfloat16
    x = x_ref[0]                               # (T, C) f32
    T, C = x.shape
    scale = 1.0 / math.sqrt(HEAD_DIM)

    # ---------------- attention branch: x + attn(ln_1(x)) ----------------
    h1 = _layernorm(x, g1_ref[0], be1_ref[0]).astype(bf16)               # (T, C) bf16
    # single lane-dense qkv GEMM, bf16 x bf16 -> f32 accumulate
    qkv = jnp.dot(h1, w_attn_ref[...],
                  preferred_element_type=jnp.float32) + b_attn_ref[0]    # (T, 3C) f32

    # 128-lane-aligned splits of the packed qkv; scale folded into q.
    q2 = (qkv[:, :C] * scale).astype(bf16)                               # (T, C)
    kT = qkv[:, C:2 * C].T.astype(bf16)       # one full (C,T) transpose, shared by heads
    v2 = qkv[:, 2 * C:].astype(bf16)                                     # (T, C)

    causal_bias = mask_ref[...]               # (T, T) f32 additive mask, precomputed

    # per-head loop on 2-D tiles (no padded (H,T,hd) tensors, no stack)
    ctx_parts = []
    for h in range(N_HEAD):
        lo, hi = h * HEAD_DIM, (h + 1) * HEAD_DIM
        s = jnp.dot(q2[:, lo:hi], kT[lo:hi, :],
                    preferred_element_type=jnp.float32) + causal_bias    # (T, T) f32
        m = jnp.max(s, axis=-1, keepdims=True)
        p = jnp.exp(s - m)                                               # f32, in [0,1]
        l = jnp.sum(p, axis=-1, keepdims=True)                           # (T, 1) f32
        ctx = jnp.dot(p.astype(bf16), v2[:, lo:hi],
                      preferred_element_type=jnp.float32)                # (T, hd) f32
        # deferred softmax normalization on the small (T, hd) context
        ctx_parts.append(ctx * pl.reciprocal(l, approx=True))

    # lane-dense (T, C) context -> single K=128 output-projection GEMM
    ctx_full = jnp.concatenate(ctx_parts, axis=-1).astype(bf16)          # (T, C) bf16
    attn = jnp.dot(ctx_full, w_aproj_ref[...],
                   preferred_element_type=jnp.float32) + b_aproj_ref[0]
    x = x + attn

    # ---------------- MLP branch: x + mlp(ln_2(x)) ----------------
    h2 = _layernorm(x, g2_ref[0], be2_ref[0]).astype(bf16)
    a = jnp.dot(h2, w_fc_ref[...],
                preferred_element_type=jnp.float32) + b_fc_ref[0]        # (T, 4C) f32
    # GELU, tanh approximation (matches nn.GELU(approximate='tanh')), in bf16
    a = a.astype(bf16)
    cst = math.sqrt(2.0 / math.pi)
    a = 0.5 * a * (1.0 + jnp.tanh(cst * (a + 0.044715 * (a * a * a))))
    mlp = jnp.dot(a, w_mproj_ref[...],
                  preferred_element_type=jnp.float32) + b_mproj_ref[0]

    o_ref[0] = x + mlp


def block_forward(x, params):
    B, T, C = x.shape

    # additive causal bias built once on the host, passed as a resident input
    row = jnp.arange(T, dtype=jnp.int32)[:, None]
    col = jnp.arange(T, dtype=jnp.int32)[None, :]
    mask = jnp.where(row >= col, 0.0, -1e30).astype(jnp.float32)

    def full(shape):
        # Constant-index (resident) block; fetched once across the grid.
        return pl.BlockSpec(shape, lambda b: (0,) * len(shape))

    weights = [
        params["w_attn"], params["b_attn"], params["w_aproj"], params["b_aproj"],
        params["g1"], params["be1"], params["g2"], params["be2"],
        params["w_fc"], params["b_fc"], params["w_mproj"], params["b_mproj"],
    ]
    weight_specs = [full(w.shape) for w in weights]

    return pl.pallas_call(
        block_kernel,
        out_shape=jax.ShapeDtypeStruct((B, T, C), x.dtype),
        grid_spec=pltpu.PrefetchScalarGridSpec(
            num_scalar_prefetch=0,
            grid=(B,),
            in_specs=[pl.BlockSpec((1, T, C), lambda b: (b, 0, 0)),
                      full((T, T))] + weight_specs,
            out_specs=pl.BlockSpec((1, T, C), lambda b: (b, 0, 0)),
        ),
        compiler_params=pltpu.CompilerParams(
            dimension_semantics=("parallel",)),
    )(x, mask, *weights)


# ---------------- pure-JAX reference (f32, for correctness check) ----------------
def block_reference(x, p):
    f32 = jnp.float32
    w_attn = p["w_attn"].astype(f32)
    w_aproj = p["w_aproj"].astype(f32)
    w_fc = p["w_fc"].astype(f32)
    w_mproj = p["w_mproj"].astype(f32)

    def ln(z, g, b):
        mu = jnp.mean(z, axis=-1, keepdims=True)
        var = jnp.mean((z - mu) ** 2, axis=-1, keepdims=True)
        return (z - mu) * jax.lax.rsqrt(var + LN_EPS) * g + b

    B, T, C = x.shape
    h = ln(x, p["g1"][0], p["be1"][0])
    qkv = h @ w_attn + p["b_attn"][0]
    q, k, v = jnp.split(qkv, 3, axis=-1)

    def heads(z):  # (B,T,C) -> (B,H,T,hd)
        return z.reshape(B, T, N_HEAD, HEAD_DIM).transpose(0, 2, 1, 3)

    q, k, v = heads(q), heads(k), heads(v)
    s = jnp.einsum("bhqd,bhkd->bhqk", q, k) / math.sqrt(HEAD_DIM)
    causal = jnp.tril(jnp.ones((T, T), bool))
    s = jnp.where(causal, s, -1e30)
    pattn = jax.nn.softmax(s, axis=-1)
    y = jnp.einsum("bhqk,bhkd->bhqd", pattn, v)
    y = y.transpose(0, 2, 1, 3).reshape(B, T, C)
    x = x + y @ w_aproj + p["b_aproj"][0]

    h2 = ln(x, p["g2"][0], p["be2"][0])
    a = h2 @ w_fc + p["b_fc"][0]
    cst = math.sqrt(2.0 / math.pi)
    a = 0.5 * a * (1.0 + jnp.tanh(cst * (a + 0.044715 * a ** 3)))
    return x + a @ w_mproj + p["b_mproj"][0]


def init_params(key):
    ks = jax.random.split(key, 10)
    C = EMBD

    def nrm(k, shape, scale=0.02):
        return (scale * jax.random.normal(k, shape)).astype(jnp.float32)

    return {
        # attention (GEMM weights stored bf16 for the MXU; biases stay f32)
        "w_attn": nrm(ks[0], (C, 3 * C)).astype(jnp.bfloat16),     # c_attn.weight^T
        "b_attn": nrm(ks[1], (1, 3 * C)),
        "w_aproj": nrm(ks[2], (C, C)).astype(jnp.bfloat16),        # attn c_proj.weight^T
        "b_aproj": nrm(ks[3], (1, C)),
        # layernorms (non-trivial but deterministic)
        "g1": (1.0 + 0.1 * jax.random.normal(ks[4], (1, C))).astype(jnp.float32),
        "be1": (0.1 * jax.random.normal(ks[5], (1, C))).astype(jnp.float32),
        "g2": (1.0 + 0.1 * jax.random.normal(ks[6], (1, C))).astype(jnp.float32),
        "be2": (0.1 * jax.random.normal(ks[7], (1, C))).astype(jnp.float32),
        # mlp
        "w_fc": nrm(ks[8], (C, 4 * C)).astype(jnp.bfloat16),       # c_fc.weight^T
        "b_fc": jnp.zeros((1, 4 * C), jnp.float32),
        "w_mproj": nrm(ks[9], (4 * C, C)).astype(jnp.bfloat16),    # mlp c_proj.weight^T
        "b_mproj": jnp.zeros((1, C), jnp.float32),
    }


if __name__ == "__main__":
    key = jax.random.PRNGKey(0)
    kx, kp = jax.random.split(key)
    x = jax.random.normal(kx, (BATCH, SEQ, EMBD), dtype=jnp.float32)
    params = init_params(kp)

    out = block_forward(x, params)
    out = jax.block_until_ready(out)

    ref = block_reference(x, params)
    assert out.shape == (BATCH, SEQ, EMBD)
    # tolerance relaxed vs. f32: bf16 MXU matmuls, bf16 GELU, approx reciprocal
    assert jnp.allclose(out, ref, atol=2e-2, rtol=2e-2), \
        f"max err {jnp.max(jnp.abs(out - ref))}"
    print("KERNEL_OK")
</pallas_src>

<mosaic_0001>
module attributes {stable_mosaic.version = 11 : i64} {
  func.func @block_kernel(%arg0: i32, %arg1: memref<1x128x128xf32, #tpu.memory_space<vmem>>, %arg2: memref<128x128xf32, #tpu.memory_space<vmem>>, %arg3: memref<128x384xbf16, #tpu.memory_space<vmem>>, %arg4: memref<1x384xf32, #tpu.memory_space<vmem>>, %arg5: memref<128x128xbf16, #tpu.memory_space<vmem>>, %arg6: memref<1x128xf32, #tpu.memory_space<vmem>>, %arg7: memref<1x128xf32, #tpu.memory_space<vmem>>, %arg8: memref<1x128xf32, #tpu.memory_space<vmem>>, %arg9: memref<1x128xf32, #tpu.memory_space<vmem>>, %arg10: memref<1x128xf32, #tpu.memory_space<vmem>>, %arg11: memref<128x512xbf16, #tpu.memory_space<vmem>>, %arg12: memref<1x512xf32, #tpu.memory_space<vmem>>, %arg13: memref<512x128xbf16, #tpu.memory_space<vmem>>, %arg14: memref<1x128xf32, #tpu.memory_space<vmem>>, %arg15: memref<1x128x128xf32, #tpu.memory_space<vmem>>) attributes {dimension_semantics = [#tpu.dimension_semantics<parallel>], iteration_bounds = array<i64: 2>, scalar_prefetch = 0 : i64, scratch_operands = 0 : i64, tpu.core_type = #tpu.core_type<tc>, window_params = [{transform_indices = @transform_0, window_bounds = array<i64: 1, 128, 128>}, {pipeline_mode = #tpu.pipeline_mode<synchronous>, transform_indices = @transform_1, window_bounds = array<i64: 128, 128>}, {pipeline_mode = #tpu.pipeline_mode<synchronous>, transform_indices = @transform_2, window_bounds = array<i64: 128, 384>}, {pipeline_mode = #tpu.pipeline_mode<synchronous>, transform_indices = @transform_3, window_bounds = array<i64: 1, 384>}, {pipeline_mode = #tpu.pipeline_mode<synchronous>, transform_indices = @transform_4, window_bounds = array<i64: 128, 128>}, {pipeline_mode = #tpu.pipeline_mode<synchronous>, transform_indices = @transform_5, window_bounds = array<i64: 1, 128>}, {pipeline_mode = #tpu.pipeline_mode<synchronous>, transform_indices = @transform_6, window_bounds = array<i64: 1, 128>}, {pipeline_mode = #tpu.pipeline_mode<synchronous>, transform_indices = @transform_7, window_bounds = array<i64: 1, 128>}, {pipeline_mode = #tpu.pipeline_mode<synchronous>, transform_indices = @transform_8, window_bounds = array<i64: 1, 128>}, {pipeline_mode = #tpu.pipeline_mode<synchronous>, transform_indices = @transform_9, window_bounds = array<i64: 1, 128>}, {pipeline_mode = #tpu.pipeline_mode<synchronous>, transform_indices = @transform_10, window_bounds = array<i64: 128, 512>}, {pipeline_mode = #tpu.pipeline_mode<synchronous>, transform_indices = @transform_11, window_bounds = array<i64: 1, 512>}, {pipeline_mode = #tpu.pipeline_mode<synchronous>, transform_indices = @transform_12, window_bounds = array<i64: 512, 128>}, {pipeline_mode = #tpu.pipeline_mode<synchronous>, transform_indices = @transform_13, window_bounds = array<i64: 1, 128>}, {transform_indices = @transform_14, window_bounds = array<i64: 1, 128, 128>}]} {
    %c0 = arith.constant 0 : index
    %c0_0 = arith.constant 0 : index
    %c0_1 = arith.constant 0 : index
    %0 = vector.load %arg1[%c0, %c0_0, %c0_1] : memref<1x128x128xf32, #tpu.memory_space<vmem>>, vector<1x128x128xf32>
    %1 = vector.shape_cast %0 : vector<1x128x128xf32> to vector<128x128xf32>
    %c0_2 = arith.constant 0 : index
    %c0_3 = arith.constant 0 : index
    %2 = vector.load %arg7[%c0_2, %c0_3] : memref<1x128xf32, #tpu.memory_space<vmem>>, vector<1x128xf32>
    %3 = vector.shape_cast %2 : vector<1x128xf32> to vector<128xf32>
    %c0_4 = arith.constant 0 : index
    %c0_5 = arith.constant 0 : index
    %4 = vector.load %arg8[%c0_4, %c0_5] : memref<1x128xf32, #tpu.memory_space<vmem>>, vector<1x128xf32>
    %5 = vector.shape_cast %4 : vector<1x128xf32> to vector<128xf32>
    %cst = arith.constant dense<0.000000e+00> : vector<128xf32>
    %6 = vector.multi_reduction <add>, %1, %cst [1] : vector<128x128xf32> to vector<128xf32>
    %7 = vector.shape_cast %6 : vector<128xf32> to vector<128x1xf32>
    %cst_6 = arith.constant 1.280000e+02 : f32
    %8 = vector.broadcast %cst_6 : f32 to vector<128x1xf32>
    %9 = arith.divf %7, %8 : vector<128x1xf32>
    %10 = vector.broadcast %9 : vector<128x1xf32> to vector<128x128xf32>
    %11 = arith.subf %1, %10 : vector<128x128xf32>
    %12 = arith.mulf %11, %11 : vector<128x128xf32>
    %cst_7 = arith.constant dense<0.000000e+00> : vector<128xf32>
    %13 = vector.multi_reduction <add>, %12, %cst_7 [1] : vector<128x128xf32> to vector<128xf32>
    %14 = vector.shape_cast %13 : vector<128xf32> to vector<128x1xf32>
    %cst_8 = arith.constant 1.280000e+02 : f32
    %15 = vector.broadcast %cst_8 : f32 to vector<128x1xf32>
    %16 = arith.divf %14, %15 : vector<128x1xf32>
    %17 = vector.broadcast %9 : vector<128x1xf32> to vector<128x128xf32>
    %18 = arith.subf %1, %17 : vector<128x128xf32>
    %cst_9 = arith.constant 9.99999974E-6 : f32
    %19 = vector.broadcast %cst_9 : f32 to vector<128x1xf32>
    %20 = arith.addf %16, %19 : vector<128x1xf32>
    %21 = math.rsqrt %20 : vector<128x1xf32>
    %22 = vector.broadcast %21 : vector<128x1xf32> to vector<128x128xf32>
    %23 = arith.mulf %18, %22 : vector<128x128xf32>
    %24 = vector.shape_cast %3 : vector<128xf32> to vector<1x128xf32>
    %25 = vector.broadcast %24 : vector<1x128xf32> to vector<128x128xf32>
    %26 = arith.mulf %23, %25 : vector<128x128xf32>
    %27 = vector.shape_cast %5 : vector<128xf32> to vector<1x128xf32>
    %28 = vector.broadcast %27 : vector<1x128xf32> to vector<128x128xf32>
    %29 = arith.addf %26, %28 : vector<128x128xf32>
    %30 = arith.truncf %29 : vector<128x128xf32> to vector<128x128xbf16>
    %c0_10 = arith.constant 0 : index
    %c0_11 = arith.constant 0 : index
    %31 = vector.load %arg3[%c0_10, %c0_11] : memref<128x384xbf16, #tpu.memory_space<vmem>>, vector<128x384xbf16>
    %cst_12 = arith.constant dense<0.000000e+00> : vector<128x384xf32>
    %32 = tpu.matmul %30, %31, %cst_12 {dimension_numbers = #tpu.dot_dimension_numbers<[1], [0], [0], [1], [0, 0, 1, 1], [], []>} : vector<128x128xbf16>, vector<128x384xbf16>, vector<128x384xf32> -> vector<128x384xf32>
    %c0_13 = arith.constant 0 : index
    %c0_14 = arith.constant 0 : index
    %33 = vector.load %arg4[%c0_13, %c0_14] : memref<1x384xf32, #tpu.memory_space<vmem>>, vector<1x384xf32>
    %34 = vector.shape_cast %33 : vector<1x384xf32> to vector<384xf32>
    %35 = vector.shape_cast %34 : vector<384xf32> to vector<1x384xf32>
    %36 = vector.broadcast %35 : vector<1x384xf32> to vector<128x384xf32>
    %37 = arith.addf %32, %36 : vector<128x384xf32>
    %38 = vector.extract_strided_slice %37 {offsets = [0, 0], sizes = [128, 128], strides = [1, 1]} : vector<128x384xf32> to vector<128x128xf32>
    %cst_15 = arith.constant 0.176776692 : f32
    %39 = vector.broadcast %cst_15 : f32 to vector<128x128xf32>
    %40 = arith.mulf %38, %39 : vector<128x128xf32>
    %41 = arith.truncf %40 : vector<128x128xf32> to vector<128x128xbf16>
    %42 = vector.extract_strided_slice %37 {offsets = [0, 128], sizes = [128, 128], strides = [1, 1]} : vector<128x384xf32> to vector<128x128xf32>
    %43 = tpu.transpose %42, [1, 0] : vector<128x128xf32> -> vector<128x128xf32>
    %44 = arith.truncf %43 : vector<128x128xf32> to vector<128x128xbf16>
    %45 = vector.extract_strided_slice %37 {offsets = [0, 256], sizes = [128, 128], strides = [1, 1]} : vector<128x384xf32> to vector<128x128xf32>
    %46 = arith.truncf %45 : vector<128x128xf32> to vector<128x128xbf16>
    %c0_16 = arith.constant 0 : index
    %c0_17 = arith.constant 0 : index
    %47 = vector.load %arg2[%c0_16, %c0_17] : memref<128x128xf32, #tpu.memory_space<vmem>>, vector<128x128xf32>
    %48 = vector.extract_strided_slice %41 {offsets = [0, 0], sizes = [128, 32], strides = [1, 1]} : vector<128x128xbf16> to vector<128x32xbf16>
    %49 = vector.extract_strided_slice %44 {offsets = [0, 0], sizes = [32, 128], strides = [1, 1]} : vector<128x128xbf16> to vector<32x128xbf16>
    %cst_18 = arith.constant dense<0.000000e+00> : vector<128x128xf32>
    %50 = tpu.matmul %48, %49, %cst_18 {dimension_numbers = #tpu.dot_dimension_numbers<[1], [0], [0], [1], [0, 0, 1, 1], [], []>} : vector<128x32xbf16>, vector<32x128xbf16>, vector<128x128xf32> -> vector<128x128xf32>
    %51 = arith.addf %50, %47 : vector<128x128xf32>
    %cst_19 = arith.constant dense<0xFF800000> : vector<128xf32>
    %52 = vector.multi_reduction <maximumf>, %51, %cst_19 [1] : vector<128x128xf32> to vector<128xf32>
    %53 = vector.shape_cast %52 : vector<128xf32> to vector<128x1xf32>
    %54 = vector.broadcast %53 : vector<128x1xf32> to vector<128x128xf32>
    %55 = arith.subf %51, %54 : vector<128x128xf32>
    %56 = math.exp %55 : vector<128x128xf32>
    %cst_20 = arith.constant dense<0.000000e+00> : vector<128xf32>
    %57 = vector.multi_reduction <add>, %56, %cst_20 [1] : vector<128x128xf32> to vector<128xf32>
    %58 = vector.shape_cast %57 : vector<128xf32> to vector<128x1xf32>
    %59 = arith.truncf %56 : vector<128x128xf32> to vector<128x128xbf16>
    %60 = vector.extract_strided_slice %46 {offsets = [0, 0], sizes = [128, 32], strides = [1, 1]} : vector<128x128xbf16> to vector<128x32xbf16>
    %cst_21 = arith.constant dense<0.000000e+00> : vector<128x32xf32>
    %61 = tpu.matmul %59, %60, %cst_21 {dimension_numbers = #tpu.dot_dimension_numbers<[1], [0], [0], [1], [0, 0, 1, 1], [], []>} : vector<128x128xbf16>, vector<128x32xbf16>, vector<128x32xf32> -> vector<128x32xf32>
    %62 = tpu.reciprocal %58 {approx = true} : vector<128x1xf32> -> vector<128x1xf32>
    %63 = vector.broadcast %62 : vector<128x1xf32> to vector<128x32xf32>
    %64 = arith.mulf %61, %63 : vector<128x32xf32>
    %65 = vector.extract_strided_slice %41 {offsets = [0, 32], sizes = [128, 32], strides = [1, 1]} : vector<128x128xbf16> to vector<128x32xbf16>
    %66 = vector.extract_strided_slice %44 {offsets = [32, 0], sizes = [32, 128], strides = [1, 1]} : vector<128x128xbf16> to vector<32x128xbf16>
    %cst_22 = arith.constant dense<0.000000e+00> : vector<128x128xf32>
    %67 = tpu.matmul %65, %66, %cst_22 {dimension_numbers = #tpu.dot_dimension_numbers<[1], [0], [0], [1], [0, 0, 1, 1], [], []>} : vector<128x32xbf16>, vector<32x128xbf16>, vector<128x128xf32> -> vector<128x128xf32>
    %68 = arith.addf %67, %47 : vector<128x128xf32>
    %cst_23 = arith.constant dense<0xFF800000> : vector<128xf32>
    %69 = vector.multi_reduction <maximumf>, %68, %cst_23 [1] : vector<128x128xf32> to vector<128xf32>
    %70 = vector.shape_cast %69 : vector<128xf32> to vector<128x1xf32>
    %71 = vector.broadcast %70 : vector<128x1xf32> to vector<128x128xf32>
    %72 = arith.subf %68, %71 : vector<128x128xf32>
    %73 = math.exp %72 : vector<128x128xf32>
    %cst_24 = arith.constant dense<0.000000e+00> : vector<128xf32>
    %74 = vector.multi_reduction <add>, %73, %cst_24 [1] : vector<128x128xf32> to vector<128xf32>
    %75 = vector.shape_cast %74 : vector<128xf32> to vector<128x1xf32>
    %76 = arith.truncf %73 : vector<128x128xf32> to vector<128x128xbf16>
    %77 = vector.extract_strided_slice %46 {offsets = [0, 32], sizes = [128, 32], strides = [1, 1]} : vector<128x128xbf16> to vector<128x32xbf16>
    %cst_25 = arith.constant dense<0.000000e+00> : vector<128x32xf32>
    %78 = tpu.matmul %76, %77, %cst_25 {dimension_numbers = #tpu.dot_dimension_numbers<[1], [0], [0], [1], [0, 0, 1, 1], [], []>} : vector<128x128xbf16>, vector<128x32xbf16>, vector<128x32xf32> -> vector<128x32xf32>
    %79 = tpu.reciprocal %75 {approx = true} : vector<128x1xf32> -> vector<128x1xf32>
    %80 = vector.broadcast %79 : vector<128x1xf32> to vector<128x32xf32>
    %81 = arith.mulf %78, %80 : vector<128x32xf32>
    %82 = vector.extract_strided_slice %41 {offsets = [0, 64], sizes = [128, 32], strides = [1, 1]} : vector<128x128xbf16> to vector<128x32xbf16>
    %83 = vector.extract_strided_slice %44 {offsets = [64, 0], sizes = [32, 128], strides = [1, 1]} : vector<128x128xbf16> to vector<32x128xbf16>
    %cst_26 = arith.constant dense<0.000000e+00> : vector<128x128xf32>
    %84 = tpu.matmul %82, %83, %cst_26 {dimension_numbers = #tpu.dot_dimension_numbers<[1], [0], [0], [1], [0, 0, 1, 1], [], []>} : vector<128x32xbf16>, vector<32x128xbf16>, vector<128x128xf32> -> vector<128x128xf32>
    %85 = arith.addf %84, %47 : vector<128x128xf32>
    %cst_27 = arith.constant dense<0xFF800000> : vector<128xf32>
    %86 = vector.multi_reduction <maximumf>, %85, %cst_27 [1] : vector<128x128xf32> to vector<128xf32>
    %87 = vector.shape_cast %86 : vector<128xf32> to vector<128x1xf32>
    %88 = vector.broadcast %87 : vector<128x1xf32> to vector<128x128xf32>
    %89 = arith.subf %85, %88 : vector<128x128xf32>
    %90 = math.exp %89 : vector<128x128xf32>
    %cst_28 = arith.constant dense<0.000000e+00> : vector<128xf32>
    %91 = vector.multi_reduction <add>, %90, %cst_28 [1] : vector<128x128xf32> to vector<128xf32>
    %92 = vector.shape_cast %91 : vector<128xf32> to vector<128x1xf32>
    %93 = arith.truncf %90 : vector<128x128xf32> to vector<128x128xbf16>
    %94 = vector.extract_strided_slice %46 {offsets = [0, 64], sizes = [128, 32], strides = [1, 1]} : vector<128x128xbf16> to vector<128x32xbf16>
    %cst_29 = arith.constant dense<0.000000e+00> : vector<128x32xf32>
    %95 = tpu.matmul %93, %94, %cst_29 {dimension_numbers = #tpu.dot_dimension_numbers<[1], [0], [0], [1], [0, 0, 1, 1], [], []>} : vector<128x128xbf16>, vector<128x32xbf16>, vector<128x32xf32> -> vector<128x32xf32>
    %96 = tpu.reciprocal %92 {approx = true} : vector<128x1xf32> -> vector<128x1xf32>
    %97 = vector.broadcast %96 : vector<128x1xf32> to vector<128x32xf32>
    %98 = arith.mulf %95, %97 : vector<128x32xf32>
    %99 = vector.extract_strided_slice %41 {offsets = [0, 96], sizes = [128, 32], strides = [1, 1]} : vector<128x128xbf16> to vector<128x32xbf16>
    %100 = vector.extract_strided_slice %44 {offsets = [96, 0], sizes = [32, 128], strides = [1, 1]} : vector<128x128xbf16> to vector<32x128xbf16>
    %cst_30 = arith.constant dense<0.000000e+00> : vector<128x128xf32>
    %101 = tpu.matmul %99, %100, %cst_30 {dimension_numbers = #tpu.dot_dimension_numbers<[1], [0], [0], [1], [0, 0, 1, 1], [], []>} : vector<128x32xbf16>, vector<32x128xbf16>, vector<128x128xf32> -> vector<128x128xf32>
    %102 = arith.addf %101, %47 : vector<128x128xf32>
    %cst_31 = arith.constant dense<0xFF800000> : vector<128xf32>
    %103 = vector.multi_reduction <maximumf>, %102, %cst_31 [1] : vector<128x128xf32> to vector<128xf32>
    %104 = vector.shape_cast %103 : vector<128xf32> to vector<128x1xf32>
    %105 = vector.broadcast %104 : vector<128x1xf32> to vector<128x128xf32>
    %106 = arith.subf %102, %105 : vector<128x128xf32>
    %107 = math.exp %106 : vector<128x128xf32>
    %cst_32 = arith.constant dense<0.000000e+00> : vector<128xf32>
    %108 = vector.multi_reduction <add>, %107, %cst_32 [1] : vector<128x128xf32> to vector<128xf32>
    %109 = vector.shape_cast %108 : vector<128xf32> to vector<128x1xf32>
    %110 = arith.truncf %107 : vector<128x128xf32> to vector<128x128xbf16>
    %111 = vector.extract_strided_slice %46 {offsets = [0, 96], sizes = [128, 32], strides = [1, 1]} : vector<128x128xbf16> to vector<128x32xbf16>
    %cst_33 = arith.constant dense<0.000000e+00> : vector<128x32xf32>
    %112 = tpu.matmul %110, %111, %cst_33 {dimension_numbers = #tpu.dot_dimension_numbers<[1], [0], [0], [1], [0, 0, 1, 1], [], []>} : vector<128x128xbf16>, vector<128x32xbf16>, vector<128x32xf32> -> vector<128x32xf32>
    %113 = tpu.reciprocal %109 {approx = true} : vector<128x1xf32> -> vector<128x1xf32>
    %114 = vector.broadcast %113 : vector<128x1xf32> to vector<128x32xf32>
    %115 = arith.mulf %112, %114 : vector<128x32xf32>
    %116 = tpu.concatenate %64, %81, %98, %115 in 1 : vector<128x32xf32>, vector<128x32xf32>, vector<128x32xf32>, vector<128x32xf32> -> vector<128x128xf32>
    %117 = arith.truncf %116 : vector<128x128xf32> to vector<128x128xbf16>
    %c0_34 = arith.constant 0 : index
    %c0_35 = arith.constant 0 : index
    %118 = vector.load %arg5[%c0_34, %c0_35] : memref<128x128xbf16, #tpu.memory_space<vmem>>, vector<128x128xbf16>
    %cst_36 = arith.constant dense<0.000000e+00> : vector<128x128xf32>
    %119 = tpu.matmul %117, %118, %cst_36 {dimension_numbers = #tpu.dot_dimension_numbers<[1], [0], [0], [1], [0, 0, 1, 1], [], []>} : vector<128x128xbf16>, vector<128x128xbf16>, vector<128x128xf32> -> vector<128x128xf32>
    %c0_37 = arith.constant 0 : index
    %c0_38 = arith.constant 0 : index
    %120 = vector.load %arg6[%c0_37, %c0_38] : memref<1x128xf32, #tpu.memory_space<vmem>>, vector<1x128xf32>
    %121 = vector.shape_cast %120 : vector<1x128xf32> to vector<128xf32>
    %122 = vector.shape_cast %121 : vector<128xf32> to vector<1x128xf32>
    %123 = vector.broadcast %122 : vector<1x128xf32> to vector<128x128xf32>
    %124 = arith.addf %119, %123 : vector<128x128xf32>
    %125 = arith.addf %1, %124 : vector<128x128xf32>
    %c0_39 = arith.constant 0 : index
    %c0_40 = arith.constant 0 : index
    %126 = vector.load %arg9[%c0_39, %c0_40] : memref<1x128xf32, #tpu.memory_space<vmem>>, vector<1x128xf32>
    %127 = vector.shape_cast %126 : vector<1x128xf32> to vector<128xf32>
    %c0_41 = arith.constant 0 : index
    %c0_42 = arith.constant 0 : index
    %128 = vector.load %arg10[%c0_41, %c0_42] : memref<1x128xf32, #tpu.memory_space<vmem>>, vector<1x128xf32>
    %129 = vector.shape_cast %128 : vector<1x128xf32> to vector<128xf32>
    %cst_43 = arith.constant dense<0.000000e+00> : vector<128xf32>
    %130 = vector.multi_reduction <add>, %125, %cst_43 [1] : vector<128x128xf32> to vector<128xf32>
    %131 = vector.shape_cast %130 : vector<128xf32> to vector<128x1xf32>
    %cst_44 = arith.constant 1.280000e+02 : f32
    %132 = vector.broadcast %cst_44 : f32 to vector<128x1xf32>
    %133 = arith.divf %131, %132 : vector<128x1xf32>
    %134 = vector.broadcast %133 : vector<128x1xf32> to vector<128x128xf32>
    %135 = arith.subf %125, %134 : vector<128x128xf32>
    %136 = arith.mulf %135, %135 : vector<128x128xf32>
    %cst_45 = arith.constant dense<0.000000e+00> : vector<128xf32>
    %137 = vector.multi_reduction <add>, %136, %cst_45 [1] : vector<128x128xf32> to vector<128xf32>
    %138 = vector.shape_cast %137 : vector<128xf32> to vector<128x1xf32>
    %cst_46 = arith.constant 1.280000e+02 : f32
    %139 = vector.broadcast %cst_46 : f32 to vector<128x1xf32>
    %140 = arith.divf %138, %139 : vector<128x1xf32>
    %141 = vector.broadcast %133 : vector<128x1xf32> to vector<128x128xf32>
    %142 = arith.subf %125, %141 : vector<128x128xf32>
    %cst_47 = arith.constant 9.99999974E-6 : f32
    %143 = vector.broadcast %cst_47 : f32 to vector<128x1xf32>
    %144 = arith.addf %140, %143 : vector<128x1xf32>
    %145 = math.rsqrt %144 : vector<128x1xf32>
    %146 = vector.broadcast %145 : vector<128x1xf32> to vector<128x128xf32>
    %147 = arith.mulf %142, %146 : vector<128x128xf32>
    %148 = vector.shape_cast %127 : vector<128xf32> to vector<1x128xf32>
    %149 = vector.broadcast %148 : vector<1x128xf32> to vector<128x128xf32>
    %150 = arith.mulf %147, %149 : vector<128x128xf32>
    %151 = vector.shape_cast %129 : vector<128xf32> to vector<1x128xf32>
    %152 = vector.broadcast %151 : vector<1x128xf32> to vector<128x128xf32>
    %153 = arith.addf %150, %152 : vector<128x128xf32>
    %154 = arith.truncf %153 : vector<128x128xf32> to vector<128x128xbf16>
    %c0_48 = arith.constant 0 : index
    %c0_49 = arith.constant 0 : index
    %155 = vector.load %arg11[%c0_48, %c0_49] : memref<128x512xbf16, #tpu.memory_space<vmem>>, vector<128x512xbf16>
    %cst_50 = arith.constant dense<0.000000e+00> : vector<128x512xf32>
    %156 = tpu.matmul %154, %155, %cst_50 {dimension_numbers = #tpu.dot_dimension_numbers<[1], [0], [0], [1], [0, 0, 1, 1], [], []>} : vector<128x128xbf16>, vector<128x512xbf16>, vector<128x512xf32> -> vector<128x512xf32>
    %c0_51 = arith.constant 0 : index
    %c0_52 = arith.constant 0 : index
    %157 = vector.load %arg12[%c0_51, %c0_52] : memref<1x512xf32, #tpu.memory_space<vmem>>, vector<1x512xf32>
    %158 = vector.shape_cast %157 : vector<1x512xf32> to vector<512xf32>
    %159 = vector.shape_cast %158 : vector<512xf32> to vector<1x512xf32>
    %160 = vector.broadcast %159 : vector<1x512xf32> to vector<128x512xf32>
    %161 = arith.addf %156, %160 : vector<128x512xf32>
    %162 = arith.truncf %161 : vector<128x512xf32> to vector<128x512xbf16>
    %cst_53 = arith.constant 5.000000e-01 : bf16
    %163 = vector.broadcast %cst_53 : bf16 to vector<128x512xbf16>
    %164 = arith.mulf %163, %162 : vector<128x512xbf16>
    %165 = arith.mulf %162, %162 : vector<128x512xbf16>
    %166 = arith.mulf %165, %162 : vector<128x512xbf16>
    %cst_54 = arith.constant 4.467770e-02 : bf16
    %167 = vector.broadcast %cst_54 : bf16 to vector<128x512xbf16>
    %168 = arith.mulf %167, %166 : vector<128x512xbf16>
    %169 = arith.addf %162, %168 : vector<128x512xbf16>
    %cst_55 = arith.constant 7.968750e-01 : bf16
    %170 = vector.broadcast %cst_55 : bf16 to vector<128x512xbf16>
    %171 = arith.mulf %170, %169 : vector<128x512xbf16>
    %172 = math.tanh %171 : vector<128x512xbf16>
    %cst_56 = arith.constant 1.000000e+00 : bf16
    %173 = vector.broadcast %cst_56 : bf16 to vector<128x512xbf16>
    %174 = arith.addf %173, %172 : vector<128x512xbf16>
    %175 = arith.mulf %164, %174 : vector<128x512xbf16>
    %c0_57 = arith.constant 0 : index
    %c0_58 = arith.constant 0 : index
    %176 = vector.load %arg13[%c0_57, %c0_58] : memref<512x128xbf16, #tpu.memory_space<vmem>>, vector<512x128xbf16>
    %cst_59 = arith.constant dense<0.000000e+00> : vector<128x128xf32>
    %177 = tpu.matmul %175, %176, %cst_59 {dimension_numbers = #tpu.dot_dimension_numbers<[1], [0], [0], [1], [0, 0, 1, 1], [], []>} : vector<128x512xbf16>, vector<512x128xbf16>, vector<128x128xf32> -> vector<128x128xf32>
    %c0_60 = arith.constant 0 : index
    %c0_61 = arith.constant 0 : index
    %178 = vector.load %arg14[%c0_60, %c0_61] : memref<1x128xf32, #tpu.memory_space<vmem>>, vector<1x128xf32>
    %179 = vector.shape_cast %178 : vector<1x128xf32> to vector<128xf32>
    %180 = vector.shape_cast %179 : vector<128xf32> to vector<1x128xf32>
    %181 = vector.broadcast %180 : vector<1x128xf32> to vector<128x128xf32>
    %182 = arith.addf %177, %181 : vector<128x128xf32>
    %183 = arith.addf %125, %182 : vector<128x128xf32>
    %c0_62 = arith.constant 0 : index
    %c0_63 = arith.constant 0 : index
    %c0_64 = arith.constant 0 : index
    %184 = vector.load %arg15[%c0_62, %c0_63, %c0_64] : memref<1x128x128xf32, #tpu.memory_space<vmem>>, vector<1x128x128xf32>
    %185 = vector.shape_cast %184 : vector<1x128x128xf32> to vector<128x128xf32>
    %186 = vector.shape_cast %183 : vector<128x128xf32> to vector<1x128x128xf32>
    tpu.vector_store %arg15[%c0_62, %c0_63, %c0_64], %186 {strides = array<i32>} : memref<1x128x128xf32, #tpu.memory_space<vmem>>, vector<1x128x128xf32>,
    return
  }
  func.func @transform_0(%arg0: i32) -> (i32, i32, i32) {
    %c0_i32 = arith.constant 0 : i32
    %c0_i32_0 = arith.constant 0 : i32
    %c0_i32_1 = arith.constant 0 : i32
    return %arg0, %c0_i32, %c0_i32_0 : i32, i32, i32
  }
  func.func @transform_1(%arg0: i32) -> (i32, i32) {
    %c0_i32 = arith.constant 0 : i32
    %c0_i32_0 = arith.constant 0 : i32
    %c0_i32_1 = arith.constant 0 : i32
    return %c0_i32, %c0_i32_0 : i32, i32
  }
  func.func @transform_2(%arg0: i32) -> (i32, i32) {
    %c0_i32 = arith.constant 0 : i32
    %c0_i32_0 = arith.constant 0 : i32
    %c0_i32_1 = arith.constant 0 : i32
    return %c0_i32, %c0_i32_0 : i32, i32
  }
  func.func @transform_3(%arg0: i32) -> (i32, i32) {
    %c0_i32 = arith.constant 0 : i32
    %c0_i32_0 = arith.constant 0 : i32
    %c0_i32_1 = arith.constant 0 : i32
    return %c0_i32, %c0_i32_0 : i32, i32
  }
  func.func @transform_4(%arg0: i32) -> (i32, i32) {
    %c0_i32 = arith.constant 0 : i32
    %c0_i32_0 = arith.constant 0 : i32
    %c0_i32_1 = arith.constant 0 : i32
    return %c0_i32, %c0_i32_0 : i32, i32
  }
  func.func @transform_5(%arg0: i32) -> (i32, i32) {
    %c0_i32 = arith.constant 0 : i32
    %c0_i32_0 = arith.constant 0 : i32
    %c0_i32_1 = arith.constant 0 : i32
    return %c0_i32, %c0_i32_0 : i32, i32
  }
  func.func @transform_6(%arg0: i32) -> (i32, i32) {
    %c0_i32 = arith.constant 0 : i32
    %c0_i32_0 = arith.constant 0 : i32
    %c0_i32_1 = arith.constant 0 : i32
    return %c0_i32, %c0_i32_0 : i32, i32
  }
  func.func @transform_7(%arg0: i32) -> (i32, i32) {
    %c0_i32 = arith.constant 0 : i32
    %c0_i32_0 = arith.constant 0 : i32
    %c0_i32_1 = arith.constant 0 : i32
    return %c0_i32, %c0_i32_0 : i32, i32
  }
  func.func @transform_8(%arg0: i32) -> (i32, i32) {
    %c0_i32 = arith.constant 0 : i32
    %c0_i32_0 = arith.constant 0 : i32
    %c0_i32_1 = arith.constant 0 : i32
    return %c0_i32, %c0_i32_0 : i32, i32
  }
  func.func @transform_9(%arg0: i32) -> (i32, i32) {
    %c0_i32 = arith.constant 0 : i32
    %c0_i32_0 = arith.constant 0 : i32
    %c0_i32_1 = arith.constant 0 : i32
    return %c0_i32, %c0_i32_0 : i32, i32
  }
  func.func @transform_10(%arg0: i32) -> (i32, i32) {
    %c0_i32 = arith.constant 0 : i32
    %c0_i32_0 = arith.constant 0 : i32
    %c0_i32_1 = arith.constant 0 : i32
    return %c0_i32, %c0_i32_0 : i32, i32
  }
  func.func @transform_11(%arg0: i32) -> (i32, i32) {
    %c0_i32 = arith.constant 0 : i32
    %c0_i32_0 = arith.constant 0 : i32
    %c0_i32_1 = arith.constant 0 : i32
    return %c0_i32, %c0_i32_0 : i32, i32
  }
  func.func @transform_12(%arg0: i32) -> (i32, i32) {
    %c0_i32 = arith.constant 0 : i32
    %c0_i32_0 = arith.constant 0 : i32
    %c0_i32_1 = arith.constant 0 : i32
    return %c0_i32, %c0_i32_0 : i32, i32
  }
  func.func @transform_13(%arg0: i32) -> (i32, i32) {
    %c0_i32 = arith.constant 0 : i32
    %c0_i32_0 = arith.constant 0 : i32
    %c0_i32_1 = arith.constant 0 : i32
    return %c0_i32, %c0_i32_0 : i32, i32
  }
  func.func @transform_14(%arg0: i32) -> (i32, i32, i32) {
    %c0_i32 = arith.constant 0 : i32
    %c0_i32_0 = arith.constant 0 : i32
    %c0_i32_1 = arith.constant 0 : i32
    return %arg0, %c0_i32, %c0_i32_0 : i32, i32, i32
  }
}

</mosaic_0001>

<llo_original>
// kernel: tpu_custom_call.1
$region0: #{tpu_custom_call.1}
  #allocation0 [shape = 'u32[]', space=smem, size = 0x4, offset = 0x4, fixed_abs, tag = 'smem constant byte address 0x4 - core index']
  #allocation1 [shape = 'u32[72,128]{1,0:T(1,128)}', space=vmem, size = 0x9000, scoped, tag = 'internal scratch']
  %s0 = inlined_call_operand.hbm [shape: f32[2,128,128], index: 0, kind: input, shape index: {}]
  %s1 = inlined_call_operand.hbm [shape: f32[128,128], index: 1, kind: input, shape index: {}]
  %s2 = inlined_call_operand.hbm [shape: bf16[128,384], index: 2, kind: input, shape index: {}]
  %s3 = inlined_call_operand.hbm [shape: f32[1,384], index: 3, kind: input, shape index: {}]
  %s4 = inlined_call_operand.hbm [shape: bf16[128,128], index: 4, kind: input, shape index: {}]
  %s5 = inlined_call_operand.vmem [shape: f32[1,128], index: 5, kind: input, shape index: {}]
  %s6 = inlined_call_operand.vmem [shape: f32[1,128], index: 6, kind: input, shape index: {}]
  %s7 = inlined_call_operand.vmem [shape: f32[1,128], index: 7, kind: input, shape index: {}]
  %s8 = inlined_call_operand.hbm [shape: f32[1,128], index: 8, kind: input, shape index: {}]
  %s9 = inlined_call_operand.vmem [shape: f32[1,128], index: 9, kind: input, shape index: {}]
  %s10 = inlined_call_operand.hbm [shape: bf16[128,512], index: 10, kind: input, shape index: {}]
  %s11 = inlined_call_operand.vmem [shape: f32[1,512], index: 11, kind: input, shape index: {}]
  %s12 = inlined_call_operand.hbm [shape: bf16[512,128], index: 12, kind: input, shape index: {}]
  %s13 = inlined_call_operand.vmem [shape: f32[1,128], index: 13, kind: input, shape index: {}]
  %s14 = inlined_call_operand.hbm [shape: f32[2,128,128], index: 14, kind: output, shape index: {}]
  %s15 = sld [smem:[#allocation0]]
  $region121: #{tpu_custom_call.1} parent=0
    _
  %s17 = ssub.s32 1, %s15
  %s18 = scalar_select 0, %s17, %s15
  $region1: #{tpu_custom_call.1} parent=0
    #allocation2 [shape = 'u8[131072]{0}', space=vmem, size = 0x20000, scoped, tag = 'input window, operand 0']
    #allocation3 [shape = 's32[2]{0}', space=sflag, size = 0x8, scoped, tag = 'scoped memory for tpu_custom_call.1']
    #allocation4 [shape = 's32[2]{0}', space=sflag, size = 0x8, scoped, tag = 'scoped memory for tpu_custom_call.1']
    #allocation5 [shape = 'u8[65536]{0}', space=vmem, size = 0x10000, scoped, tag = 'input window, operand 1, single buffered']
    #allocation6 [shape = 's32[1]{0}', space=sflag, size = 0x4, scoped, tag = 'scoped memory for tpu_custom_call.1']
    #allocation7 [shape = 'u8[98304]{0}', space=vmem, size = 0x18000, scoped, tag = 'input window, operand 2, single buffered']
    #allocation8 [shape = 'u8[1536]{0}', space=vmem, size = 0x800, scoped, tag = 'input window, operand 3, single buffered']
    #allocation9 [shape = 's32[1]{0}', space=sflag, size = 0x4, scoped, tag = 'scoped memory for tpu_custom_call.1']
    #allocation10 [shape = 'u8[32768]{0}', space=vmem, size = 0x8000, scoped, tag = 'input window, operand 4, single buffered']
    #allocation11 [shape = 'u8[512]{0}', space=vmem, size = 0x400, scoped, tag = 'input window, operand 8, single buffered']
    #allocation12 [shape = 's32[1]{0}', space=sflag, size = 0x4, scoped, tag = 'scoped memory for tpu_custom_call.1']
    #allocation13 [shape = 'u8[131072]{0}', space=vmem, size = 0x20000, scoped, tag = 'input window, operand 10, single buffered']
    #allocation14 [shape = 'u8[131072]{0}', space=vmem, size = 0x20000, scoped, tag = 'input window, operand 12, single buffered']
    #allocation15 [shape = 's32[1]{0}', space=sflag, size = 0x4, scoped, tag = 'scoped memory for tpu_custom_call.1']
    #allocation16 [shape = 'u8[131072]{0}', space=vmem, size = 0x20000, scoped, tag = 'output window, operand 0']
    %19 = vsyncpa [#allocation3], 0
    %s20 = scalar_lea.sflag [#allocation3], 1
    %21 = vsyncpa %s20, 0
    %22 = vsyncpa [#allocation6], 0
    %23 = vsyncpa [#allocation9], 0
    %24 = vsyncpa [#allocation12], 0
    %25 = vsyncpa [#allocation15], 0
    %26 = vsyncpa [#allocation4], 0
    %s27 = scalar_lea.sflag [#allocation4], 1
    %28 = vsyncpa %s27, 0
    loop: start=0, step=1, limit=4
    $region2: #{tpu_custom_call.1} parent=1 // loop_pre_header
      _
    $region3: #{tpu_custom_call.1} parent=1 // loop_header
      %s30 = sphi 0, %s34
      %p31 = scmp.ge.s32.totalorder %s30, 4
      %s40 = sphi 0, %s42
      %s43 = sphi 0, %s40
      %s44 = sphi 0, %s43
      %s60 = sphi 0, %s44
      %s64 = sphi 0, %s64
      %s66 = sphi 0, %s64
      %s67 = sphi 0, %s66
      %s81 = sphi 0, %s67
      %s85 = sphi 0, %s85
      %s87 = sphi 0, %s85
      %s88 = sphi 0, %s87
      %s102 = sphi 0, %s88
      %s106 = sphi 0, %s106
      %s108 = sphi 0, %s106
      %s109 = sphi 0, %s108
      %s123 = sphi 0, %s109
      %s127 = sphi 0, %s127
      %s129 = sphi 0, %s127
      %s130 = sphi 0, %s129
      %s144 = sphi 0, %s130
      %s148 = sphi 0, %s148
      %s150 = sphi 0, %s148
      %s151 = sphi 0, %s150
      %s165 = sphi 0, %s151
      %s169 = sphi 0, %s169
      %s171 = sphi 0, %s169
      %s172 = sphi 0, %s171
      %s186 = sphi 0, %s172
      %s190 = sphi 0, %s190
      %s192 = sphi 0, %s190
      %s193 = sphi 0, %s192
      %s207 = sphi 0, %s193
      %s211 = sphi 0, %s211
      %s213 = sphi 0, %s211
      %s214 = sphi 0, %s213
      %s228 = sphi 0, %s214
      %s232 = sphi 0, %s232
      %s234 = sphi 0, %s232
      %s235 = sphi 0, %s234
      %s249 = sphi 0, %s235
      %s253 = sphi 0, %s253
      %s255 = sphi 0, %s253
      %s256 = sphi 0, %s255
      %s270 = sphi 0, %s256
      %s274 = sphi 0, %s274
      %s276 = sphi 0, %s274
      %s277 = sphi 0, %s276
      %s291 = sphi 0, %s277
      %s295 = sphi 0, %s295
      %s297 = sphi 0, %s295
      %s298 = sphi 0, %s297
      %s312 = sphi 0, %s298
      %s316 = sphi 0, %s316
      %s318 = sphi 0, %s316
      %s319 = sphi 0, %s318
      %s333 = sphi 0, %s319
      %s339 = sphi 0, %s341
      %s342 = sphi 0, %s339
      %s343 = sphi 0, %s342
      %s359 = sphi 0, %s343
    $region4: #{tpu_custom_call.1} parent=1 // loop_header_branch
      %33 = sbr.rel (%p31) target = $region8
    $region5: #{tpu_custom_call.1} parent=1 // loop_body
      %s35 = ssub.s32 %s30, 1
      %s36 = ssub.s32 %s30, 2
      %s37 = sadd.s32 %s30, 1
      %s38 = ssub.s32 %s30, %s37
      %p39 = scmp.eq.s32.totalorder %s38, 0
      %s41 = sadd.s32 %s40, 1
      %s42 = scalar_select %p39, %s40, %s41
      %p45 = pneg %p39
      %p46 = scmp.eq.s32.totalorder %s30, 1
      %p47 = por %p45, %p46
      %p48 = scmp.ne.s32.totalorder %s40, %s43
      %p49 = scmp.eq.s32.totalorder %s30, 0
      %p50 = por %p48, %p49
      %p51 = scmp.ne.s32.totalorder %s40, %s43
      %p52 = scmp.eq.s32.totalorder %s35, 1
      %p53 = por %p51, %p52
      %p54 = scmp.ne.s32.totalorder %s43, %s44
      %p55 = scmp.eq.s32.totalorder %s35, 0
      %p56 = por %p54, %p55
      %p57 = scmp.ne.s32.totalorder %s43, %s44
      %p58 = scmp.eq.s32.totalorder %s36, 1
      %p59 = por %p57, %p58
      %p61 = scmp.ne.s32.totalorder %s44, %s60
      %p62 = scmp.eq.s32.totalorder %s36, 0
      %p63 = por %p61, %p62
      %s65 = sadd.s32 %s64, 1
      %p68 = scmp.eq.s32.totalorder %s30, 1
      %p69 = scmp.ne.s32.totalorder %s64, %s66
      %p70 = scmp.eq.s32.totalorder %s30, 0
      %p71 = por %p69, %p70
      %p72 = scmp.ne.s32.totalorder %s64, %s66
      %p73 = scmp.eq.s32.totalorder %s35, 1
      %p74 = por %p72, %p73
      %p75 = scmp.ne.s32.totalorder %s66, %s67
      %p76 = scmp.eq.s32.totalorder %s35, 0
      %p77 = por %p75, %p76
      %p78 = scmp.ne.s32.totalorder %s66, %s67
      %p79 = scmp.eq.s32.totalorder %s36, 1
      %p80 = por %p78, %p79
      %p82 = scmp.ne.s32.totalorder %s67, %s81
      %p83 = scmp.eq.s32.totalorder %s36, 0
      %p84 = por %p82, %p83
      %s86 = sadd.s32 %s85, 1
      %p89 = scmp.eq.s32.totalorder %s30, 1
      %p90 = scmp.ne.s32.totalorder %s85, %s87
      %p91 = scmp.eq.s32.totalorder %s30, 0
      %p92 = por %p90, %p91
      %p93 = scmp.ne.s32.totalorder %s85, %s87
      %p94 = scmp.eq.s32.totalorder %s35, 1
      %p95 = por %p93, %p94
      %p96 = scmp.ne.s32.totalorder %s87, %s88
      %p97 = scmp.eq.s32.totalorder %s35, 0
      %p98 = por %p96, %p97
      %p99 = scmp.ne.s32.totalorder %s87, %s88
      %p100 = scmp.eq.s32.totalorder %s36, 1
      %p101 = por %p99, %p100
      %p103 = scmp.ne.s32.totalorder %s88, %s102
      %p104 = scmp.eq.s32.totalorder %s36, 0
      %p105 = por %p103, %p104
      %s107 = sadd.s32 %s106, 1
      %p110 = scmp.eq.s32.totalorder %s30, 1
      %p111 = scmp.ne.s32.totalorder %s106, %s108
      %p112 = scmp.eq.s32.totalorder %s30, 0
      %p113 = por %p111, %p112
      %p114 = scmp.ne.s32.totalorder %s106, %s108
      %p115 = scmp.eq.s32.totalorder %s35, 1
      %p116 = por %p114, %p115
      %p117 = scmp.ne.s32.totalorder %s108, %s109
      %p118 = scmp.eq.s32.totalorder %s35, 0
      %p119 = por %p117, %p118
      %p120 = scmp.ne.s32.totalorder %s108, %s109
      %p121 = scmp.eq.s32.totalorder %s36, 1
      %p122 = por %p120, %p121
      %p124 = scmp.ne.s32.totalorder %s109, %s123
      %p125 = scmp.eq.s32.totalorder %s36, 0
      %p126 = por %p124, %p125
      %s128 = sadd.s32 %s127, 1
      %p131 = scmp.eq.s32.totalorder %s30, 1
      %p132 = scmp.ne.s32.totalorder %s127, %s129
      %p133 = scmp.eq.s32.totalorder %s30, 0
      %p134 = por %p132, %p133
      %p135 = scmp.ne.s32.totalorder %s127, %s129
      %p136 = scmp.eq.s32.totalorder %s35, 1
      %p137 = por %p135, %p136
      %p138 = scmp.ne.s32.totalorder %s129, %s130
      %p139 = scmp.eq.s32.totalorder %s35, 0
      %p140 = por %p138, %p139
      %p141 = scmp.ne.s32.totalorder %s129, %s130
      %p142 = scmp.eq.s32.totalorder %s36, 1
      %p143 = por %p141, %p142
      %p145 = scmp.ne.s32.totalorder %s130, %s144
      %p146 = scmp.eq.s32.totalorder %s36, 0
      %p147 = por %p145, %p146
      %s149 = sadd.s32 %s148, 1
      %p152 = scmp.eq.s32.totalorder %s30, 1
      %p153 = scmp.ne.s32.totalorder %s148, %s150
      %p154 = scmp.eq.s32.totalorder %s30, 0
      %p155 = por %p153, %p154
      %p156 = scmp.ne.s32.totalorder %s148, %s150
      %p157 = scmp.eq.s32.totalorder %s35, 1
      %p158 = por %p156, %p157
      %p159 = scmp.ne.s32.totalorder %s150, %s151
      %p160 = scmp.eq.s32.totalorder %s35, 0
      %p161 = por %p159, %p160
      %p162 = scmp.ne.s32.totalorder %s150, %s151
      %p163 = scmp.eq.s32.totalorder %s36, 1
      %p164 = por %p162, %p163
      %p166 = scmp.ne.s32.totalorder %s151, %s165
      %p167 = scmp.eq.s32.totalorder %s36, 0
      %p168 = por %p166, %p167
      %s170 = sadd.s32 %s169, 1
      %p173 = scmp.eq.s32.totalorder %s30, 1
      %p174 = scmp.ne.s32.totalorder %s169, %s171
      %p175 = scmp.eq.s32.totalorder %s30, 0
      %p176 = por %p174, %p175
      %p177 = scmp.ne.s32.totalorder %s169, %s171
      %p178 = scmp.eq.s32.totalorder %s35, 1
      %p179 = por %p177, %p178
      %p180 = scmp.ne.s32.totalorder %s171, %s172
      %p181 = scmp.eq.s32.totalorder %s35, 0
      %p182 = por %p180, %p181
      %p183 = scmp.ne.s32.totalorder %s171, %s172
      %p184 = scmp.eq.s32.totalorder %s36, 1
      %p185 = por %p183, %p184
      %p187 = scmp.ne.s32.totalorder %s172, %s186
      %p188 = scmp.eq.s32.totalorder %s36, 0
      %p189 = por %p187, %p188
      %s191 = sadd.s32 %s190, 1
      %p194 = scmp.eq.s32.totalorder %s30, 1
      %p195 = scmp.ne.s32.totalorder %s190, %s192
      %p196 = scmp.eq.s32.totalorder %s30, 0
      %p197 = por %p195, %p196
      %p198 = scmp.ne.s32.totalorder %s190, %s192
      %p199 = scmp.eq.s32.totalorder %s35, 1
      %p200 = por %p198, %p199
      %p201 = scmp.ne.s32.totalorder %s192, %s193
      %p202 = scmp.eq.s32.totalorder %s35, 0
      %p203 = por %p201, %p202
      %p204 = scmp.ne.s32.totalorder %s192, %s193
      %p205 = scmp.eq.s32.totalorder %s36, 1
      %p206 = por %p204, %p205
      %p208 = scmp.ne.s32.totalorder %s193, %s207
      %p209 = scmp.eq.s32.totalorder %s36, 0
      %p210 = por %p208, %p209
      %s212 = sadd.s32 %s211, 1
      %p215 = scmp.eq.s32.totalorder %s30, 1
      %p216 = scmp.ne.s32.totalorder %s211, %s213
      %p217 = scmp.eq.s32.totalorder %s30, 0
      %p218 = por %p216, %p217
      %p219 = scmp.ne.s32.totalorder %s211, %s213
      %p220 = scmp.eq.s32.totalorder %s35, 1
      %p221 = por %p219, %p220
      %p222 = scmp.ne.s32.totalorder %s213, %s214
      %p223 = scmp.eq.s32.totalorder %s35, 0
      %p224 = por %p222, %p223
      %p225 = scmp.ne.s32.totalorder %s213, %s214
      %p226 = scmp.eq.s32.totalorder %s36, 1
      %p227 = por %p225, %p226
      %p229 = scmp.ne.s32.totalorder %s214, %s228
      %p230 = scmp.eq.s32.totalorder %s36, 0
      %p231 = por %p229, %p230
      %s233 = sadd.s32 %s232, 1
      %p236 = scmp.eq.s32.totalorder %s30, 1
      %p237 = scmp.ne.s32.totalorder %s232, %s234
      %p238 = scmp.eq.s32.totalorder %s30, 0
      %p239 = por %p237, %p238
      %p240 = scmp.ne.s32.totalorder %s232, %s234
      %p241 = scmp.eq.s32.totalorder %s35, 1
      %p242 = por %p240, %p241
      %p243 = scmp.ne.s32.totalorder %s234, %s235
      %p244 = scmp.eq.s32.totalorder %s35, 0
      %p245 = por %p243, %p244
      %p246 = scmp.ne.s32.totalorder %s234, %s235
      %p247 = scmp.eq.s32.totalorder %s36, 1
      %p248 = por %p246, %p247
      %p250 = scmp.ne.s32.totalorder %s235, %s249
      %p251 = scmp.eq.s32.totalorder %s36, 0
      %p252 = por %p250, %p251
      %s254 = sadd.s32 %s253, 1
      %p257 = scmp.eq.s32.totalorder %s30, 1
      %p258 = scmp.ne.s32.totalorder %s253, %s255
      %p259 = scmp.eq.s32.totalorder %s30, 0
      %p260 = por %p258, %p259
      %p261 = scmp.ne.s32.totalorder %s253, %s255
      %p262 = scmp.eq.s32.totalorder %s35, 1
      %p263 = por %p261, %p262
      %p264 = scmp.ne.s32.totalorder %s255, %s256
      %p265 = scmp.eq.s32.totalorder %s35, 0
      %p266 = por %p264, %p265
      %p267 = scmp.ne.s32.totalorder %s255, %s256
      %p268 = scmp.eq.s32.totalorder %s36, 1
      %p269 = por %p267, %p268
      %p271 = scmp.ne.s32.totalorder %s256, %s270
      %p272 = scmp.eq.s32.totalorder %s36, 0
      %p273 = por %p271, %p272
      %s275 = sadd.s32 %s274, 1
      %p278 = scmp.eq.s32.totalorder %s30, 1
      %p279 = scmp.ne.s32.totalorder %s274, %s276
      %p280 = scmp.eq.s32.totalorder %s30, 0
      %p281 = por %p279, %p280
      %p282 = scmp.ne.s32.totalorder %s274, %s276
      %p283 = scmp.eq.s32.totalorder %s35, 1
      %p284 = por %p282, %p283
      %p285 = scmp.ne.s32.totalorder %s276, %s277
      %p286 = scmp.eq.s32.totalorder %s35, 0
      %p287 = por %p285, %p286
      %p288 = scmp.ne.s32.totalorder %s276, %s277
      %p289 = scmp.eq.s32.totalorder %s36, 1
      %p290 = por %p288, %p289
      %p292 = scmp.ne.s32.totalorder %s277, %s291
      %p293 = scmp.eq.s32.totalorder %s36, 0
      %p294 = por %p292, %p293
      %s296 = sadd.s32 %s295, 1
      %p299 = scmp.eq.s32.totalorder %s30, 1
      %p300 = scmp.ne.s32.totalorder %s295, %s297
      %p301 = scmp.eq.s32.totalorder %s30, 0
      %p302 = por %p300, %p301
      %p303 = scmp.ne.s32.totalorder %s295, %s297
      %p304 = scmp.eq.s32.totalorder %s35, 1
      %p305 = por %p303, %p304
      %p306 = scmp.ne.s32.totalorder %s297, %s298
      %p307 = scmp.eq.s32.totalorder %s35, 0
      %p308 = por %p306, %p307
      %p309 = scmp.ne.s32.totalorder %s297, %s298
      %p310 = scmp.eq.s32.totalorder %s36, 1
      %p311 = por %p309, %p310
      %p313 = scmp.ne.s32.totalorder %s298, %s312
      %p314 = scmp.eq.s32.totalorder %s36, 0
      %p315 = por %p313, %p314
      %s317 = sadd.s32 %s316, 1
      %p320 = scmp.eq.s32.totalorder %s30, 1
      %p321 = scmp.ne.s32.totalorder %s316, %s318
      %p322 = scmp.eq.s32.totalorder %s30, 0
      %p323 = por %p321, %p322
      %p324 = scmp.ne.s32.totalorder %s316, %s318
      %p325 = scmp.eq.s32.totalorder %s35, 1
      %p326 = por %p324, %p325
      %p327 = scmp.ne.s32.totalorder %s318, %s319
      %p328 = scmp.eq.s32.totalorder %s35, 0
      %p329 = por %p327, %p328
      %p330 = scmp.ne.s32.totalorder %s318, %s319
      %p331 = scmp.eq.s32.totalorder %s36, 1
      %p332 = por %p330, %p331
      %p334 = scmp.ne.s32.totalorder %s319, %s333
      %p335 = scmp.eq.s32.totalorder %s36, 0
      %p336 = por %p334, %p335
      %s337 = ssub.s32 %s30, %s37
      %p338 = scmp.eq.s32.totalorder %s337, 0
      %s340 = sadd.s32 %s339, 1
      %s341 = scalar_select %p338, %s339, %s340
      %p344 = pneg %p338
      %p345 = scmp.eq.s32.totalorder %s30, 1
      %p346 = por %p344, %p345
      %p347 = scmp.ne.s32.totalorder %s339, %s342
      %p348 = scmp.eq.s32.totalorder %s30, 0
      %p349 = por %p347, %p348
      %p350 = scmp.ne.s32.totalorder %s339, %s342
      %p351 = scmp.eq.s32.totalorder %s35, 1
      %p352 = por %p350, %p351
      %p353 = scmp.ne.s32.totalorder %s342, %s343
      %p354 = scmp.eq.s32.totalorder %s35, 0
      %p355 = por %p353, %p354
      %p356 = scmp.ne.s32.totalorder %s342, %s343
      %p357 = scmp.eq.s32.totalorder %s36, 1
      %p358 = por %p356, %p357
      %p360 = scmp.ne.s32.totalorder %s343, %s359
      %p361 = scmp.eq.s32.totalorder %s36, 0
      %p362 = por %p360, %p361
      %p363 = scmp.le.s32.totalorder 1, %s30
      %p364 = scmp.lt.s32.totalorder %s30, 3
      %p365 = pnand %p363, %p364
      %p366 = pneg %p365
      // Predicated region
      $region9: #{tpu_custom_call.1} parent=5 // pred_check
        _
      $region10: #{tpu_custom_call.1} parent=5 // pred_check_branch
        %368 = sbr.rel (%p365) target = $region12
      $region11: #{tpu_custom_call.1} parent=5 // pred_region
        %s369 = ssub.s32 %s30, 1
        // Predicated region
        $region13: #{tpu_custom_call.1} parent=11 // pred_check
          %p370 = pneg %p77
        $region14: #{tpu_custom_call.1} parent=11 // pred_check_branch
          %372 = sbr.rel (%p370) target = $region16
        $region15: #{tpu_custom_call.1} parent=11 // pred_region
          %374 = vsyncadd [#allocation6], 0
          %s375 = sshll.u32 %s1, 4
          %s376 = int_to_ptr.hbm [resolvable:$true] %s375
          %s377 = sshll.u32 [#allocation5], 4
          %s378 = int_to_ptr.vmem [resolvable:$true] %s377
          %383 = dma.hbm_to_vmem [thread:$0]  %s376, 2048, %s378, [#allocation6], 128, 128, 8
        $region16: #{tpu_custom_call.1} parent=11 // pred_fallthru
          _
        // Predicated region
        $region17: #{tpu_custom_call.1} parent=11 // pred_check
          %p384 = pneg %p98
        $region18: #{tpu_custom_call.1} parent=11 // pred_check_branch
          %386 = sbr.rel (%p384) target = $region20
        $region19: #{tpu_custom_call.1} parent=11 // pred_region
          %388 = vsyncadd [#allocation6], 0
          %s389 = sshll.u32 %s2, 4
          %s390 = int_to_ptr.hbm [resolvable:$true] %s389
          %s391 = sshll.u32 [#allocation7], 4
          %s392 = int_to_ptr.vmem [resolvable:$true] %s391
          %397 = dma.hbm_to_vmem [thread:$0]  %s390, 3072, %s392, [#allocation6], 192, 192, 12
        $region20: #{tpu_custom_call.1} parent=11 // pred_fallthru
          _
        // Predicated region
        $region21: #{tpu_custom_call.1} parent=11 // pred_check
          %p398 = pneg %p119
        $region22: #{tpu_custom_call.1} parent=11 // pred_check_branch
          %400 = sbr.rel (%p398) target = $region24
        $region23: #{tpu_custom_call.1} parent=11 // pred_region
          %402 = vsyncadd [#allocation9], 0
          %s404 = sshll.u32 %s3, 4
          %s405 = int_to_ptr.hbm [resolvable:$true] %s404
          %s406 = sshll.u32 [#allocation8], 4
          %s407 = int_to_ptr.vmem [resolvable:$true] %s406
          %409 = dma.hbm_to_vmem [thread:$0]  %s405, 48, %s407, [#allocation9]
        $region24: #{tpu_custom_call.1} parent=11 // pred_fallthru
          _
        // Predicated region
        $region25: #{tpu_custom_call.1} parent=11 // pred_check
          %p410 = pneg %p140
        $region26: #{tpu_custom_call.1} parent=11 // pred_check_branch
          %412 = sbr.rel (%p410) target = $region28
        $region27: #{tpu_custom_call.1} parent=11 // pred_region
          %414 = vsyncadd [#allocation9], 0
          %s415 = sshll.u32 %s4, 4
          %s416 = int_to_ptr.hbm [resolvable:$true] %s415
          %s417 = sshll.u32 [#allocation10], 4
          %s418 = int_to_ptr.vmem [resolvable:$true] %s417
          %423 = dma.hbm_to_vmem [thread:$0]  %s416, 1024, %s418, [#allocation9], 64, 64, 4
        $region28: #{tpu_custom_call.1} parent=11 // pred_fallthru
          _
        // Predicated region
        $region29: #{tpu_custom_call.1} parent=11 // pred_check
          %p424 = pneg %p161
        $region30: #{tpu_custom_call.1} parent=11 // pred_check_branch
          %426 = sbr.rel (%p424) target = $region32
        $region31: #{tpu_custom_call.1} parent=11 // pred_region
          _
        $region32: #{tpu_custom_call.1} parent=11 // pred_fallthru
          _
        // Predicated region
        $region33: #{tpu_custom_call.1} parent=11 // pred_check
          %p427 = pneg %p182
        $region34: #{tpu_custom_call.1} parent=11 // pred_check_branch
          %429 = sbr.rel (%p427) target = $region36
        $region35: #{tpu_custom_call.1} parent=11 // pred_region
          _
        $region36: #{tpu_custom_call.1} parent=11 // pred_fallthru
          _
        // Predicated region
        $region37: #{tpu_custom_call.1} parent=11 // pred_check
          %p430 = pneg %p203
        $region38: #{tpu_custom_call.1} parent=11 // pred_check_branch
          %432 = sbr.rel (%p430) target = $region40
        $region39: #{tpu_custom_call.1} parent=11 // pred_region
          _
        $region40: #{tpu_custom_call.1} parent=11 // pred_fallthru
          _
        // Predicated region
        $region41: #{tpu_custom_call.1} parent=11 // pred_check
          %p433 = pneg %p224
        $region42: #{tpu_custom_call.1} parent=11 // pred_check_branch
          %435 = sbr.rel (%p433) target = $region44
        $region43: #{tpu_custom_call.1} parent=11 // pred_region
          %437 = vsyncadd [#allocation12], 0
          %s439 = sshll.u32 %s8, 4
          %s440 = int_to_ptr.hbm [resolvable:$true] %s439
          %s441 = sshll.u32 [#allocation11], 4
          %s442 = int_to_ptr.vmem [resolvable:$true] %s441
          %444 = dma.hbm_to_vmem [thread:$0]  %s440, 16, %s442, [#allocation12]
        $region44: #{tpu_custom_call.1} parent=11 // pred_fallthru
          _
        // Predicated region
        $region45: #{tpu_custom_call.1} parent=11 // pred_check
          %p445 = pneg %p245
        $region46: #{tpu_custom_call.1} parent=11 // pred_check_branch
          %447 = sbr.rel (%p445) target = $region48
        $region47: #{tpu_custom_call.1} parent=11 // pred_region
          _
        $region48: #{tpu_custom_call.1} parent=11 // pred_fallthru
          _
        // Predicated region
        $region49: #{tpu_custom_call.1} parent=11 // pred_check
          %p448 = pneg %p266
        $region50: #{tpu_custom_call.1} parent=11 // pred_check_branch
          %450 = sbr.rel (%p448) target = $region52
        $region51: #{tpu_custom_call.1} parent=11 // pred_region
          %452 = vsyncadd [#allocation12], 0
          %s453 = sshll.u32 %s10, 4
          %s454 = int_to_ptr.hbm [resolvable:$true] %s453
          %s455 = sshll.u32 [#allocation13], 4
          %s456 = int_to_ptr.vmem [resolvable:$true] %s455
          %461 = dma.hbm_to_vmem [thread:$0]  %s454, 4096, %s456, [#allocation12], 256, 256, 16
        $region52: #{tpu_custom_call.1} parent=11 // pred_fallthru
          _
        // Predicated region
        $region53: #{tpu_custom_call.1} parent=11 // pred_check
          %p462 = pneg %p287
        $region54: #{tpu_custom_call.1} parent=11 // pred_check_branch
          %464 = sbr.rel (%p462) target = $region56
        $region55: #{tpu_custom_call.1} parent=11 // pred_region
          _
        $region56: #{tpu_custom_call.1} parent=11 // pred_fallthru
          _
        // Predicated region
        $region57: #{tpu_custom_call.1} parent=11 // pred_check
          %p465 = pneg %p308
        $region58: #{tpu_custom_call.1} parent=11 // pred_check_branch
          %467 = sbr.rel (%p465) target = $region60
        $region59: #{tpu_custom_call.1} parent=11 // pred_region
          %469 = vsyncadd [#allocation15], 0
          %s470 = sshll.u32 %s12, 4
          %s471 = int_to_ptr.hbm [resolvable:$true] %s470
          %s472 = sshll.u32 [#allocation14], 4
          %s473 = int_to_ptr.vmem [resolvable:$true] %s472
          %478 = dma.hbm_to_vmem [thread:$0]  %s471, 4096, %s473, [#allocation15], 64, 64, 4
        $region60: #{tpu_custom_call.1} parent=11 // pred_fallthru
          _
        // Predicated region
        $region61: #{tpu_custom_call.1} parent=11 // pred_check
          %p479 = pneg %p329
        $region62: #{tpu_custom_call.1} parent=11 // pred_check_branch
          %481 = sbr.rel (%p479) target = $region64
        $region63: #{tpu_custom_call.1} parent=11 // pred_region
          _
        $region64: #{tpu_custom_call.1} parent=11 // pred_fallthru
          _
      $region12: #{tpu_custom_call.1} parent=5 // pred_fallthru
        _
      %p482 = scmp.lt.s32.totalorder %s30, 2
      // Predicated region
      $region65: #{tpu_custom_call.1} parent=5 // pred_check
        %p483 = pneg %p482
      $region66: #{tpu_custom_call.1} parent=5 // pred_check_branch
        %485 = sbr.rel (%p483) target = $region68
      $region67: #{tpu_custom_call.1} parent=5 // pred_region
        // Predicated region
        $region69: #{tpu_custom_call.1} parent=67 // pred_check
          %p486 = pneg %p50
        $region70: #{tpu_custom_call.1} parent=67 // pred_check_branch
          %488 = sbr.rel (%p486) target = $region72
        $region71: #{tpu_custom_call.1} parent=67 // pred_region
          %s489 = sand.u32 %s40, 1
          %s490 = scalar_lea.sflag [#allocation3], %s489
          %s491 = sand.u32 %s40, 1
          %s492 = smul.addr %s491, 128
          %s493 = scalar_lea.vmem [#allocation2], %s492
          %495 = vsyncadd %s490, 0
          %s496 = smul.addr %s30, 16
          %s497 = smul.addr %s496, 8
          %s498 = scalar_lea.hbm %s0, %s497
          %s499 = sshll.u32 %s498, 4
          %s500 = int_to_ptr.hbm [resolvable:$true] %s499
          %s501 = sshll.u32 %s493, 4
          %s502 = int_to_ptr.vmem [resolvable:$true] %s501
          %507 = dma.hbm_to_vmem [thread:$0]  %s500, 2048, %s502, %s490, 128, 128, 8
        $region72: #{tpu_custom_call.1} parent=67 // pred_fallthru
          _
      $region68: #{tpu_custom_call.1} parent=5 // pred_fallthru
        _
      %p508 = scmp.le.s32.totalorder 1, %s30
      %p509 = scmp.lt.s32.totalorder %s30, 3
      %p510 = pnand %p508, %p509
      %p511 = pneg %p510
      // Predicated region
      $region73: #{tpu_custom_call.1} parent=5 // pred_check
        _
      $region74: #{tpu_custom_call.1} parent=5 // pred_check_branch
        %513 = sbr.rel (%p510) target = $region76
      $region75: #{tpu_custom_call.1} parent=5 // pred_region
        %s514 = ssub.s32 %s30, 1
        %s515 = sand.u32 %s43, 1
        %s516 = scalar_lea.sflag [#allocation3], %s515
        %s517 = sand.u32 %s43, 1
        %s518 = smul.addr %s517, 128
        %s519 = scalar_lea.vmem [#allocation2], %s518
        // Predicated region
        $region77: #{tpu_custom_call.1} parent=75 // pred_check
          %p520 = pneg %p56
        $region78: #{tpu_custom_call.1} parent=75 // pred_check_branch
          %522 = sbr.rel (%p520) target = $region80
        $region79: #{tpu_custom_call.1} parent=75 // pred_region
          %524 = dma.done %s516, 2048
        $region80: #{tpu_custom_call.1} parent=75 // pred_fallthru
          _
        // Predicated region
        $region81: #{tpu_custom_call.1} parent=75 // pred_check
          %p525 = pneg %p77
        $region82: #{tpu_custom_call.1} parent=75 // pred_check_branch
          %527 = sbr.rel (%p525) target = $region84
        $region83: #{tpu_custom_call.1} parent=75 // pred_region
          %529 = dma.done [#allocation6], 2048
        $region84: #{tpu_custom_call.1} parent=75 // pred_fallthru
          _
        // Predicated region
        $region85: #{tpu_custom_call.1} parent=75 // pred_check
          %p530 = pneg %p98
        $region86: #{tpu_custom_call.1} parent=75 // pred_check_branch
          %532 = sbr.rel (%p530) target = $region88
        $region87: #{tpu_custom_call.1} parent=75 // pred_region
          %534 = dma.done [#allocation6], 3072
        $region88: #{tpu_custom_call.1} parent=75 // pred_fallthru
          _
        // Predicated region
        $region89: #{tpu_custom_call.1} parent=75 // pred_check
          %p535 = pneg %p119
        $region90: #{tpu_custom_call.1} parent=75 // pred_check_branch
          %537 = sbr.rel (%p535) target = $region92
        $region91: #{tpu_custom_call.1} parent=75 // pred_region
          %539 = dma.done [#allocation9], 48
        $region92: #{tpu_custom_call.1} parent=75 // pred_fallthru
          _
        // Predicated region
        $region93: #{tpu_custom_call.1} parent=75 // pred_check
          %p540 = pneg %p140
        $region94: #{tpu_custom_call.1} parent=75 // pred_check_branch
          %542 = sbr.rel (%p540) target = $region96
        $region95: #{tpu_custom_call.1} parent=75 // pred_region
          %544 = dma.done [#allocation9], 1024
        $region96: #{tpu_custom_call.1} parent=75 // pred_fallthru
          _
        // Predicated region
        $region97: #{tpu_custom_call.1} parent=75 // pred_check
          %p545 = pneg %p224
        $region98: #{tpu_custom_call.1} parent=75 // pred_check_branch
          %547 = sbr.rel (%p545) target = $region100
        $region99: #{tpu_custom_call.1} parent=75 // pred_region
          %549 = dma.done [#allocation12], 16
        $region100: #{tpu_custom_call.1} parent=75 // pred_fallthru
          _
        // Predicated region
        $region101: #{tpu_custom_call.1} parent=75 // pred_check
          %p550 = pneg %p266
        $region102: #{tpu_custom_call.1} parent=75 // pred_check_branch
          %552 = sbr.rel (%p550) target = $region104
        $region103: #{tpu_custom_call.1} parent=75 // pred_region
          %554 = dma.done [#allocation12], 4096
        $region104: #{tpu_custom_call.1} parent=75 // pred_fallthru
          _
        // Predicated region
        $region105: #{tpu_custom_call.1} parent=75 // pred_check
          %p555 = pneg %p308
        $region106: #{tpu_custom_call.1} parent=75 // pred_check_branch
          %557 = sbr.rel (%p555) target = $region108
        $region107: #{tpu_custom_call.1} parent=75 // pred_region
          %559 = dma.done [#allocation15], 4096
        $region108: #{tpu_custom_call.1} parent=75 // pred_fallthru
          _
        %s560 = sand.u32 %s43, 1
        %s561 = scalar_lea.sflag [#allocation3], %s560
        %s562 = sand.u32 %s43, 1
        %s563 = smul.addr %s562, 128
        %s564 = scalar_lea.vmem [#allocation2], %s563
        %p565 = pneg %p56
        %p566 = pneg %p53
        %p567 = pneg %p77
        %p568 = pneg %p74
        %p569 = pneg %p98
        %p570 = pneg %p95
        %p571 = pneg %p119
        %p572 = pneg %p116
        %p573 = pneg %p140
        %p574 = pneg %p137
        %p575 = pneg %p161
        %p576 = pneg %p158
        %p577 = pneg %p182
        %p578 = pneg %p179
        %p579 = pneg %p203
        %p580 = pneg %p200
        %p581 = pneg %p224
        %p582 = pneg %p221
        %p583 = pneg %p245
        %p584 = pneg %p242
        %p585 = pneg %p266
        %p586 = pneg %p263
        %p587 = pneg %p287
        %p588 = pneg %p284
        %p589 = pneg %p308
        %p590 = pneg %p305
        %p591 = pneg %p329
        %p592 = pneg %p326
        %p593 = pneg %p355
        %p594 = pneg %p352
        %s595 = sand.u32 %s342, 1
        %s596 = scalar_lea.sflag [#allocation4], %s595
        %s597 = sand.u32 %s342, 1
        %s598 = smul.addr %s597, 128
        %s599 = scalar_lea.vmem [#allocation16], %s598
        %v601 = vld [vmem:[%s519] sm:$0xff]
        %v602 = vld [vmem:[%s519 + $0x8] sm:$0xff]
        %v603 = vld [vmem:[%s519 + $0x10] sm:$0xff]
        %v604 = vld [vmem:[%s519 + $0x18] sm:$0xff]
        %v605 = vld [vmem:[%s519 + $0x20] sm:$0xff]
        %v606 = vld [vmem:[%s519 + $0x28] sm:$0xff]
        %v607 = vld [vmem:[%s519 + $0x30] sm:$0xff]
        %v608 = vld [vmem:[%s519 + $0x38] sm:$0xff]
        %v609 = vld [vmem:[%s519 + $0x40] sm:$0xff]
        %v610 = vld [vmem:[%s519 + $0x48] sm:$0xff]
        %v611 = vld [vmem:[%s519 + $0x50] sm:$0xff]
        %v612 = vld [vmem:[%s519 + $0x58] sm:$0xff]
        %v613 = vld [vmem:[%s519 + $0x60] sm:$0xff]
        %v614 = vld [vmem:[%s519 + $0x68] sm:$0xff]
        %v615 = vld [vmem:[%s519 + $0x70] sm:$0xff]
        %v616 = vld [vmem:[%s519 + $0x78] sm:$0xff]
        %v617 = vld [vmem:[%s6] sm:$0x1]
        %v618 = vld [vmem:[%s7] sm:$0x1]
        %619 = vadd.xlane.f32.xlu0 %v601
        %v620 = vpop.xlane.xlu0 %619
        %621 = vadd.xlane.f32.xlu0 %v602
        %v622 = vpop.xlane.xlu0 %621
        %623 = vadd.xlane.f32.xlu0 %v603
        %v624 = vpop.xlane.xlu0 %623
        %625 = vadd.xlane.f32.xlu0 %v604
        %v626 = vpop.xlane.xlu0 %625
        %627 = vadd.xlane.f32.xlu0 %v605
        %v628 = vpop.xlane.xlu0 %627
        %629 = vadd.xlane.f32.xlu0 %v606
        %v630 = vpop.xlane.xlu0 %629
        %631 = vadd.xlane.f32.xlu0 %v607
        %v632 = vpop.xlane.xlu0 %631
        %633 = vadd.xlane.f32.xlu0 %v608
        %v634 = vpop.xlane.xlu0 %633
        %635 = vadd.xlane.f32.xlu0 %v609
        %v636 = vpop.xlane.xlu0 %635
        %637 = vadd.xlane.f32.xlu0 %v610
        %v638 = vpop.xlane.xlu0 %637
        %639 = vadd.xlane.f32.xlu0 %v611
        %v640 = vpop.xlane.xlu0 %639
        %641 = vadd.xlane.f32.xlu0 %v612
        %v642 = vpop.xlane.xlu0 %641
        %643 = vadd.xlane.f32.xlu0 %v613
        %v644 = vpop.xlane.xlu0 %643
        %645 = vadd.xlane.f32.xlu0 %v614
        %v646 = vpop.xlane.xlu0 %645
        %647 = vadd.xlane.f32.xlu0 %v615
        %v648 = vpop.xlane.xlu0 %647
        %649 = vadd.xlane.f32.xlu0 %v616
        %v650 = vpop.xlane.xlu0 %649
        %v651 = vrcp.pop 128.0
        %v652 = vmul.f32 128.0, %v651
        %v653 = vsub.f32 1.0, %v652
        %v654 = vmul.f32 %v651, %v653
        %v655 = vadd.f32 %v651, %v654
        %vm656 = vweird.f32 %v651
        %v657 = vsel %vm656, %v651, %v655
        %v658 = vmul.f32 %v620, %v657
        %v659 = vmul.f32 %v622, %v657
        %v660 = vmul.f32 %v624, %v657
        %v661 = vmul.f32 %v626, %v657
        %v662 = vmul.f32 %v628, %v657
        %v663 = vmul.f32 %v630, %v657
        %v664 = vmul.f32 %v632, %v657
        %v665 = vmul.f32 %v634, %v657
        %v666 = vmul.f32 %v636, %v657
        %v667 = vmul.f32 %v638, %v657
        %v668 = vmul.f32 %v640, %v657
        %v669 = vmul.f32 %v642, %v657
        %v670 = vmul.f32 %v644, %v657
        %v671 = vmul.f32 %v646, %v657
        %v672 = vmul.f32 %v648, %v657
        %v673 = vmul.f32 %v650, %v657
        %v674 = vsub.f32 %v601, %v658
        %v675 = vsub.f32 %v602, %v659
        %v676 = vsub.f32 %v603, %v660
        %v677 = vsub.f32 %v604, %v661
        %v678 = vsub.f32 %v605, %v662
        %v679 = vsub.f32 %v606, %v663
        %v680 = vsub.f32 %v607, %v664
        %v681 = vsub.f32 %v608, %v665
        %v682 = vsub.f32 %v609, %v666
        %v683 = vsub.f32 %v610, %v667
        %v684 = vsub.f32 %v611, %v668
        %v685 = vsub.f32 %v612, %v669
        %v686 = vsub.f32 %v613, %v670
        %v687 = vsub.f32 %v614, %v671
        %v688 = vsub.f32 %v615, %v672
        %v689 = vsub.f32 %v616, %v673
        %v690 = vmul.f32 %v674, %v674
        %v691 = vmul.f32 %v675, %v675
        %v692 = vmul.f32 %v676, %v676
        %v693 = vmul.f32 %v677, %v677
        %v694 = vmul.f32 %v678, %v678
        %v695 = vmul.f32 %v679, %v679
        %v696 = vmul.f32 %v680, %v680
        %v697 = vmul.f32 %v681, %v681
        %v698 = vmul.f32 %v682, %v682
        %v699 = vmul.f32 %v683, %v683
        %v700 = vmul.f32 %v684, %v684
        %v701 = vmul.f32 %v685, %v685
        %v702 = vmul.f32 %v686, %v686
        %v703 = vmul.f32 %v687, %v687
        %v704 = vmul.f32 %v688, %v688
        %v705 = vmul.f32 %v689, %v689
        %706 = vadd.xlane.f32.xlu0 %v690
        %v707 = vpop.xlane.xlu0 %706
        %708 = vadd.xlane.f32.xlu0 %v691
        %v709 = vpop.xlane.xlu0 %708
        %710 = vadd.xlane.f32.xlu0 %v692
        %v711 = vpop.xlane.xlu0 %710
        %712 = vadd.xlane.f32.xlu0 %v693
        %v713 = vpop.xlane.xlu0 %712
        %714 = vadd.xlane.f32.xlu0 %v694
        %v715 = vpop.xlane.xlu0 %714
        %716 = vadd.xlane.f32.xlu0 %v695
        %v717 = vpop.xlane.xlu0 %716
        %718 = vadd.xlane.f32.xlu0 %v696
        %v719 = vpop.xlane.xlu0 %718
        %720 = vadd.xlane.f32.xlu0 %v697
        %v721 = vpop.xlane.xlu0 %720
        %722 = vadd.xlane.f32.xlu0 %v698
        %v723 = vpop.xlane.xlu0 %722
        %724 = vadd.xlane.f32.xlu0 %v699
        %v725 = vpop.xlane.xlu0 %724
        %726 = vadd.xlane.f32.xlu0 %v700
        %v727 = vpop.xlane.xlu0 %726
        %728 = vadd.xlane.f32.xlu0 %v701
        %v729 = vpop.xlane.xlu0 %728
        %730 = vadd.xlane.f32.xlu0 %v702
        %v731 = vpop.xlane.xlu0 %730
        %732 = vadd.xlane.f32.xlu0 %v703
        %v733 = vpop.xlane.xlu0 %732
        %734 = vadd.xlane.f32.xlu0 %v704
        %v735 = vpop.xlane.xlu0 %734
        %736 = vadd.xlane.f32.xlu0 %v705
        %v737 = vpop.xlane.xlu0 %736
        %v738 = vmul.f32 %v707, %v657
        %v739 = vmul.f32 %v709, %v657
        %v740 = vmul.f32 %v711, %v657
        %v741 = vmul.f32 %v713, %v657
        %v742 = vmul.f32 %v715, %v657
        %v743 = vmul.f32 %v717, %v657
        %v744 = vmul.f32 %v719, %v657
        %v745 = vmul.f32 %v721, %v657
        %v746 = vmul.f32 %v723, %v657
        %v747 = vmul.f32 %v725, %v657
        %v748 = vmul.f32 %v727, %v657
        %v749 = vmul.f32 %v729, %v657
        %v750 = vmul.f32 %v731, %v657
        %v751 = vmul.f32 %v733, %v657
        %v752 = vmul.f32 %v735, %v657
        %v753 = vmul.f32 %v737, %v657
        %v754 = vadd.f32 %v738, 1e-05
        %v755 = vadd.f32 %v739, 1e-05
        %v756 = vadd.f32 %v740, 1e-05
        %v757 = vadd.f32 %v741, 1e-05
        %v758 = vadd.f32 %v742, 1e-05
        %v759 = vadd.f32 %v743, 1e-05
        %v760 = vadd.f32 %v744, 1e-05
        %v761 = vadd.f32 %v745, 1e-05
        %v762 = vadd.f32 %v746, 1e-05
        %v763 = vadd.f32 %v747, 1e-05
        %v764 = vadd.f32 %v748, 1e-05
        %v765 = vadd.f32 %v749, 1e-05
        %v766 = vadd.f32 %v750, 1e-05
        %v767 = vadd.f32 %v751, 1e-05
        %v768 = vadd.f32 %v752, 1e-05
        %v769 = vadd.f32 %v753, 1e-05
        %v770 = vrsqrt.pop %v754
        %v771 = vmul.f32 %v770, %v754
        %v772 = vmul.f32 %v771, %v770
        %v773 = vmul.f32 0.5, %v772
        %v774 = vsub.f32 1.5, %v773
        %v775 = vmul.f32 %v770, %v774
        %vm776 = vweird.f32 %v754
        %vm777 = vweird.f32 %v770
        %vm778 = vmor %vm776, %vm777
        %v779 = vsel %vm778, %v770, %v775
        %v780 = vrsqrt.pop %v755
        %v781 = vmul.f32 %v780, %v755
        %v782 = vmul.f32 %v781, %v780
        %v783 = vmul.f32 0.5, %v782
        %v784 = vsub.f32 1.5, %v783
        %v785 = vmul.f32 %v780, %v784
        %vm786 = vweird.f32 %v755
        %vm787 = vweird.f32 %v780
        %vm788 = vmor %vm786, %vm787
        %v789 = vsel %vm788, %v780, %v785
        %v790 = vrsqrt.pop %v756
        %v791 = vmul.f32 %v790, %v756
        %v792 = vmul.f32 %v791, %v790
        %v793 = vmul.f32 0.5, %v792
        %v794 = vsub.f32 1.5, %v793
        %v795 = vmul.f32 %v790, %v794
        %vm796 = vweird.f32 %v756
        %vm797 = vweird.f32 %v790
        %vm798 = vmor %vm796, %vm797
        %v799 = vsel %vm798, %v790, %v795
        %v800 = vrsqrt.pop %v757
        %v801 = vmul.f32 %v800, %v757
        %v802 = vmul.f32 %v801, %v800
        %v803 = vmul.f32 0.5, %v802
        %v804 = vsub.f32 1.5, %v803
        %v805 = vmul.f32 %v800, %v804
        %vm806 = vweird.f32 %v757
        %vm807 = vweird.f32 %v800
        %vm808 = vmor %vm806, %vm807
        %v809 = vsel %vm808, %v800, %v805
        %v810 = vrsqrt.pop %v758
        %v811 = vmul.f32 %v810, %v758
        %v812 = vmul.f32 %v811, %v810
        %v813 = vmul.f32 0.5, %v812
        %v814 = vsub.f32 1.5, %v813
        %v815 = vmul.f32 %v810, %v814
        %vm816 = vweird.f32 %v758
        %vm817 = vweird.f32 %v810
        %vm818 = vmor %vm816, %vm817
        %v819 = vsel %vm818, %v810, %v815
        %v820 = vrsqrt.pop %v759
        %v821 = vmul.f32 %v820, %v759
        %v822 = vmul.f32 %v821, %v820
        %v823 = vmul.f32 0.5, %v822
        %v824 = vsub.f32 1.5, %v823
        %v825 = vmul.f32 %v820, %v824
        %vm826 = vweird.f32 %v759
        %vm827 = vweird.f32 %v820
        %vm828 = vmor %vm826, %vm827
        %v829 = vsel %vm828, %v820, %v825
        %v830 = vrsqrt.pop %v760
        %v831 = vmul.f32 %v830, %v760
        %v832 = vmul.f32 %v831, %v830
        %v833 = vmul.f32 0.5, %v832
        %v834 = vsub.f32 1.5, %v833
        %v835 = vmul.f32 %v830, %v834
        %vm836 = vweird.f32 %v760
        %vm837 = vweird.f32 %v830
        %vm838 = vmor %vm836, %vm837
        %v839 = vsel %vm838, %v830, %v835
        %v840 = vrsqrt.pop %v761
        %v841 = vmul.f32 %v840, %v761
        %v842 = vmul.f32 %v841, %v840
        %v843 = vmul.f32 0.5, %v842
        %v844 = vsub.f32 1.5, %v843
        %v845 = vmul.f32 %v840, %v844
        %vm846 = vweird.f32 %v761
        %vm847 = vweird.f32 %v840
        %vm848 = vmor %vm846, %vm847
        %v849 = vsel %vm848, %v840, %v845
        %v850 = vrsqrt.pop %v762
        %v851 = vmul.f32 %v850, %v762
        %v852 = vmul.f32 %v851, %v850
        %v853 = vmul.f32 0.5, %v852
        %v854 = vsub.f32 1.5, %v853
        %v855 = vmul.f32 %v850, %v854
        %vm856 = vweird.f32 %v762
        %vm857 = vweird.f32 %v850
        %vm858 = vmor %vm856, %vm857
        %v859 = vsel %vm858, %v850, %v855
        %v860 = vrsqrt.pop %v763
        %v861 = vmul.f32 %v860, %v763
        %v862 = vmul.f32 %v861, %v860
        %v863 = vmul.f32 0.5, %v862
        %v864 = vsub.f32 1.5, %v863
        %v865 = vmul.f32 %v860, %v864
        %vm866 = vweird.f32 %v763
        %vm867 = vweird.f32 %v860
        %vm868 = vmor %vm866, %vm867
        %v869 = vsel %vm868, %v860, %v865
        %v870 = vrsqrt.pop %v764
        %v871 = vmul.f32 %v870, %v764
        %v872 = vmul.f32 %v871, %v870
        %v873 = vmul.f32 0.5, %v872
        %v874 = vsub.f32 1.5, %v873
        %v875 = vmul.f32 %v870, %v874
        %vm876 = vweird.f32 %v764
        %vm877 = vweird.f32 %v870
        %vm878 = vmor %vm876, %vm877
        %v879 = vsel %vm878, %v870, %v875
        %v880 = vrsqrt.pop %v765
        %v881 = vmul.f32 %v880, %v765
        %v882 = vmul.f32 %v881, %v880
        %v883 = vmul.f32 0.5, %v882
        %v884 = vsub.f32 1.5, %v883
        %v885 = vmul.f32 %v880, %v884
        %vm886 = vweird.f32 %v765
        %vm887 = vweird.f32 %v880
        %vm888 = vmor %vm886, %vm887
        %v889 = vsel %vm888, %v880, %v885
        %v890 = vrsqrt.pop %v766
        %v891 = vmul.f32 %v890, %v766
        %v892 = vmul.f32 %v891, %v890
        %v893 = vmul.f32 0.5, %v892
        %v894 = vsub.f32 1.5, %v893
        %v895 = vmul.f32 %v890, %v894
        %vm896 = vweird.f32 %v766
        %vm897 = vweird.f32 %v890
        %vm898 = vmor %vm896, %vm897
        %v899 = vsel %vm898, %v890, %v895
        %v900 = vrsqrt.pop %v767
        %v901 = vmul.f32 %v900, %v767
        %v902 = vmul.f32 %v901, %v900
        %v903 = vmul.f32 0.5, %v902
        %v904 = vsub.f32 1.5, %v903
        %v905 = vmul.f32 %v900, %v904
        %vm906 = vweird.f32 %v767
        %vm907 = vweird.f32 %v900
        %vm908 = vmor %vm906, %vm907
        %v909 = vsel %vm908, %v900, %v905
        %v910 = vrsqrt.pop %v768
        %v911 = vmul.f32 %v910, %v768
        %v912 = vmul.f32 %v911, %v910
        %v913 = vmul.f32 0.5, %v912
        %v914 = vsub.f32 1.5, %v913
        %v915 = vmul.f32 %v910, %v914
        %vm916 = vweird.f32 %v768
        %vm917 = vweird.f32 %v910
        %vm918 = vmor %vm916, %vm917
        %v919 = vsel %vm918, %v910, %v915
        %v920 = vrsqrt.pop %v769
        %v921 = vmul.f32 %v920, %v769
        %v922 = vmul.f32 %v921, %v920
        %v923 = vmul.f32 0.5, %v922
        %v924 = vsub.f32 1.5, %v923
        %v925 = vmul.f32 %v920, %v924
        %vm926 = vweird.f32 %v769
        %vm927 = vweird.f32 %v920
        %vm928 = vmor %vm926, %vm927
        %v929 = vsel %vm928, %v920, %v925
        %v930 = vmul.f32 %v674, %v779
        %v931 = vmul.f32 %v675, %v789
        %v932 = vmul.f32 %v676, %v799
        %v933 = vmul.f32 %v677, %v809
        %v934 = vmul.f32 %v678, %v819
        %v935 = vmul.f32 %v679, %v829
        %v936 = vmul.f32 %v680, %v839
        %v937 = vmul.f32 %v681, %v849
        %v938 = vmul.f32 %v682, %v859
        %v939 = vmul.f32 %v683, %v869
        %v940 = vmul.f32 %v684, %v879
        %v941 = vmul.f32 %v685, %v889
        %v942 = vmul.f32 %v686, %v899
        %v943 = vmul.f32 %v687, %v909
        %v944 = vmul.f32 %v688, %v919
        %v945 = vmul.f32 %v689, %v929
        %v947 = vperm.slane %v617, 0
        %v949 = vmul.f32 %v930, %v947
        %v950 = vmul.f32 %v931, %v947
        %v951 = vmul.f32 %v932, %v947
        %v952 = vmul.f32 %v933, %v947
        %v953 = vmul.f32 %v934, %v947
        %v954 = vmul.f32 %v935, %v947
        %v955 = vmul.f32 %v936, %v947
        %v956 = vmul.f32 %v937, %v947
        %v957 = vmul.f32 %v938, %v947
        %v958 = vmul.f32 %v939, %v947
        %v959 = vmul.f32 %v940, %v947
        %v960 = vmul.f32 %v941, %v947
        %v961 = vmul.f32 %v942, %v947
        %v962 = vmul.f32 %v943, %v947
        %v963 = vmul.f32 %v944, %v947
        %v964 = vmul.f32 %v945, %v947
        %v966 = vperm.slane %v618, 0
        %v968 = vadd.f32 %v949, %v966
        %v969 = vadd.f32 %v950, %v966
        %v970 = vadd.f32 %v951, %v966
        %v971 = vadd.f32 %v952, %v966
        %v972 = vadd.f32 %v953, %v966
        %v973 = vadd.f32 %v954, %v966
        %v974 = vadd.f32 %v955, %v966
        %v975 = vadd.f32 %v956, %v966
        %v976 = vadd.f32 %v957, %v966
        %v977 = vadd.f32 %v958, %v966
        %v978 = vadd.f32 %v959, %v966
        %v979 = vadd.f32 %v960, %v966
        %v980 = vadd.f32 %v961, %v966
        %v981 = vadd.f32 %v962, %v966
        %v982 = vadd.f32 %v963, %v966
        %v983 = vadd.f32 %v964, %v966
        %v984 = vpack.c.bf16 %v969, %v968
        %v985 = vpack.c.bf16 %v971, %v970
        %v986 = vpack.c.bf16 %v973, %v972
        %v987 = vpack.c.bf16 %v975, %v974
        %v988 = vpack.c.bf16 %v977, %v976
        %v989 = vpack.c.bf16 %v979, %v978
        %v990 = vpack.c.bf16 %v981, %v980
        %v991 = vpack.c.bf16 %v983, %v982
        %v992 = vld [vmem:[#allocation7] sm:$0xff]
        %v993 = vld [vmem:[#allocation7 + $0x8] sm:$0xf]
        %v994 = vld [vmem:[#allocation7 + $0xc] sm:$0xff]
        %v995 = vld [vmem:[#allocation7 + $0x14] sm:$0xf]
        %v996 = vld [vmem:[#allocation7 + $0x18] sm:$0xff]
        %v997 = vld [vmem:[#allocation7 + $0x20] sm:$0xf]
        %v998 = vld [vmem:[#allocation7 + $0x24] sm:$0xff]
        %v999 = vld [vmem:[#allocation7 + $0x2c] sm:$0xf]
        %v1000 = vld [vmem:[#allocation7 + $0x30] sm:$0xff]
        %v1001 = vld [vmem:[#allocation7 + $0x38] sm:$0xf]
        %v1002 = vld [vmem:[#allocation7 + $0x3c] sm:$0xff]
        %v1003 = vld [vmem:[#allocation7 + $0x44] sm:$0xf]
        %v1004 = vld [vmem:[#allocation7 + $0x48] sm:$0xff]
        %v1005 = vld [vmem:[#allocation7 + $0x50] sm:$0xf]
        %v1006 = vld [vmem:[#allocation7 + $0x54] sm:$0xff]
        %v1007 = vld [vmem:[#allocation7 + $0x5c] sm:$0xf]
        %v1008 = vld [vmem:[#allocation7 + $0x60] sm:$0xff]
        %v1009 = vld [vmem:[#allocation7 + $0x68] sm:$0xf]
        %v1010 = vld [vmem:[#allocation7 + $0x6c] sm:$0xff]
        %v1011 = vld [vmem:[#allocation7 + $0x74] sm:$0xf]
        %v1012 = vld [vmem:[#allocation7 + $0x78] sm:$0xff]
        %v1013 = vld [vmem:[#allocation7 + $0x80] sm:$0xf]
        %v1014 = vld [vmem:[#allocation7 + $0x84] sm:$0xff]
        %v1015 = vld [vmem:[#allocation7 + $0x8c] sm:$0xf]
        %v1016 = vld [vmem:[#allocation7 + $0x90] sm:$0xff]
        %v1017 = vld [vmem:[#allocation7 + $0x98] sm:$0xf]
        %v1018 = vld [vmem:[#allocation7 + $0x9c] sm:$0xff]
        %v1019 = vld [vmem:[#allocation7 + $0xa4] sm:$0xf]
        %v1020 = vld [vmem:[#allocation7 + $0xa8] sm:$0xff]
        %v1021 = vld [vmem:[#allocation7 + $0xb0] sm:$0xf]
        %v1022 = vld [vmem:[#allocation7 + $0xb4] sm:$0xff]
        %v1023 = vld [vmem:[#allocation7 + $0xbc] sm:$0xf]
        %v1024 = vld [vmem:[#allocation8] sm:$0x7]
        %v1026 = vperm.slane %v1024, 0
        %v1027 = vperm.slane %v1024, 1
        %v1028 = vperm.slane %v1024, 2
        %v1064 = vunpack.c.l.b16 %v992
        %v1065 = vunpack.c.h.b16 %v992
        %v1066 = vunpack.c.l.b16 %v993
        %v1067 = vunpack.c.l.b16 %v994
        %v1068 = vunpack.c.h.b16 %v994
        %v1069 = vunpack.c.l.b16 %v995
        %v1070 = vunpack.c.l.b16 %v996
        %v1071 = vunpack.c.h.b16 %v996
        %v1072 = vunpack.c.l.b16 %v997
        %v1073 = vunpack.c.l.b16 %v998
        %v1074 = vunpack.c.h.b16 %v998
        %v1075 = vunpack.c.l.b16 %v999
        %v1076 = vunpack.c.l.b16 %v1000
        %v1077 = vunpack.c.h.b16 %v1000
        %v1078 = vunpack.c.l.b16 %v1001
        %v1079 = vunpack.c.l.b16 %v1002
        %v1080 = vunpack.c.h.b16 %v1002
        %v1081 = vunpack.c.l.b16 %v1003
        %v1082 = vunpack.c.l.b16 %v1004
        %v1083 = vunpack.c.h.b16 %v1004
        %v1084 = vunpack.c.l.b16 %v1005
        %v1085 = vunpack.c.l.b16 %v1006
        %v1086 = vunpack.c.h.b16 %v1006
        %v1087 = vunpack.c.l.b16 %v1007
        %v1088 = vunpack.c.l.b16 %v1008
        %v1089 = vunpack.c.h.b16 %v1008
        %v1090 = vunpack.c.l.b16 %v1009
        %v1091 = vunpack.c.l.b16 %v1010
        %v1092 = vunpack.c.h.b16 %v1010
        %v1093 = vunpack.c.l.b16 %v1011
        %v1094 = vunpack.c.l.b16 %v1012
        %v1095 = vunpack.c.h.b16 %v1012
        %v1096 = vunpack.c.l.b16 %v1013
        %v1097 = vunpack.c.l.b16 %v1014
        %v1098 = vunpack.c.h.b16 %v1014
        %v1099 = vunpack.c.l.b16 %v1015
        %v1100 = vunpack.c.l.b16 %v1016
        %v1101 = vunpack.c.h.b16 %v1016
        %v1102 = vunpack.c.l.b16 %v1017
        %v1103 = vunpack.c.l.b16 %v1018
        %v1104 = vunpack.c.h.b16 %v1018
        %v1105 = vunpack.c.l.b16 %v1019
        %v1106 = vunpack.c.l.b16 %v1020
        %v1107 = vunpack.c.h.b16 %v1020
        %v1108 = vunpack.c.l.b16 %v1021
        %v1109 = vunpack.c.l.b16 %v1022
        %v1110 = vunpack.c.h.b16 %v1022
        %v1111 = vunpack.c.l.b16 %v1023
        %v1112 = vpack.c.b16 %v1067, %v1064
        %v1113 = vpack.c.b16 %v1068, %v1065
        %v1114 = vpack.c.b16 %v1069, %v1066
        %v1115 = vpack.c.b16 %v1073, %v1070
        %v1116 = vpack.c.b16 %v1074, %v1071
        %v1117 = vpack.c.b16 %v1075, %v1072
        %v1118 = vpack.c.b16 %v1079, %v1076
        %v1119 = vpack.c.b16 %v1080, %v1077
        %v1120 = vpack.c.b16 %v1081, %v1078
        %v1121 = vpack.c.b16 %v1085, %v1082
        %v1122 = vpack.c.b16 %v1086, %v1083
        %v1123 = vpack.c.b16 %v1087, %v1084
        %v1124 = vpack.c.b16 %v1091, %v1088
        %v1125 = vpack.c.b16 %v1092, %v1089
        %v1126 = vpack.c.b16 %v1093, %v1090
        %v1127 = vpack.c.b16 %v1097, %v1094
        %v1128 = vpack.c.b16 %v1098, %v1095
        %v1129 = vpack.c.b16 %v1099, %v1096
        %v1130 = vpack.c.b16 %v1103, %v1100
        %v1131 = vpack.c.b16 %v1104, %v1101
        %v1132 = vpack.c.b16 %v1105, %v1102
        %v1133 = vpack.c.b16 %v1109, %v1106
        %v1134 = vpack.c.b16 %v1110, %v1107
        %v1135 = vpack.c.b16 %v1111, %v1108
        %1160 = vmatpush.bf16.msra.mxu0 %v1133
        %1161 = vmatpush.bf16.msra.mxu0 %v1130
        %1162 = vmatpush.bf16.msra.mxu0 %v1127
        %1163 = vmatpush.bf16.msra.mxu0 %v1124
        %1164 = vmatpush.bf16.msra.mxu0 %v1121
        %1165 = vmatpush.bf16.msra.mxu0 %v1118
        %1166 = vmatpush.bf16.msra.mxu0 %v1115
        %1167 = vmatpush.bf16.msra.mxu0 %v1112
        %1168 = vmatmul.bf16.gmra.mxu0 %v984
        %v1169 = vpop.f32.mrf.mxu0
        %v1170 = vadd.f32 %v1026, %v1169
        %v1171 = vpop.f32.mrf.mxu0
        %v1172 = vadd.f32 %v1026, %v1171
        %1173 = vmatmul.bf16.gmra.mxu0 %v985
        %v1174 = vpop.f32.mrf.mxu0
        %v1175 = vadd.f32 %v1026, %v1174
        %v1176 = vpop.f32.mrf.mxu0
        %v1177 = vadd.f32 %v1026, %v1176
        %1178 = vmatmul.bf16.gmra.mxu0 %v986
        %v1179 = vpop.f32.mrf.mxu0
        %v1180 = vadd.f32 %v1026, %v1179
        %v1181 = vpop.f32.mrf.mxu0
        %v1182 = vadd.f32 %v1026, %v1181
        %1183 = vmatmul.bf16.gmra.mxu0 %v987
        %v1184 = vpop.f32.mrf.mxu0
        %v1185 = vadd.f32 %v1026, %v1184
        %v1186 = vpop.f32.mrf.mxu0
        %v1187 = vadd.f32 %v1026, %v1186
        %1188 = vmatmul.bf16.gmra.mxu0 %v988
        %v1189 = vpop.f32.mrf.mxu0
        %v1190 = vadd.f32 %v1026, %v1189
        %v1191 = vpop.f32.mrf.mxu0
        %v1192 = vadd.f32 %v1026, %v1191
        %1193 = vmatmul.bf16.gmra.mxu0 %v989
        %v1194 = vpop.f32.mrf.mxu0
        %v1195 = vadd.f32 %v1026, %v1194
        %v1196 = vpop.f32.mrf.mxu0
        %v1197 = vadd.f32 %v1026, %v1196
        %1198 = vmatmul.bf16.gmra.mxu0 %v990
        %v1199 = vpop.f32.mrf.mxu0
        %v1200 = vadd.f32 %v1026, %v1199
        %v1201 = vpop.f32.mrf.mxu0
        %v1202 = vadd.f32 %v1026, %v1201
        %1203 = vmatmul.bf16.gmra.mxu0 %v991
        %v1204 = vpop.f32.mrf.mxu0
        %v1205 = vadd.f32 %v1026, %v1204
        %v1206 = vpop.f32.mrf.mxu0
        %v1207 = vadd.f32 %v1026, %v1206
        %1208 = vdwg.mxu0
        %1209 = vmatpush.bf16.msra.mxu0 %v1134
        %1210 = vmatpush.bf16.msra.mxu0 %v1131
        %1211 = vmatpush.bf16.msra.mxu0 %v1128
        %1212 = vmatpush.bf16.msra.mxu0 %v1125
        %1213 = vmatpush.bf16.msra.mxu0 %v1122
        %1214 = vmatpush.bf16.msra.mxu0 %v1119
        %1215 = vmatpush.bf16.msra.mxu0 %v1116
        %1216 = vmatpush.bf16.msra.mxu0 %v1113
        %1217 = vmatmul.bf16.gmra.mxu0 %v984
        %v1218 = vpop.f32.mrf.mxu0
        %v1219 = vadd.f32 %v1027, %v1218
        %v1220 = vpop.f32.mrf.mxu0
        %v1221 = vadd.f32 %v1027, %v1220
        %1222 = vmatmul.bf16.gmra.mxu0 %v985
        %v1223 = vpop.f32.mrf.mxu0
        %v1224 = vadd.f32 %v1027, %v1223
        %v1225 = vpop.f32.mrf.mxu0
        %v1226 = vadd.f32 %v1027, %v1225
        %1227 = vmatmul.bf16.gmra.mxu0 %v986
        %v1228 = vpop.f32.mrf.mxu0
        %v1229 = vadd.f32 %v1027, %v1228
        %v1230 = vpop.f32.mrf.mxu0
        %v1231 = vadd.f32 %v1027, %v1230
        %1232 = vmatmul.bf16.gmra.mxu0 %v987
        %v1233 = vpop.f32.mrf.mxu0
        %v1234 = vadd.f32 %v1027, %v1233
        %v1235 = vpop.f32.mrf.mxu0
        %v1236 = vadd.f32 %v1027, %v1235
        %1237 = vmatmul.bf16.gmra.mxu0 %v988
        %v1238 = vpop.f32.mrf.mxu0
        %v1239 = vadd.f32 %v1027, %v1238
        %v1240 = vpop.f32.mrf.mxu0
        %v1241 = vadd.f32 %v1027, %v1240
        %1242 = vmatmul.bf16.gmra.mxu0 %v989
        %v1243 = vpop.f32.mrf.mxu0
        %v1244 = vadd.f32 %v1027, %v1243
        %v1245 = vpop.f32.mrf.mxu0
        %v1246 = vadd.f32 %v1027, %v1245
        %1247 = vmatmul.bf16.gmra.mxu0 %v990
        %v1248 = vpop.f32.mrf.mxu0
        %v1249 = vadd.f32 %v1027, %v1248
        %v1250 = vpop.f32.mrf.mxu0
        %v1251 = vadd.f32 %v1027, %v1250
        %1252 = vmatmul.bf16.gmra.mxu0 %v991
        %v1253 = vpop.f32.mrf.mxu0
        %v1254 = vadd.f32 %v1027, %v1253
        %v1255 = vpop.f32.mrf.mxu0
        %v1256 = vadd.f32 %v1027, %v1255
        %1257 = vdwg.mxu0
        %1258 = vmatpush.bf16.msra.mxu0 %v1135
        %1259 = vmatpush.bf16.msra.mxu0 %v1132
        %1260 = vmatpush.bf16.msra.mxu0 %v1129
        %1261 = vmatpush.bf16.msra.mxu0 %v1126
        %1262 = vmatpush.bf16.msra.mxu0 %v1123
        %1263 = vmatpush.bf16.msra.mxu0 %v1120
        %1264 = vmatpush.bf16.msra.mxu0 %v1117
        %1265 = vmatpush.bf16.msra.mxu0 %v1114
        %1266 = vmatmul.bf16.gmra.mxu0 %v984
        %v1267 = vpop.f32.mrf.mxu0
        %v1268 = vadd.f32 %v1028, %v1267
        %v1269 = vpop.f32.mrf.mxu0
        %v1270 = vadd.f32 %v1028, %v1269
        %1271 = vmatmul.bf16.gmra.mxu0 %v985
        %v1272 = vpop.f32.mrf.mxu0
        %v1273 = vadd.f32 %v1028, %v1272
        %v1274 = vpop.f32.mrf.mxu0
        %v1275 = vadd.f32 %v1028, %v1274
        %1276 = vmatmul.bf16.gmra.mxu0 %v986
        %v1277 = vpop.f32.mrf.mxu0
        %v1278 = vadd.f32 %v1028, %v1277
        %v1279 = vpop.f32.mrf.mxu0
        %v1280 = vadd.f32 %v1028, %v1279
        %1281 = vmatmul.bf16.gmra.mxu0 %v987
        %v1282 = vpop.f32.mrf.mxu0
        %v1283 = vadd.f32 %v1028, %v1282
        %v1284 = vpop.f32.mrf.mxu0
        %v1285 = vadd.f32 %v1028, %v1284
        %1286 = vmatmul.bf16.gmra.mxu0 %v988
        %v1287 = vpop.f32.mrf.mxu0
        %v1288 = vadd.f32 %v1028, %v1287
        %v1289 = vpop.f32.mrf.mxu0
        %v1290 = vadd.f32 %v1028, %v1289
        %1291 = vmatmul.bf16.gmra.mxu0 %v989
        %v1292 = vpop.f32.mrf.mxu0
        %v1293 = vadd.f32 %v1028, %v1292
        %v1294 = vpop.f32.mrf.mxu0
        %v1295 = vadd.f32 %v1028, %v1294
        %1296 = vmatmul.bf16.gmra.mxu0 %v990
        %v1297 = vpop.f32.mrf.mxu0
        %v1298 = vadd.f32 %v1028, %v1297
        %v1299 = vpop.f32.mrf.mxu0
        %v1300 = vadd.f32 %v1028, %v1299
        %1301 = vmatmul.bf16.gmra.mxu0 %v991
        %v1302 = vpop.f32.mrf.mxu0
        %v1303 = vadd.f32 %v1028, %v1302
        %v1304 = vpop.f32.mrf.mxu0
        %v1305 = vadd.f32 %v1028, %v1304
        %1306 = vdwg.mxu0
        %v1307 = vmul.f32 %v1170, 0.17677669
        %v1308 = vmul.f32 %v1172, 0.17677669
        %v1309 = vmul.f32 %v1175, 0.17677669
        %v1310 = vmul.f32 %v1177, 0.17677669
        %v1311 = vmul.f32 %v1180, 0.17677669
        %v1312 = vmul.f32 %v1182, 0.17677669
        %v1313 = vmul.f32 %v1185, 0.17677669
        %v1314 = vmul.f32 %v1187, 0.17677669
        %v1315 = vmul.f32 %v1190, 0.17677669
        %v1316 = vmul.f32 %v1192, 0.17677669
        %v1317 = vmul.f32 %v1195, 0.17677669
        %v1318 = vmul.f32 %v1197, 0.17677669
        %v1319 = vmul.f32 %v1200, 0.17677669
        %v1320 = vmul.f32 %v1202, 0.17677669
        %v1321 = vmul.f32 %v1205, 0.17677669
        %v1322 = vmul.f32 %v1207, 0.17677669
        %v1323 = vpack.c.bf16 %v1307, %v1307
        %v1324 = vpack.c.bf16 %v1308, %v1308
        %v1325 = vpack.c.bf16 %v1309, %v1309
        %v1326 = vpack.c.bf16 %v1310, %v1310
        %v1327 = vpack.c.bf16 %v1311, %v1311
        %v1328 = vpack.c.bf16 %v1312, %v1312
        %v1329 = vpack.c.bf16 %v1313, %v1313
        %v1330 = vpack.c.bf16 %v1314, %v1314
        %v1331 = vpack.c.bf16 %v1315, %v1315
        %v1332 = vpack.c.bf16 %v1316, %v1316
        %v1333 = vpack.c.bf16 %v1317, %v1317
        %v1334 = vpack.c.bf16 %v1318, %v1318
        %v1335 = vpack.c.bf16 %v1319, %v1319
        %v1336 = vpack.c.bf16 %v1320, %v1320
        %v1337 = vpack.c.bf16 %v1321, %v1321
        %v1338 = vpack.c.bf16 %v1322, %v1322
        %1339 = vxpose.xlu0.b32.start [1/16] %v1219, 128
        %1340 = vxpose.xlu0.b32.cont [2/16] %v1221, 128
        %1341 = vxpose.xlu0.b32.cont [3/16] %v1224, 128
        %1342 = vxpose.xlu0.b32.cont [4/16] %v1226, 128
        %1343 = vxpose.xlu0.b32.cont [5/16] %v1229, 128
        %1344 = vxpose.xlu0.b32.cont [6/16] %v1231, 128
        %1345 = vxpose.xlu0.b32.cont [7/16] %v1234, 128
        %1346 = vxpose.xlu0.b32.cont [8/16] %v1236, 128
        %1347 = vxpose.xlu0.b32.cont [9/16] %v1239, 128
        %1348 = vxpose.xlu0.b32.cont [10/16] %v1241, 128
        %1349 = vxpose.xlu0.b32.cont [11/16] %v1244, 128
        %1350 = vxpose.xlu0.b32.cont [12/16] %v1246, 128
        %1351 = vxpose.xlu0.b32.cont [13/16] %v1249, 128
        %1352 = vxpose.xlu0.b32.cont [14/16] %v1251, 128
        %1353 = vxpose.xlu0.b32.cont [15/16] %v1254, 128
        %1354 = vxpose.xlu0.b32.end [16/16] %v1256, 128
        %v1355 = vpop.trf.xlu0
        %v1356 = vpop.trf.xlu0
        %v1357 = vpop.trf.xlu0
        %v1358 = vpop.trf.xlu0
        %v1359 = vpop.trf.xlu0
        %v1360 = vpop.trf.xlu0
        %v1361 = vpop.trf.xlu0
        %v1362 = vpop.trf.xlu0
        %v1363 = vpop.trf.xlu0
        %v1364 = vpop.trf.xlu0
        %v1365 = vpop.trf.xlu0
        %v1366 = vpop.trf.xlu0
        %v1367 = vpop.trf.xlu0
        %v1368 = vpop.trf.xlu0
        %v1369 = vpop.trf.xlu0
        %v1370 = vpop.trf.xlu0
        %v1371 = vpack.c.bf16 %v1355, %v1355
        %v1372 = vpack.c.bf16 %v1356, %v1356
        %v1373 = vpack.c.bf16 %v1357, %v1357
        %v1374 = vpack.c.bf16 %v1358, %v1358
        %v1375 = vpack.c.bf16 %v1359, %v1359
        %v1376 = vpack.c.bf16 %v1360, %v1360
        %v1377 = vpack.c.bf16 %v1361, %v1361
        %v1378 = vpack.c.bf16 %v1362, %v1362
        %v1379 = vpack.c.bf16 %v1363, %v1363
        %v1380 = vpack.c.bf16 %v1364, %v1364
        %v1381 = vpack.c.bf16 %v1365, %v1365
        %v1382 = vpack.c.bf16 %v1366, %v1366
        %v1383 = vpack.c.bf16 %v1367, %v1367
        %v1384 = vpack.c.bf16 %v1368, %v1368
        %v1385 = vpack.c.bf16 %v1369, %v1369
        %v1386 = vpack.c.bf16 %v1370, %v1370
        %v1387 = vpack.c.bf16 %v1268, %v1268
        %v1388 = vpack.c.bf16 %v1270, %v1270
        %v1389 = vpack.c.bf16 %v1273, %v1273
        %v1390 = vpack.c.bf16 %v1275, %v1275
        %v1391 = vpack.c.bf16 %v1278, %v1278
        %v1392 = vpack.c.bf16 %v1280, %v1280
        %v1393 = vpack.c.bf16 %v1283, %v1283
        %v1394 = vpack.c.bf16 %v1285, %v1285
        %v1395 = vpack.c.bf16 %v1288, %v1288
        %v1396 = vpack.c.bf16 %v1290, %v1290
        %v1397 = vpack.c.bf16 %v1293, %v1293
        %v1398 = vpack.c.bf16 %v1295, %v1295
        %v1399 = vpack.c.bf16 %v1298, %v1298
        %v1400 = vpack.c.bf16 %v1300, %v1300
        %v1401 = vpack.c.bf16 %v1303, %v1303
        %v1402 = vpack.c.bf16 %v1305, %v1305
        %v1403 = vld [vmem:[#allocation5] sm:$0xff]
        %v1404 = vld [vmem:[#allocation5 + $0x8] sm:$0xff]
        %v1405 = vld [vmem:[#allocation5 + $0x10] sm:$0xff]
        %v1406 = vld [vmem:[#allocation5 + $0x18] sm:$0xff]
        %v1407 = vld [vmem:[#allocation5 + $0x20] sm:$0xff]
        %v1408 = vld [vmem:[#allocation5 + $0x28] sm:$0xff]
        %v1409 = vld [vmem:[#allocation5 + $0x30] sm:$0xff]
        %v1410 = vld [vmem:[#allocation5 + $0x38] sm:$0xff]
        %v1411 = vld [vmem:[#allocation5 + $0x40] sm:$0xff]
        %v1412 = vld [vmem:[#allocation5 + $0x48] sm:$0xff]
        %v1413 = vld [vmem:[#allocation5 + $0x50] sm:$0xff]
        %v1414 = vld [vmem:[#allocation5 + $0x58] sm:$0xff]
        %v1415 = vld [vmem:[#allocation5 + $0x60] sm:$0xff]
        %v1416 = vld [vmem:[#allocation5 + $0x68] sm:$0xff]
        %v1417 = vld [vmem:[#allocation5 + $0x70] sm:$0xff]
        %v1418 = vld [vmem:[#allocation5 + $0x78] sm:$0xff]
        %v1435 = vunpack.c.l.b16 %v1323
        %v1436 = vunpack.c.l.b16 %v1324
        %v1437 = vunpack.c.l.b16 %v1325
        %v1438 = vunpack.c.l.b16 %v1326
        %v1439 = vunpack.c.l.b16 %v1327
        %v1440 = vunpack.c.l.b16 %v1328
        %v1441 = vunpack.c.l.b16 %v1329
        %v1442 = vunpack.c.l.b16 %v1330
        %v1443 = vunpack.c.l.b16 %v1331
        %v1444 = vunpack.c.l.b16 %v1332
        %v1445 = vunpack.c.l.b16 %v1333
        %v1446 = vunpack.c.l.b16 %v1334
        %v1447 = vunpack.c.l.b16 %v1335
        %v1448 = vunpack.c.l.b16 %v1336
        %v1449 = vunpack.c.l.b16 %v1337
        %v1450 = vunpack.c.l.b16 %v1338
        %v1451 = vpack.c.b16 %v1436, %v1435
        %v1452 = vpack.c.b16 %v1438, %v1437
        %v1453 = vpack.c.b16 %v1440, %v1439
        %v1454 = vpack.c.b16 %v1442, %v1441
        %v1455 = vpack.c.b16 %v1444, %v1443
        %v1456 = vpack.c.b16 %v1446, %v1445
        %v1457 = vpack.c.b16 %v1448, %v1447
        %v1458 = vpack.c.b16 %v1450, %v1449
        %v1463 = vunpack.c.l.b16 %v1371
        %v1464 = vunpack.c.l.b16 %v1372
        %v1465 = vunpack.c.l.b16 %v1373
        %v1466 = vunpack.c.l.b16 %v1374
        %v1467 = vpack.c.b16 %v1464, %v1463
        %v1468 = vpack.c.b16 %v1466, %v1465
        %vm1471 = vcmask 261120
        %v1473 = vsel %vm1471, %v1451, 0
        %v1476 = vsel %vm1471, %v1452, 0
        %v1479 = vsel %vm1471, %v1453, 0
        %v1482 = vsel %vm1471, %v1454, 0
        %v1485 = vsel %vm1471, %v1455, 0
        %v1488 = vsel %vm1471, %v1456, 0
        %v1491 = vsel %vm1471, %v1457, 0
        %v1494 = vsel %vm1471, %v1458, 0
        %1496 = vmatpush.bf16.msra.mxu0 0
        %1497 = vmatpush.bf16.msra.mxu0 0
        %1498 = vmatpush.bf16.msra.mxu0 0
        %1499 = vmatpush.bf16.msra.mxu0 0
        %1500 = vmatpush.bf16.msra.mxu0 0
        %1501 = vmatpush.bf16.msra.mxu0 0
        %1502 = vmatpush.bf16.msra.mxu0 %v1468
        %1503 = vmatpush.bf16.msra.mxu0 %v1467
        %1504 = vmatmul.bf16.gmra.mxu0 %v1473
        %v1505 = vpop.f32.mrf.mxu0
        %v1506 = vadd.f32 %v1403, %v1505
        %v1507 = vpop.f32.mrf.mxu0
        %v1508 = vadd.f32 %v1404, %v1507
        %1509 = vmatmul.bf16.gmra.mxu0 %v1476
        %v1510 = vpop.f32.mrf.mxu0
        %v1511 = vadd.f32 %v1405, %v1510
        %v1512 = vpop.f32.mrf.mxu0
        %v1513 = vadd.f32 %v1406, %v1512
        %1514 = vmatmul.bf16.gmra.mxu0 %v1479
        %v1515 = vpop.f32.mrf.mxu0
        %v1516 = vadd.f32 %v1407, %v1515
        %v1517 = vpop.f32.mrf.mxu0
        %v1518 = vadd.f32 %v1408, %v1517
        %1519 = vmatmul.bf16.gmra.mxu0 %v1482
        %v1520 = vpop.f32.mrf.mxu0
        %v1521 = vadd.f32 %v1409, %v1520
        %v1522 = vpop.f32.mrf.mxu0
        %v1523 = vadd.f32 %v1410, %v1522
        %1524 = vmatmul.bf16.gmra.mxu0 %v1485
        %v1525 = vpop.f32.mrf.mxu0
        %v1526 = vadd.f32 %v1411, %v1525
        %v1527 = vpop.f32.mrf.mxu0
        %v1528 = vadd.f32 %v1412, %v1527
        %1529 = vmatmul.bf16.gmra.mxu0 %v1488
        %v1530 = vpop.f32.mrf.mxu0
        %v1531 = vadd.f32 %v1413, %v1530
        %v1532 = vpop.f32.mrf.mxu0
        %v1533 = vadd.f32 %v1414, %v1532
        %1534 = vmatmul.bf16.gmra.mxu0 %v1491
        %v1535 = vpop.f32.mrf.mxu0
        %v1536 = vadd.f32 %v1415, %v1535
        %v1537 = vpop.f32.mrf.mxu0
        %v1538 = vadd.f32 %v1416, %v1537
        %1539 = vmatmul.bf16.gmra.mxu0 %v1494
        %v1540 = vpop.f32.mrf.mxu0
        %v1541 = vadd.f32 %v1417, %v1540
        %v1542 = vpop.f32.mrf.mxu0
        %v1543 = vadd.f32 %v1418, %v1542
        %1544 = vdwg.mxu0
        %1545 = vmax.xlane.f32.xlu0 %v1506
        %v1546 = vpop.xlane.xlu0 %1545
        %1547 = vmax.xlane.f32.xlu0 %v1508
        %v1548 = vpop.xlane.xlu0 %1547
        %1549 = vmax.xlane.f32.xlu0 %v1511
        %v1550 = vpop.xlane.xlu0 %1549
        %1551 = vmax.xlane.f32.xlu0 %v1513
        %v1552 = vpop.xlane.xlu0 %1551
        %1553 = vmax.xlane.f32.xlu0 %v1516
        %v1554 = vpop.xlane.xlu0 %1553
        %1555 = vmax.xlane.f32.xlu0 %v1518
        %v1556 = vpop.xlane.xlu0 %1555
        %1557 = vmax.xlane.f32.xlu0 %v1521
        %v1558 = vpop.xlane.xlu0 %1557
        %1559 = vmax.xlane.f32.xlu0 %v1523
        %v1560 = vpop.xlane.xlu0 %1559
        %1561 = vmax.xlane.f32.xlu0 %v1526
        %v1562 = vpop.xlane.xlu0 %1561
        %1563 = vmax.xlane.f32.xlu0 %v1528
        %v1564 = vpop.xlane.xlu0 %1563
        %1565 = vmax.xlane.f32.xlu0 %v1531
        %v1566 = vpop.xlane.xlu0 %1565
        %1567 = vmax.xlane.f32.xlu0 %v1533
        %v1568 = vpop.xlane.xlu0 %1567
        %1569 = vmax.xlane.f32.xlu0 %v1536
        %v1570 = vpop.xlane.xlu0 %1569
        %1571 = vmax.xlane.f32.xlu0 %v1538
        %v1572 = vpop.xlane.xlu0 %1571
        %1573 = vmax.xlane.f32.xlu0 %v1541
        %v1574 = vpop.xlane.xlu0 %1573
        %1575 = vmax.xlane.f32.xlu0 %v1543
        %v1576 = vpop.xlane.xlu0 %1575
        %v1577 = vsub.f32 %v1506, %v1546
        %v1578 = vsub.f32 %v1508, %v1548
        %v1579 = vsub.f32 %v1511, %v1550
        %v1580 = vsub.f32 %v1513, %v1552
        %v1581 = vsub.f32 %v1516, %v1554
        %v1582 = vsub.f32 %v1518, %v1556
        %v1583 = vsub.f32 %v1521, %v1558
        %v1584 = vsub.f32 %v1523, %v1560
        %v1585 = vsub.f32 %v1526, %v1562
        %v1586 = vsub.f32 %v1528, %v1564
        %v1587 = vsub.f32 %v1531, %v1566
        %v1588 = vsub.f32 %v1533, %v1568
        %v1589 = vsub.f32 %v1536, %v1570
        %v1590 = vsub.f32 %v1538, %v1572
        %v1591 = vsub.f32 %v1541, %v1574
        %v1592 = vsub.f32 %v1543, %v1576
        %v1593 = vmul.f32 %v1577, 1.442695
        %v1594 = vpow.pop %v1593
        %v1595 = vmul.f32 %v1578, 1.442695
        %v1596 = vpow.pop %v1595
        %v1597 = vmul.f32 %v1579, 1.442695
        %v1598 = vpow.pop %v1597
        %v1599 = vmul.f32 %v1580, 1.442695
        %v1600 = vpow.pop %v1599
        %v1601 = vmul.f32 %v1581, 1.442695
        %v1602 = vpow.pop %v1601
        %v1603 = vmul.f32 %v1582, 1.442695
        %v1604 = vpow.pop %v1603
        %v1605 = vmul.f32 %v1583, 1.442695
        %v1606 = vpow.pop %v1605
        %v1607 = vmul.f32 %v1584, 1.442695
        %v1608 = vpow.pop %v1607
        %v1609 = vmul.f32 %v1585, 1.442695
        %v1610 = vpow.pop %v1609
        %v1611 = vmul.f32 %v1586, 1.442695
        %v1612 = vpow.pop %v1611
        %v1613 = vmul.f32 %v1587, 1.442695
        %v1614 = vpow.pop %v1613
        %v1615 = vmul.f32 %v1588, 1.442695
        %v1616 = vpow.pop %v1615
        %v1617 = vmul.f32 %v1589, 1.442695
        %v1618 = vpow.pop %v1617
        %v1619 = vmul.f32 %v1590, 1.442695
        %v1620 = vpow.pop %v1619
        %v1621 = vmul.f32 %v1591, 1.442695
        %v1622 = vpow.pop %v1621
        %v1623 = vmul.f32 %v1592, 1.442695
        %v1624 = vpow.pop %v1623
        %1625 = vadd.xlane.f32.xlu0 %v1594
        %v1626 = vpop.xlane.xlu0 %1625
        %1627 = vadd.xlane.f32.xlu0 %v1596
        %v1628 = vpop.xlane.xlu0 %1627
        %1629 = vadd.xlane.f32.xlu0 %v1598
        %v1630 = vpop.xlane.xlu0 %1629
        %1631 = vadd.xlane.f32.xlu0 %v1600
        %v1632 = vpop.xlane.xlu0 %1631
        %1633 = vadd.xlane.f32.xlu0 %v1602
        %v1634 = vpop.xlane.xlu0 %1633
        %1635 = vadd.xlane.f32.xlu0 %v1604
        %v1636 = vpop.xlane.xlu0 %1635
        %1637 = vadd.xlane.f32.xlu0 %v1606
        %v1638 = vpop.xlane.xlu0 %1637
        %1639 = vadd.xlane.f32.xlu0 %v1608
        %v1640 = vpop.xlane.xlu0 %1639
        %1641 = vadd.xlane.f32.xlu0 %v1610
        %v1642 = vpop.xlane.xlu0 %1641
        %1643 = vadd.xlane.f32.xlu0 %v1612
        %v1644 = vpop.xlane.xlu0 %1643
        %1645 = vadd.xlane.f32.xlu0 %v1614
        %v1646 = vpop.xlane.xlu0 %1645
        %1647 = vadd.xlane.f32.xlu0 %v1616
        %v1648 = vpop.xlane.xlu0 %1647
        %1649 = vadd.xlane.f32.xlu0 %v1618
        %v1650 = vpop.xlane.xlu0 %1649
        %1651 = vadd.xlane.f32.xlu0 %v1620
        %v1652 = vpop.xlane.xlu0 %1651
        %1653 = vadd.xlane.f32.xlu0 %v1622
        %v1654 = vpop.xlane.xlu0 %1653
        %1655 = vadd.xlane.f32.xlu0 %v1624
        %v1656 = vpop.xlane.xlu0 %1655
        %v1657 = vpack.c.bf16 %v1596, %v1594
        %v1658 = vpack.c.bf16 %v1600, %v1598
        %v1659 = vpack.c.bf16 %v1604, %v1602
        %v1660 = vpack.c.bf16 %v1608, %v1606
        %v1661 = vpack.c.bf16 %v1612, %v1610
        %v1662 = vpack.c.bf16 %v1616, %v1614
        %v1663 = vpack.c.bf16 %v1620, %v1618
        %v1664 = vpack.c.bf16 %v1624, %v1622
        %v1681 = vunpack.c.l.b16 %v1387
        %v1682 = vunpack.c.l.b16 %v1388
        %v1683 = vunpack.c.l.b16 %v1389
        %v1684 = vunpack.c.l.b16 %v1390
        %v1685 = vunpack.c.l.b16 %v1391
        %v1686 = vunpack.c.l.b16 %v1392
        %v1687 = vunpack.c.l.b16 %v1393
        %v1688 = vunpack.c.l.b16 %v1394
        %v1689 = vunpack.c.l.b16 %v1395
        %v1690 = vunpack.c.l.b16 %v1396
        %v1691 = vunpack.c.l.b16 %v1397
        %v1692 = vunpack.c.l.b16 %v1398
        %v1693 = vunpack.c.l.b16 %v1399
        %v1694 = vunpack.c.l.b16 %v1400
        %v1695 = vunpack.c.l.b16 %v1401
        %v1696 = vunpack.c.l.b16 %v1402
        %v1697 = vpack.c.b16 %v1682, %v1681
        %v1698 = vpack.c.b16 %v1684, %v1683
        %v1699 = vpack.c.b16 %v1686, %v1685
        %v1700 = vpack.c.b16 %v1688, %v1687
        %v1701 = vpack.c.b16 %v1690, %v1689
        %v1702 = vpack.c.b16 %v1692, %v1691
        %v1703 = vpack.c.b16 %v1694, %v1693
        %v1704 = vpack.c.b16 %v1696, %v1695
        %1713 = vmatpush.bf16.msra.mxu0 %v1704
        %1714 = vmatpush.bf16.msra.mxu0 %v1703
        %1715 = vmatpush.bf16.msra.mxu0 %v1702
        %1716 = vmatpush.bf16.msra.mxu0 %v1701
        %1717 = vmatpush.bf16.msra.mxu0 %v1700
        %1718 = vmatpush.bf16.msra.mxu0 %v1699
        %1719 = vmatpush.bf16.msra.mxu0 %v1698
        %1720 = vmatpush.bf16.msra.mxu0 %v1697
        %1721 = vmatmul.bf16.gmra.mxu0 %v1657
        %v1722 = vpop.f32.mrf.mxu0
        %v1723 = vadd.f32 0.0, %v1722
        %v1724 = vpop.f32.mrf.mxu0
        %v1725 = vadd.f32 0.0, %v1724
        %1726 = vmatmul.bf16.gmra.mxu0 %v1658
        %v1727 = vpop.f32.mrf.mxu0
        %v1728 = vadd.f32 0.0, %v1727
        %v1729 = vpop.f32.mrf.mxu0
        %v1730 = vadd.f32 0.0, %v1729
        %1731 = vmatmul.bf16.gmra.mxu0 %v1659
        %v1732 = vpop.f32.mrf.mxu0
        %v1733 = vadd.f32 0.0, %v1732
        %v1734 = vpop.f32.mrf.mxu0
        %v1735 = vadd.f32 0.0, %v1734
        %1736 = vmatmul.bf16.gmra.mxu0 %v1660
        %v1737 = vpop.f32.mrf.mxu0
        %v1738 = vadd.f32 0.0, %v1737
        %v1739 = vpop.f32.mrf.mxu0
        %v1740 = vadd.f32 0.0, %v1739
        %1741 = vmatmul.bf16.gmra.mxu0 %v1661
        %v1742 = vpop.f32.mrf.mxu0
        %v1743 = vadd.f32 0.0, %v1742
        %v1744 = vpop.f32.mrf.mxu0
        %v1745 = vadd.f32 0.0, %v1744
        %1746 = vmatmul.bf16.gmra.mxu0 %v1662
        %v1747 = vpop.f32.mrf.mxu0
        %v1748 = vadd.f32 0.0, %v1747
        %v1749 = vpop.f32.mrf.mxu0
        %v1750 = vadd.f32 0.0, %v1749
        %1751 = vmatmul.bf16.gmra.mxu0 %v1663
        %v1752 = vpop.f32.mrf.mxu0
        %v1753 = vadd.f32 0.0, %v1752
        %v1754 = vpop.f32.mrf.mxu0
        %v1755 = vadd.f32 0.0, %v1754
        %1756 = vmatmul.bf16.gmra.mxu0 %v1664
        %v1757 = vpop.f32.mrf.mxu0
        %v1758 = vadd.f32 0.0, %v1757
        %v1759 = vpop.f32.mrf.mxu0
        %v1760 = vadd.f32 0.0, %v1759
        %1761 = vdwg.mxu0
        %v1762 = vrcp.pop %v1626
        %v1763 = vrcp.pop %v1628
        %v1764 = vrcp.pop %v1630
        %v1765 = vrcp.pop %v1632
        %v1766 = vrcp.pop %v1634
        %v1767 = vrcp.pop %v1636
        %v1768 = vrcp.pop %v1638
        %v1769 = vrcp.pop %v1640
        %v1770 = vrcp.pop %v1642
        %v1771 = vrcp.pop %v1644
        %v1772 = vrcp.pop %v1646
        %v1773 = vrcp.pop %v1648
        %v1774 = vrcp.pop %v1650
        %v1775 = vrcp.pop %v1652
        %v1776 = vrcp.pop %v1654
        %v1777 = vrcp.pop %v1656
        %v1778 = vmul.f32 %v1723, %v1762
        %v1779 = vmul.f32 %v1725, %v1763
        %v1780 = vmul.f32 %v1728, %v1764
        %v1781 = vmul.f32 %v1730, %v1765
        %v1782 = vmul.f32 %v1733, %v1766
        %v1783 = vmul.f32 %v1735, %v1767
        %v1784 = vmul.f32 %v1738, %v1768
        %v1785 = vmul.f32 %v1740, %v1769
        %v1786 = vmul.f32 %v1743, %v1770
        %v1787 = vmul.f32 %v1745, %v1771
        %v1788 = vmul.f32 %v1748, %v1772
        %v1789 = vmul.f32 %v1750, %v1773
        %v1790 = vmul.f32 %v1753, %v1774
        %v1791 = vmul.f32 %v1755, %v1775
        %v1792 = vmul.f32 %v1758, %v1776
        %v1793 = vmul.f32 %v1760, %v1777
        %1794 = vrot.lane.b32.xlu0 %v1451, 96
        %v1795 = vpop.permute.xlu0 %1794
        %1796 = vrot.lane.b32.xlu0 %v1452, 96
        %v1797 = vpop.permute.xlu0 %1796
        %1798 = vrot.lane.b32.xlu0 %v1453, 96
        %v1799 = vpop.permute.xlu0 %1798
        %1800 = vrot.lane.b32.xlu0 %v1454, 96
        %v1801 = vpop.permute.xlu0 %1800
        %1802 = vrot.lane.b32.xlu0 %v1455, 96
        %v1803 = vpop.permute.xlu0 %1802
        %1804 = vrot.lane.b32.xlu0 %v1456, 96
        %v1805 = vpop.permute.xlu0 %1804
        %1806 = vrot.lane.b32.xlu0 %v1457, 96
        %v1807 = vpop.permute.xlu0 %1806
        %1808 = vrot.lane.b32.xlu0 %v1458, 96
        %v1809 = vpop.permute.xlu0 %1808
        %v1814 = vunpack.c.l.b16 %v1375
        %v1815 = vunpack.c.l.b16 %v1376
        %v1816 = vunpack.c.l.b16 %v1377
        %v1817 = vunpack.c.l.b16 %v1378
        %v1818 = vpack.c.b16 %v1815, %v1814
        %v1819 = vpack.c.b16 %v1817, %v1816
        %v1823 = vsel %vm1471, %v1795, 0
        %v1826 = vsel %vm1471, %v1797, 0
        %v1829 = vsel %vm1471, %v1799, 0
        %v1832 = vsel %vm1471, %v1801, 0
        %v1835 = vsel %vm1471, %v1803, 0
        %v1838 = vsel %vm1471, %v1805, 0
        %v1841 = vsel %vm1471, %v1807, 0
        %v1844 = vsel %vm1471, %v1809, 0
        %1846 = vmatpush.bf16.msra.mxu0 0
        %1847 = vmatpush.bf16.msra.mxu0 0
        %1848 = vmatpush.bf16.msra.mxu0 0
        %1849 = vmatpush.bf16.msra.mxu0 0
        %1850 = vmatpush.bf16.msra.mxu0 0
        %1851 = vmatpush.bf16.msra.mxu0 0
        %1852 = vmatpush.bf16.msra.mxu0 %v1819
        %1853 = vmatpush.bf16.msra.mxu0 %v1818
        %1854 = vmatmul.bf16.gmra.mxu0 %v1823
        %v1855 = vpop.f32.mrf.mxu0
        %v1856 = vadd.f32 %v1403, %v1855
        %v1857 = vpop.f32.mrf.mxu0
        %v1858 = vadd.f32 %v1404, %v1857
        %1859 = vmatmul.bf16.gmra.mxu0 %v1826
        %v1860 = vpop.f32.mrf.mxu0
        %v1861 = vadd.f32 %v1405, %v1860
        %v1862 = vpop.f32.mrf.mxu0
        %v1863 = vadd.f32 %v1406, %v1862
        %1864 = vmatmul.bf16.gmra.mxu0 %v1829
        %v1865 = vpop.f32.mrf.mxu0
        %v1866 = vadd.f32 %v1407, %v1865
        %v1867 = vpop.f32.mrf.mxu0
        %v1868 = vadd.f32 %v1408, %v1867
        %1869 = vmatmul.bf16.gmra.mxu0 %v1832
        %v1870 = vpop.f32.mrf.mxu0
        %v1871 = vadd.f32 %v1409, %v1870
        %v1872 = vpop.f32.mrf.mxu0
        %v1873 = vadd.f32 %v1410, %v1872
        %1874 = vmatmul.bf16.gmra.mxu0 %v1835
        %v1875 = vpop.f32.mrf.mxu0
        %v1876 = vadd.f32 %v1411, %v1875
        %v1877 = vpop.f32.mrf.mxu0
        %v1878 = vadd.f32 %v1412, %v1877
        %1879 = vmatmul.bf16.gmra.mxu0 %v1838
        %v1880 = vpop.f32.mrf.mxu0
        %v1881 = vadd.f32 %v1413, %v1880
        %v1882 = vpop.f32.mrf.mxu0
        %v1883 = vadd.f32 %v1414, %v1882
        %1884 = vmatmul.bf16.gmra.mxu0 %v1841
        %v1885 = vpop.f32.mrf.mxu0
        %v1886 = vadd.f32 %v1415, %v1885
        %v1887 = vpop.f32.mrf.mxu0
        %v1888 = vadd.f32 %v1416, %v1887
        %1889 = vmatmul.bf16.gmra.mxu0 %v1844
        %v1890 = vpop.f32.mrf.mxu0
        %v1891 = vadd.f32 %v1417, %v1890
        %v1892 = vpop.f32.mrf.mxu0
        %v1893 = vadd.f32 %v1418, %v1892
        %1894 = vdwg.mxu0
        %1895 = vmax.xlane.f32.xlu0 %v1856
        %v1896 = vpop.xlane.xlu0 %1895
        %1897 = vmax.xlane.f32.xlu0 %v1858
        %v1898 = vpop.xlane.xlu0 %1897
        %1899 = vmax.xlane.f32.xlu0 %v1861
        %v1900 = vpop.xlane.xlu0 %1899
        %1901 = vmax.xlane.f32.xlu0 %v1863
        %v1902 = vpop.xlane.xlu0 %1901
        %1903 = vmax.xlane.f32.xlu0 %v1866
        %v1904 = vpop.xlane.xlu0 %1903
        %1905 = vmax.xlane.f32.xlu0 %v1868
        %v1906 = vpop.xlane.xlu0 %1905
        %1907 = vmax.xlane.f32.xlu0 %v1871
        %v1908 = vpop.xlane.xlu0 %1907
        %1909 = vmax.xlane.f32.xlu0 %v1873
        %v1910 = vpop.xlane.xlu0 %1909
        %1911 = vmax.xlane.f32.xlu0 %v1876
        %v1912 = vpop.xlane.xlu0 %1911
        %1913 = vmax.xlane.f32.xlu0 %v1878
        %v1914 = vpop.xlane.xlu0 %1913
        %1915 = vmax.xlane.f32.xlu0 %v1881
        %v1916 = vpop.xlane.xlu0 %1915
        %1917 = vmax.xlane.f32.xlu0 %v1883
        %v1918 = vpop.xlane.xlu0 %1917
        %1919 = vmax.xlane.f32.xlu0 %v1886
        %v1920 = vpop.xlane.xlu0 %1919
        %1921 = vmax.xlane.f32.xlu0 %v1888
        %v1922 = vpop.xlane.xlu0 %1921
        %1923 = vmax.xlane.f32.xlu0 %v1891
        %v1924 = vpop.xlane.xlu0 %1923
        %1925 = vmax.xlane.f32.xlu0 %v1893
        %v1926 = vpop.xlane.xlu0 %1925
        %v1927 = vsub.f32 %v1856, %v1896
        %v1928 = vsub.f32 %v1858, %v1898
        %v1929 = vsub.f32 %v1861, %v1900
        %v1930 = vsub.f32 %v1863, %v1902
        %v1931 = vsub.f32 %v1866, %v1904
        %v1932 = vsub.f32 %v1868, %v1906
        %v1933 = vsub.f32 %v1871, %v1908
        %v1934 = vsub.f32 %v1873, %v1910
        %v1935 = vsub.f32 %v1876, %v1912
        %v1936 = vsub.f32 %v1878, %v1914
        %v1937 = vsub.f32 %v1881, %v1916
        %v1938 = vsub.f32 %v1883, %v1918
        %v1939 = vsub.f32 %v1886, %v1920
        %v1940 = vsub.f32 %v1888, %v1922
        %v1941 = vsub.f32 %v1891, %v1924
        %v1942 = vsub.f32 %v1893, %v1926
        %v1943 = vmul.f32 %v1927, 1.442695
        %v1944 = vpow.pop %v1943
        %v1945 = vmul.f32 %v1928, 1.442695
        %v1946 = vpow.pop %v1945
        %v1947 = vmul.f32 %v1929, 1.442695
        %v1948 = vpow.pop %v1947
        %v1949 = vmul.f32 %v1930, 1.442695
        %v1950 = vpow.pop %v1949
        %v1951 = vmul.f32 %v1931, 1.442695
        %v1952 = vpow.pop %v1951
        %v1953 = vmul.f32 %v1932, 1.442695
        %v1954 = vpow.pop %v1953
        %v1955 = vmul.f32 %v1933, 1.442695
        %v1956 = vpow.pop %v1955
        %v1957 = vmul.f32 %v1934, 1.442695
        %v1958 = vpow.pop %v1957
        %v1959 = vmul.f32 %v1935, 1.442695
        %v1960 = vpow.pop %v1959
        %v1961 = vmul.f32 %v1936, 1.442695
        %v1962 = vpow.pop %v1961
        %v1963 = vmul.f32 %v1937, 1.442695
        %v1964 = vpow.pop %v1963
        %v1965 = vmul.f32 %v1938, 1.442695
        %v1966 = vpow.pop %v1965
        %v1967 = vmul.f32 %v1939, 1.442695
        %v1968 = vpow.pop %v1967
        %v1969 = vmul.f32 %v1940, 1.442695
        %v1970 = vpow.pop %v1969
        %v1971 = vmul.f32 %v1941, 1.442695
        %v1972 = vpow.pop %v1971
        %v1973 = vmul.f32 %v1942, 1.442695
        %v1974 = vpow.pop %v1973
        %1975 = vadd.xlane.f32.xlu0 %v1944
        %v1976 = vpop.xlane.xlu0 %1975
        %1977 = vadd.xlane.f32.xlu0 %v1946
        %v1978 = vpop.xlane.xlu0 %1977
        %1979 = vadd.xlane.f32.xlu0 %v1948
        %v1980 = vpop.xlane.xlu0 %1979
        %1981 = vadd.xlane.f32.xlu0 %v1950
        %v1982 = vpop.xlane.xlu0 %1981
        %1983 = vadd.xlane.f32.xlu0 %v1952
        %v1984 = vpop.xlane.xlu0 %1983
        %1985 = vadd.xlane.f32.xlu0 %v1954
        %v1986 = vpop.xlane.xlu0 %1985
        %1987 = vadd.xlane.f32.xlu0 %v1956
        %v1988 = vpop.xlane.xlu0 %1987
        %1989 = vadd.xlane.f32.xlu0 %v1958
        %v1990 = vpop.xlane.xlu0 %1989
        %1991 = vadd.xlane.f32.xlu0 %v1960
        %v1992 = vpop.xlane.xlu0 %1991
        %1993 = vadd.xlane.f32.xlu0 %v1962
        %v1994 = vpop.xlane.xlu0 %1993
        %1995 = vadd.xlane.f32.xlu0 %v1964
        %v1996 = vpop.xlane.xlu0 %1995
        %1997 = vadd.xlane.f32.xlu0 %v1966
        %v1998 = vpop.xlane.xlu0 %1997
        %1999 = vadd.xlane.f32.xlu0 %v1968
        %v2000 = vpop.xlane.xlu0 %1999
        %2001 = vadd.xlane.f32.xlu0 %v1970
        %v2002 = vpop.xlane.xlu0 %2001
        %2003 = vadd.xlane.f32.xlu0 %v1972
        %v2004 = vpop.xlane.xlu0 %2003
        %2005 = vadd.xlane.f32.xlu0 %v1974
        %v2006 = vpop.xlane.xlu0 %2005
        %v2007 = vpack.c.bf16 %v1946, %v1944
        %v2008 = vpack.c.bf16 %v1950, %v1948
        %v2009 = vpack.c.bf16 %v1954, %v1952
        %v2010 = vpack.c.bf16 %v1958, %v1956
        %v2011 = vpack.c.bf16 %v1962, %v1960
        %v2012 = vpack.c.bf16 %v1966, %v1964
        %v2013 = vpack.c.bf16 %v1970, %v1968
        %v2014 = vpack.c.bf16 %v1974, %v1972
        %2015 = vrot.lane.b32.xlu0 %v1697, 96
        %v2016 = vpop.permute.xlu0 %2015
        %2017 = vrot.lane.b32.xlu0 %v1698, 96
        %v2018 = vpop.permute.xlu0 %2017
        %2019 = vrot.lane.b32.xlu0 %v1699, 96
        %v2020 = vpop.permute.xlu0 %2019
        %2021 = vrot.lane.b32.xlu0 %v1700, 96
        %v2022 = vpop.permute.xlu0 %2021
        %2023 = vrot.lane.b32.xlu0 %v1701, 96
        %v2024 = vpop.permute.xlu0 %2023
        %2025 = vrot.lane.b32.xlu0 %v1702, 96
        %v2026 = vpop.permute.xlu0 %2025
        %2027 = vrot.lane.b32.xlu0 %v1703, 96
        %v2028 = vpop.permute.xlu0 %2027
        %2029 = vrot.lane.b32.xlu0 %v1704, 96
        %v2030 = vpop.permute.xlu0 %2029
        %2039 = vmatpush.bf16.msra.mxu0 %v2030
        %2040 = vmatpush.bf16.msra.mxu0 %v2028
        %2041 = vmatpush.bf16.msra.mxu0 %v2026
        %2042 = vmatpush.bf16.msra.mxu0 %v2024
        %2043 = vmatpush.bf16.msra.mxu0 %v2022
        %2044 = vmatpush.bf16.msra.mxu0 %v2020
        %2045 = vmatpush.bf16.msra.mxu0 %v2018
        %2046 = vmatpush.bf16.msra.mxu0 %v2016
        %2047 = vmatmul.bf16.gmra.mxu0 %v2007
        %v2048 = vpop.f32.mrf.mxu0
        %v2049 = vadd.f32 0.0, %v2048
        %v2050 = vpop.f32.mrf.mxu0
        %v2051 = vadd.f32 0.0, %v2050
        %2052 = vmatmul.bf16.gmra.mxu0 %v2008
        %v2053 = vpop.f32.mrf.mxu0
        %v2054 = vadd.f32 0.0, %v2053
        %v2055 = vpop.f32.mrf.mxu0
        %v2056 = vadd.f32 0.0, %v2055
        %2057 = vmatmul.bf16.gmra.mxu0 %v2009
        %v2058 = vpop.f32.mrf.mxu0
        %v2059 = vadd.f32 0.0, %v2058
        %v2060 = vpop.f32.mrf.mxu0
        %v2061 = vadd.f32 0.0, %v2060
        %2062 = vmatmul.bf16.gmra.mxu0 %v2010
        %v2063 = vpop.f32.mrf.mxu0
        %v2064 = vadd.f32 0.0, %v2063
        %v2065 = vpop.f32.mrf.mxu0
        %v2066 = vadd.f32 0.0, %v2065
        %2067 = vmatmul.bf16.gmra.mxu0 %v2011
        %v2068 = vpop.f32.mrf.mxu0
        %v2069 = vadd.f32 0.0, %v2068
        %v2070 = vpop.f32.mrf.mxu0
        %v2071 = vadd.f32 0.0, %v2070
        %2072 = vmatmul.bf16.gmra.mxu0 %v2012
        %v2073 = vpop.f32.mrf.mxu0
        %v2074 = vadd.f32 0.0, %v2073
        %v2075 = vpop.f32.mrf.mxu0
        %v2076 = vadd.f32 0.0, %v2075
        %2077 = vmatmul.bf16.gmra.mxu0 %v2013
        %v2078 = vpop.f32.mrf.mxu0
        %v2079 = vadd.f32 0.0, %v2078
        %v2080 = vpop.f32.mrf.mxu0
        %v2081 = vadd.f32 0.0, %v2080
        %2082 = vmatmul.bf16.gmra.mxu0 %v2014
        %v2083 = vpop.f32.mrf.mxu0
        %v2084 = vadd.f32 0.0, %v2083
        %v2085 = vpop.f32.mrf.mxu0
        %v2086 = vadd.f32 0.0, %v2085
        %2087 = vdwg.mxu0
        %v2088 = vrcp.pop %v1976
        %v2089 = vrcp.pop %v1978
        %v2090 = vrcp.pop %v1980
        %v2091 = vrcp.pop %v1982
        %v2092 = vrcp.pop %v1984
        %v2093 = vrcp.pop %v1986
        %v2094 = vrcp.pop %v1988
        %v2095 = vrcp.pop %v1990
        %v2096 = vrcp.pop %v1992
        %v2097 = vrcp.pop %v1994
        %v2098 = vrcp.pop %v1996
        %v2099 = vrcp.pop %v1998
        %v2100 = vrcp.pop %v2000
        %v2101 = vrcp.pop %v2002
        %v2102 = vrcp.pop %v2004
        %v2103 = vrcp.pop %v2006
        %v2104 = vmul.f32 %v2049, %v2088
        %v2105 = vmul.f32 %v2051, %v2089
        %v2106 = vmul.f32 %v2054, %v2090
        %v2107 = vmul.f32 %v2056, %v2091
        %v2108 = vmul.f32 %v2059, %v2092
        %v2109 = vmul.f32 %v2061, %v2093
        %v2110 = vmul.f32 %v2064, %v2094
        %v2111 = vmul.f32 %v2066, %v2095
        %v2112 = vmul.f32 %v2069, %v2096
        %v2113 = vmul.f32 %v2071, %v2097
        %v2114 = vmul.f32 %v2074, %v2098
        %v2115 = vmul.f32 %v2076, %v2099
        %v2116 = vmul.f32 %v2079, %v2100
        %v2117 = vmul.f32 %v2081, %v2101
        %v2118 = vmul.f32 %v2084, %v2102
        %v2119 = vmul.f32 %v2086, %v2103
        %2120 = vrot.lane.b32.xlu0 %v1451, 64
        %v2121 = vpop.permute.xlu0 %2120
        %2122 = vrot.lane.b32.xlu0 %v1452, 64
        %v2123 = vpop.permute.xlu0 %2122
        %2124 = vrot.lane.b32.xlu0 %v1453, 64
        %v2125 = vpop.permute.xlu0 %2124
        %2126 = vrot.lane.b32.xlu0 %v1454, 64
        %v2127 = vpop.permute.xlu0 %2126
        %2128 = vrot.lane.b32.xlu0 %v1455, 64
        %v2129 = vpop.permute.xlu0 %2128
        %2130 = vrot.lane.b32.xlu0 %v1456, 64
        %v2131 = vpop.permute.xlu0 %2130
        %2132 = vrot.lane.b32.xlu0 %v1457, 64
        %v2133 = vpop.permute.xlu0 %2132
        %2134 = vrot.lane.b32.xlu0 %v1458, 64
        %v2135 = vpop.permute.xlu0 %2134
        %v2140 = vunpack.c.l.b16 %v1379
        %v2141 = vunpack.c.l.b16 %v1380
        %v2142 = vunpack.c.l.b16 %v1381
        %v2143 = vunpack.c.l.b16 %v1382
        %v2144 = vpack.c.b16 %v2141, %v2140
        %v2145 = vpack.c.b16 %v2143, %v2142
        %v2149 = vsel %vm1471, %v2121, 0
        %v2152 = vsel %vm1471, %v2123, 0
        %v2155 = vsel %vm1471, %v2125, 0
        %v2158 = vsel %vm1471, %v2127, 0
        %v2161 = vsel %vm1471, %v2129, 0
        %v2164 = vsel %vm1471, %v2131, 0
        %v2167 = vsel %vm1471, %v2133, 0
        %v2170 = vsel %vm1471, %v2135, 0
        %2172 = vmatpush.bf16.msra.mxu0 0
        %2173 = vmatpush.bf16.msra.mxu0 0
        %2174 = vmatpush.bf16.msra.mxu0 0
        %2175 = vmatpush.bf16.msra.mxu0 0
        %2176 = vmatpush.bf16.msra.mxu0 0
        %2177 = vmatpush.bf16.msra.mxu0 0
        %2178 = vmatpush.bf16.msra.mxu0 %v2145
        %2179 = vmatpush.bf16.msra.mxu0 %v2144
        %2180 = vmatmul.bf16.gmra.mxu0 %v2149
        %v2181 = vpop.f32.mrf.mxu0
        %v2182 = vadd.f32 %v1403, %v2181
        %v2183 = vpop.f32.mrf.mxu0
        %v2184 = vadd.f32 %v1404, %v2183
        %2185 = vmatmul.bf16.gmra.mxu0 %v2152
        %v2186 = vpop.f32.mrf.mxu0
        %v2187 = vadd.f32 %v1405, %v2186
        %v2188 = vpop.f32.mrf.mxu0
        %v2189 = vadd.f32 %v1406, %v2188
        %2190 = vmatmul.bf16.gmra.mxu0 %v2155
        %v2191 = vpop.f32.mrf.mxu0
        %v2192 = vadd.f32 %v1407, %v2191
        %v2193 = vpop.f32.mrf.mxu0
        %v2194 = vadd.f32 %v1408, %v2193
        %2195 = vmatmul.bf16.gmra.mxu0 %v2158
        %v2196 = vpop.f32.mrf.mxu0
        %v2197 = vadd.f32 %v1409, %v2196
        %v2198 = vpop.f32.mrf.mxu0
        %v2199 = vadd.f32 %v1410, %v2198
        %2200 = vmatmul.bf16.gmra.mxu0 %v2161
        %v2201 = vpop.f32.mrf.mxu0
        %v2202 = vadd.f32 %v1411, %v2201
        %v2203 = vpop.f32.mrf.mxu0
        %v2204 = vadd.f32 %v1412, %v2203
        %2205 = vmatmul.bf16.gmra.mxu0 %v2164
        %v2206 = vpop.f32.mrf.mxu0
        %v2207 = vadd.f32 %v1413, %v2206
        %v2208 = vpop.f32.mrf.mxu0
        %v2209 = vadd.f32 %v1414, %v2208
        %2210 = vmatmul.bf16.gmra.mxu0 %v2167
        %v2211 = vpop.f32.mrf.mxu0
        %v2212 = vadd.f32 %v1415, %v2211
        %v2213 = vpop.f32.mrf.mxu0
        %v2214 = vadd.f32 %v1416, %v2213
        %2215 = vmatmul.bf16.gmra.mxu0 %v2170
        %v2216 = vpop.f32.mrf.mxu0
        %v2217 = vadd.f32 %v1417, %v2216
        %v2218 = vpop.f32.mrf.mxu0
        %v2219 = vadd.f32 %v1418, %v2218
        %2220 = vdwg.mxu0
        %2221 = vmax.xlane.f32.xlu0 %v2182
        %v2222 = vpop.xlane.xlu0 %2221
        %2223 = vmax.xlane.f32.xlu0 %v2184
        %v2224 = vpop.xlane.xlu0 %2223
        %2225 = vmax.xlane.f32.xlu0 %v2187
        %v2226 = vpop.xlane.xlu0 %2225
        %2227 = vmax.xlane.f32.xlu0 %v2189
        %v2228 = vpop.xlane.xlu0 %2227
        %2229 = vmax.xlane.f32.xlu0 %v2192
        %v2230 = vpop.xlane.xlu0 %2229
        %2231 = vmax.xlane.f32.xlu0 %v2194
        %v2232 = vpop.xlane.xlu0 %2231
        %2233 = vmax.xlane.f32.xlu0 %v2197
        %v2234 = vpop.xlane.xlu0 %2233
        %2235 = vmax.xlane.f32.xlu0 %v2199
        %v2236 = vpop.xlane.xlu0 %2235
        %2237 = vmax.xlane.f32.xlu0 %v2202
        %v2238 = vpop.xlane.xlu0 %2237
        %2239 = vmax.xlane.f32.xlu0 %v2204
        %v2240 = vpop.xlane.xlu0 %2239
        %2241 = vmax.xlane.f32.xlu0 %v2207
        %v2242 = vpop.xlane.xlu0 %2241
        %2243 = vmax.xlane.f32.xlu0 %v2209
        %v2244 = vpop.xlane.xlu0 %2243
        %2245 = vmax.xlane.f32.xlu0 %v2212
        %v2246 = vpop.xlane.xlu0 %2245
        %2247 = vmax.xlane.f32.xlu0 %v2214
        %v2248 = vpop.xlane.xlu0 %2247
        %2249 = vmax.xlane.f32.xlu0 %v2217
        %v2250 = vpop.xlane.xlu0 %2249
        %2251 = vmax.xlane.f32.xlu0 %v2219
        %v2252 = vpop.xlane.xlu0 %2251
        %v2253 = vsub.f32 %v2182, %v2222
        %v2254 = vsub.f32 %v2184, %v2224
        %v2255 = vsub.f32 %v2187, %v2226
        %v2256 = vsub.f32 %v2189, %v2228
        %v2257 = vsub.f32 %v2192, %v2230
        %v2258 = vsub.f32 %v2194, %v2232
        %v2259 = vsub.f32 %v2197, %v2234
        %v2260 = vsub.f32 %v2199, %v2236
        %v2261 = vsub.f32 %v2202, %v2238
        %v2262 = vsub.f32 %v2204, %v2240
        %v2263 = vsub.f32 %v2207, %v2242
        %v2264 = vsub.f32 %v2209, %v2244
        %v2265 = vsub.f32 %v2212, %v2246
        %v2266 = vsub.f32 %v2214, %v2248
        %v2267 = vsub.f32 %v2217, %v2250
        %v2268 = vsub.f32 %v2219, %v2252
        %v2269 = vmul.f32 %v2253, 1.442695
        %v2270 = vpow.pop %v2269
        %v2271 = vmul.f32 %v2254, 1.442695
        %v2272 = vpow.pop %v2271
        %v2273 = vmul.f32 %v2255, 1.442695
        %v2274 = vpow.pop %v2273
        %v2275 = vmul.f32 %v2256, 1.442695
        %v2276 = vpow.pop %v2275
        %v2277 = vmul.f32 %v2257, 1.442695
        %v2278 = vpow.pop %v2277
        %v2279 = vmul.f32 %v2258, 1.442695
        %v2280 = vpow.pop %v2279
        %v2281 = vmul.f32 %v2259, 1.442695
        %v2282 = vpow.pop %v2281
        %v2283 = vmul.f32 %v2260, 1.442695
        %v2284 = vpow.pop %v2283
        %v2285 = vmul.f32 %v2261, 1.442695
        %v2286 = vpow.pop %v2285
        %v2287 = vmul.f32 %v2262, 1.442695
        %v2288 = vpow.pop %v2287
        %v2289 = vmul.f32 %v2263, 1.442695
        %v2290 = vpow.pop %v2289
        %v2291 = vmul.f32 %v2264, 1.442695
        %v2292 = vpow.pop %v2291
        %v2293 = vmul.f32 %v2265, 1.442695
        %v2294 = vpow.pop %v2293
        %v2295 = vmul.f32 %v2266, 1.442695
        %v2296 = vpow.pop %v2295
        %v2297 = vmul.f32 %v2267, 1.442695
        %v2298 = vpow.pop %v2297
        %v2299 = vmul.f32 %v2268, 1.442695
        %v2300 = vpow.pop %v2299
        %2301 = vadd.xlane.f32.xlu0 %v2270
        %v2302 = vpop.xlane.xlu0 %2301
        %2303 = vadd.xlane.f32.xlu0 %v2272
        %v2304 = vpop.xlane.xlu0 %2303
        %2305 = vadd.xlane.f32.xlu0 %v2274
        %v2306 = vpop.xlane.xlu0 %2305
        %2307 = vadd.xlane.f32.xlu0 %v2276
        %v2308 = vpop.xlane.xlu0 %2307
        %2309 = vadd.xlane.f32.xlu0 %v2278
        %v2310 = vpop.xlane.xlu0 %2309
        %2311 = vadd.xlane.f32.xlu0 %v2280
        %v2312 = vpop.xlane.xlu0 %2311
        %2313 = vadd.xlane.f32.xlu0 %v2282
        %v2314 = vpop.xlane.xlu0 %2313
        %2315 = vadd.xlane.f32.xlu0 %v2284
        %v2316 = vpop.xlane.xlu0 %2315
        %2317 = vadd.xlane.f32.xlu0 %v2286
        %v2318 = vpop.xlane.xlu0 %2317
        %2319 = vadd.xlane.f32.xlu0 %v2288
        %v2320 = vpop.xlane.xlu0 %2319
        %2321 = vadd.xlane.f32.xlu0 %v2290
        %v2322 = vpop.xlane.xlu0 %2321
        %2323 = vadd.xlane.f32.xlu0 %v2292
        %v2324 = vpop.xlane.xlu0 %2323
        %2325 = vadd.xlane.f32.xlu0 %v2294
        %v2326 = vpop.xlane.xlu0 %2325
        %2327 = vadd.xlane.f32.xlu0 %v2296
        %v2328 = vpop.xlane.xlu0 %2327
        %2329 = vadd.xlane.f32.xlu0 %v2298
        %v2330 = vpop.xlane.xlu0 %2329
        %2331 = vadd.xlane.f32.xlu0 %v2300
        %v2332 = vpop.xlane.xlu0 %2331
        %v2333 = vpack.c.bf16 %v2272, %v2270
        %v2334 = vpack.c.bf16 %v2276, %v2274
        %v2335 = vpack.c.bf16 %v2280, %v2278
        %v2336 = vpack.c.bf16 %v2284, %v2282
        %v2337 = vpack.c.bf16 %v2288, %v2286
        %v2338 = vpack.c.bf16 %v2292, %v2290
        %v2339 = vpack.c.bf16 %v2296, %v2294
        %v2340 = vpack.c.bf16 %v2300, %v2298
        %2341 = vrot.lane.b32.xlu0 %v1697, 64
        %v2342 = vpop.permute.xlu0 %2341
        %2343 = vrot.lane.b32.xlu0 %v1698, 64
        %v2344 = vpop.permute.xlu0 %2343
        %2345 = vrot.lane.b32.xlu0 %v1699, 64
        %v2346 = vpop.permute.xlu0 %2345
        %2347 = vrot.lane.b32.xlu0 %v1700, 64
        %v2348 = vpop.permute.xlu0 %2347
        %2349 = vrot.lane.b32.xlu0 %v1701, 64
        %v2350 = vpop.permute.xlu0 %2349
        %2351 = vrot.lane.b32.xlu0 %v1702, 64
        %v2352 = vpop.permute.xlu0 %2351
        %2353 = vrot.lane.b32.xlu0 %v1703, 64
        %v2354 = vpop.permute.xlu0 %2353
        %2355 = vrot.lane.b32.xlu0 %v1704, 64
        %v2356 = vpop.permute.xlu0 %2355
        %2365 = vmatpush.bf16.msra.mxu0 %v2356
        %2366 = vmatpush.bf16.msra.mxu0 %v2354
        %2367 = vmatpush.bf16.msra.mxu0 %v2352
        %2368 = vmatpush.bf16.msra.mxu0 %v2350
        %2369 = vmatpush.bf16.msra.mxu0 %v2348
        %2370 = vmatpush.bf16.msra.mxu0 %v2346
        %2371 = vmatpush.bf16.msra.mxu0 %v2344
        %2372 = vmatpush.bf16.msra.mxu0 %v2342
        %2373 = vmatmul.bf16.gmra.mxu0 %v2333
        %v2374 = vpop.f32.mrf.mxu0
        %v2375 = vadd.f32 0.0, %v2374
        %v2376 = vpop.f32.mrf.mxu0
        %v2377 = vadd.f32 0.0, %v2376
        %2378 = vmatmul.bf16.gmra.mxu0 %v2334
        %v2379 = vpop.f32.mrf.mxu0
        %v2380 = vadd.f32 0.0, %v2379
        %v2381 = vpop.f32.mrf.mxu0
        %v2382 = vadd.f32 0.0, %v2381
        %2383 = vmatmul.bf16.gmra.mxu0 %v2335
        %v2384 = vpop.f32.mrf.mxu0
        %v2385 = vadd.f32 0.0, %v2384
        %v2386 = vpop.f32.mrf.mxu0
        %v2387 = vadd.f32 0.0, %v2386
        %2388 = vmatmul.bf16.gmra.mxu0 %v2336
        %v2389 = vpop.f32.mrf.mxu0
        %v2390 = vadd.f32 0.0, %v2389
        %v2391 = vpop.f32.mrf.mxu0
        %v2392 = vadd.f32 0.0, %v2391
        %2393 = vmatmul.bf16.gmra.mxu0 %v2337
        %v2394 = vpop.f32.mrf.mxu0
        %v2395 = vadd.f32 0.0, %v2394
        %v2396 = vpop.f32.mrf.mxu0
        %v2397 = vadd.f32 0.0, %v2396
        %2398 = vmatmul.bf16.gmra.mxu0 %v2338
        %v2399 = vpop.f32.mrf.mxu0
        %v2400 = vadd.f32 0.0, %v2399
        %v2401 = vpop.f32.mrf.mxu0
        %v2402 = vadd.f32 0.0, %v2401
        %2403 = vmatmul.bf16.gmra.mxu0 %v2339
        %v2404 = vpop.f32.mrf.mxu0
        %v2405 = vadd.f32 0.0, %v2404
        %v2406 = vpop.f32.mrf.mxu0
        %v2407 = vadd.f32 0.0, %v2406
        %2408 = vmatmul.bf16.gmra.mxu0 %v2340
        %v2409 = vpop.f32.mrf.mxu0
        %v2410 = vadd.f32 0.0, %v2409
        %v2411 = vpop.f32.mrf.mxu0
        %v2412 = vadd.f32 0.0, %v2411
        %2413 = vdwg.mxu0
        %v2414 = vrcp.pop %v2302
        %v2415 = vrcp.pop %v2304
        %v2416 = vrcp.pop %v2306
        %v2417 = vrcp.pop %v2308
        %v2418 = vrcp.pop %v2310
        %v2419 = vrcp.pop %v2312
        %v2420 = vrcp.pop %v2314
        %v2421 = vrcp.pop %v2316
        %v2422 = vrcp.pop %v2318
        %v2423 = vrcp.pop %v2320
        %v2424 = vrcp.pop %v2322
        %v2425 = vrcp.pop %v2324
        %v2426 = vrcp.pop %v2326
        %v2427 = vrcp.pop %v2328
        %v2428 = vrcp.pop %v2330
        %v2429 = vrcp.pop %v2332
        %v2430 = vmul.f32 %v2375, %v2414
        %v2431 = vmul.f32 %v2377, %v2415
        %v2432 = vmul.f32 %v2380, %v2416
        %v2433 = vmul.f32 %v2382, %v2417
        %v2434 = vmul.f32 %v2385, %v2418
        %v2435 = vmul.f32 %v2387, %v2419
        %v2436 = vmul.f32 %v2390, %v2420
        %v2437 = vmul.f32 %v2392, %v2421
        %v2438 = vmul.f32 %v2395, %v2422
        %v2439 = vmul.f32 %v2397, %v2423
        %v2440 = vmul.f32 %v2400, %v2424
        %v2441 = vmul.f32 %v2402, %v2425
        %v2442 = vmul.f32 %v2405, %v2426
        %v2443 = vmul.f32 %v2407, %v2427
        %v2444 = vmul.f32 %v2410, %v2428
        %v2445 = vmul.f32 %v2412, %v2429
        %2446 = vrot.lane.b32.xlu0 %v1451, 32
        %v2447 = vpop.permute.xlu0 %2446
        %2448 = vrot.lane.b32.xlu0 %v1452, 32
        %v2449 = vpop.permute.xlu0 %2448
        %2450 = vrot.lane.b32.xlu0 %v1453, 32
        %v2451 = vpop.permute.xlu0 %2450
        %2452 = vrot.lane.b32.xlu0 %v1454, 32
        %v2453 = vpop.permute.xlu0 %2452
        %2454 = vrot.lane.b32.xlu0 %v1455, 32
        %v2455 = vpop.permute.xlu0 %2454
        %2456 = vrot.lane.b32.xlu0 %v1456, 32
        %v2457 = vpop.permute.xlu0 %2456
        %2458 = vrot.lane.b32.xlu0 %v1457, 32
        %v2459 = vpop.permute.xlu0 %2458
        %2460 = vrot.lane.b32.xlu0 %v1458, 32
        %v2461 = vpop.permute.xlu0 %2460
        %v2466 = vunpack.c.l.b16 %v1383
        %v2467 = vunpack.c.l.b16 %v1384
        %v2468 = vunpack.c.l.b16 %v1385
        %v2469 = vunpack.c.l.b16 %v1386
        %v2470 = vpack.c.b16 %v2467, %v2466
        %v2471 = vpack.c.b16 %v2469, %v2468
        %v2475 = vsel %vm1471, %v2447, 0
        %v2478 = vsel %vm1471, %v2449, 0
        %v2481 = vsel %vm1471, %v2451, 0
        %v2484 = vsel %vm1471, %v2453, 0
        %v2487 = vsel %vm1471, %v2455, 0
        %v2490 = vsel %vm1471, %v2457, 0
        %v2493 = vsel %vm1471, %v2459, 0
        %v2496 = vsel %vm1471, %v2461, 0
        %2498 = vmatpush.bf16.msra.mxu0 0
        %2499 = vmatpush.bf16.msra.mxu0 0
        %2500 = vmatpush.bf16.msra.mxu0 0
        %2501 = vmatpush.bf16.msra.mxu0 0
        %2502 = vmatpush.bf16.msra.mxu0 0
        %2503 = vmatpush.bf16.msra.mxu0 0
        %2504 = vmatpush.bf16.msra.mxu0 %v2471
        %2505 = vmatpush.bf16.msra.mxu0 %v2470
        %2506 = vmatmul.bf16.gmra.mxu0 %v2475
        %v2507 = vpop.f32.mrf.mxu0
        %v2508 = vadd.f32 %v1403, %v2507
        %v2509 = vpop.f32.mrf.mxu0
        %v2510 = vadd.f32 %v1404, %v2509
        %2511 = vmatmul.bf16.gmra.mxu0 %v2478
        %v2512 = vpop.f32.mrf.mxu0
        %v2513 = vadd.f32 %v1405, %v2512
        %v2514 = vpop.f32.mrf.mxu0
        %v2515 = vadd.f32 %v1406, %v2514
        %2516 = vmatmul.bf16.gmra.mxu0 %v2481
        %v2517 = vpop.f32.mrf.mxu0
        %v2518 = vadd.f32 %v1407, %v2517
        %v2519 = vpop.f32.mrf.mxu0
        %v2520 = vadd.f32 %v1408, %v2519
        %2521 = vmatmul.bf16.gmra.mxu0 %v2484
        %v2522 = vpop.f32.mrf.mxu0
        %v2523 = vadd.f32 %v1409, %v2522
        %v2524 = vpop.f32.mrf.mxu0
        %v2525 = vadd.f32 %v1410, %v2524
        %2526 = vmatmul.bf16.gmra.mxu0 %v2487
        %v2527 = vpop.f32.mrf.mxu0
        %v2528 = vadd.f32 %v1411, %v2527
        %v2529 = vpop.f32.mrf.mxu0
        %v2530 = vadd.f32 %v1412, %v2529
        %2531 = vmatmul.bf16.gmra.mxu0 %v2490
        %v2532 = vpop.f32.mrf.mxu0
        %v2533 = vadd.f32 %v1413, %v2532
        %v2534 = vpop.f32.mrf.mxu0
        %v2535 = vadd.f32 %v1414, %v2534
        %2536 = vmatmul.bf16.gmra.mxu0 %v2493
        %v2537 = vpop.f32.mrf.mxu0
        %v2538 = vadd.f32 %v1415, %v2537
        %v2539 = vpop.f32.mrf.mxu0
        %v2540 = vadd.f32 %v1416, %v2539
        %2541 = vmatmul.bf16.gmra.mxu0 %v2496
        %v2542 = vpop.f32.mrf.mxu0
        %v2543 = vadd.f32 %v1417, %v2542
        %v2544 = vpop.f32.mrf.mxu0
        %v2545 = vadd.f32 %v1418, %v2544
        %2546 = vdwg.mxu0
        %2547 = vmax.xlane.f32.xlu0 %v2508
        %v2548 = vpop.xlane.xlu0 %2547
        %2549 = vmax.xlane.f32.xlu0 %v2510
        %v2550 = vpop.xlane.xlu0 %2549
        %2551 = vmax.xlane.f32.xlu0 %v2513
        %v2552 = vpop.xlane.xlu0 %2551
        %2553 = vmax.xlane.f32.xlu0 %v2515
        %v2554 = vpop.xlane.xlu0 %2553
        %2555 = vmax.xlane.f32.xlu0 %v2518
        %v2556 = vpop.xlane.xlu0 %2555
        %2557 = vmax.xlane.f32.xlu0 %v2520
        %v2558 = vpop.xlane.xlu0 %2557
        %2559 = vmax.xlane.f32.xlu0 %v2523
        %v2560 = vpop.xlane.xlu0 %2559
        %2561 = vmax.xlane.f32.xlu0 %v2525
        %v2562 = vpop.xlane.xlu0 %2561
        %2563 = vmax.xlane.f32.xlu0 %v2528
        %v2564 = vpop.xlane.xlu0 %2563
        %2565 = vmax.xlane.f32.xlu0 %v2530
        %v2566 = vpop.xlane.xlu0 %2565
        %2567 = vmax.xlane.f32.xlu0 %v2533
        %v2568 = vpop.xlane.xlu0 %2567
        %2569 = vmax.xlane.f32.xlu0 %v2535
        %v2570 = vpop.xlane.xlu0 %2569
        %2571 = vmax.xlane.f32.xlu0 %v2538
        %v2572 = vpop.xlane.xlu0 %2571
        %2573 = vmax.xlane.f32.xlu0 %v2540
        %v2574 = vpop.xlane.xlu0 %2573
        %2575 = vmax.xlane.f32.xlu0 %v2543
        %v2576 = vpop.xlane.xlu0 %2575
        %2577 = vmax.xlane.f32.xlu0 %v2545
        %v2578 = vpop.xlane.xlu0 %2577
        %v2579 = vsub.f32 %v2508, %v2548
        %v2580 = vsub.f32 %v2510, %v2550
        %v2581 = vsub.f32 %v2513, %v2552
        %v2582 = vsub.f32 %v2515, %v2554
        %v2583 = vsub.f32 %v2518, %v2556
        %v2584 = vsub.f32 %v2520, %v2558
        %v2585 = vsub.f32 %v2523, %v2560
        %v2586 = vsub.f32 %v2525, %v2562
        %v2587 = vsub.f32 %v2528, %v2564
        %v2588 = vsub.f32 %v2530, %v2566
        %v2589 = vsub.f32 %v2533, %v2568
        %v2590 = vsub.f32 %v2535, %v2570
        %v2591 = vsub.f32 %v2538, %v2572
        %v2592 = vsub.f32 %v2540, %v2574
        %v2593 = vsub.f32 %v2543, %v2576
        %v2594 = vsub.f32 %v2545, %v2578
        %v2595 = vmul.f32 %v2579, 1.442695
        %v2596 = vpow.pop %v2595
        %v2597 = vmul.f32 %v2580, 1.442695
        %v2598 = vpow.pop %v2597
        %v2599 = vmul.f32 %v2581, 1.442695
        %v2600 = vpow.pop %v2599
        %v2601 = vmul.f32 %v2582, 1.442695
        %v2602 = vpow.pop %v2601
        %v2603 = vmul.f32 %v2583, 1.442695
        %v2604 = vpow.pop %v2603
        %v2605 = vmul.f32 %v2584, 1.442695
        %v2606 = vpow.pop %v2605
        %v2607 = vmul.f32 %v2585, 1.442695
        %v2608 = vpow.pop %v2607
        %v2609 = vmul.f32 %v2586, 1.442695
        %v2610 = vpow.pop %v2609
        %v2611 = vmul.f32 %v2587, 1.442695
        %v2612 = vpow.pop %v2611
        %v2613 = vmul.f32 %v2588, 1.442695
        %v2614 = vpow.pop %v2613
        %v2615 = vmul.f32 %v2589, 1.442695
        %v2616 = vpow.pop %v2615
        %v2617 = vmul.f32 %v2590, 1.442695
        %v2618 = vpow.pop %v2617
        %v2619 = vmul.f32 %v2591, 1.442695
        %v2620 = vpow.pop %v2619
        %v2621 = vmul.f32 %v2592, 1.442695
        %v2622 = vpow.pop %v2621
        %v2623 = vmul.f32 %v2593, 1.442695
        %v2624 = vpow.pop %v2623
        %v2625 = vmul.f32 %v2594, 1.442695
        %v2626 = vpow.pop %v2625
        %2627 = vadd.xlane.f32.xlu0 %v2596
        %v2628 = vpop.xlane.xlu0 %2627
        %2629 = vadd.xlane.f32.xlu0 %v2598
        %v2630 = vpop.xlane.xlu0 %2629
        %2631 = vadd.xlane.f32.xlu0 %v2600
        %v2632 = vpop.xlane.xlu0 %2631
        %2633 = vadd.xlane.f32.xlu0 %v2602
        %v2634 = vpop.xlane.xlu0 %2633
        %2635 = vadd.xlane.f32.xlu0 %v2604
        %v2636 = vpop.xlane.xlu0 %2635
        %2637 = vadd.xlane.f32.xlu0 %v2606
        %v2638 = vpop.xlane.xlu0 %2637
        %2639 = vadd.xlane.f32.xlu0 %v2608
        %v2640 = vpop.xlane.xlu0 %2639
        %2641 = vadd.xlane.f32.xlu0 %v2610
        %v2642 = vpop.xlane.xlu0 %2641
        %2643 = vadd.xlane.f32.xlu0 %v2612
        %v2644 = vpop.xlane.xlu0 %2643
        %2645 = vadd.xlane.f32.xlu0 %v2614
        %v2646 = vpop.xlane.xlu0 %2645
        %2647 = vadd.xlane.f32.xlu0 %v2616
        %v2648 = vpop.xlane.xlu0 %2647
        %2649 = vadd.xlane.f32.xlu0 %v2618
        %v2650 = vpop.xlane.xlu0 %2649
        %2651 = vadd.xlane.f32.xlu0 %v2620
        %v2652 = vpop.xlane.xlu0 %2651
        %2653 = vadd.xlane.f32.xlu0 %v2622
        %v2654 = vpop.xlane.xlu0 %2653
        %2655 = vadd.xlane.f32.xlu0 %v2624
        %v2656 = vpop.xlane.xlu0 %2655
        %2657 = vadd.xlane.f32.xlu0 %v2626
        %v2658 = vpop.xlane.xlu0 %2657
        %v2659 = vpack.c.bf16 %v2598, %v2596
        %v2660 = vpack.c.bf16 %v2602, %v2600
        %v2661 = vpack.c.bf16 %v2606, %v2604
        %v2662 = vpack.c.bf16 %v2610, %v2608
        %v2663 = vpack.c.bf16 %v2614, %v2612
        %v2664 = vpack.c.bf16 %v2618, %v2616
        %v2665 = vpack.c.bf16 %v2622, %v2620
        %v2666 = vpack.c.bf16 %v2626, %v2624
        %2667 = vrot.lane.b32.xlu0 %v1697, 32
        %v2668 = vpop.permute.xlu0 %2667
        %2669 = vrot.lane.b32.xlu0 %v1698, 32
        %v2670 = vpop.permute.xlu0 %2669
        %2671 = vrot.lane.b32.xlu0 %v1699, 32
        %v2672 = vpop.permute.xlu0 %2671
        %2673 = vrot.lane.b32.xlu0 %v1700, 32
        %v2674 = vpop.permute.xlu0 %2673
        %2675 = vrot.lane.b32.xlu0 %v1701, 32
        %v2676 = vpop.permute.xlu0 %2675
        %2677 = vrot.lane.b32.xlu0 %v1702, 32
        %v2678 = vpop.permute.xlu0 %2677
        %2679 = vrot.lane.b32.xlu0 %v1703, 32
        %v2680 = vpop.permute.xlu0 %2679
        %2681 = vrot.lane.b32.xlu0 %v1704, 32
        %v2682 = vpop.permute.xlu0 %2681
        %2691 = vmatpush.bf16.msra.mxu0 %v2682
        %2692 = vmatpush.bf16.msra.mxu0 %v2680
        %2693 = vmatpush.bf16.msra.mxu0 %v2678
        %2694 = vmatpush.bf16.msra.mxu0 %v2676
        %2695 = vmatpush.bf16.msra.mxu0 %v2674
        %2696 = vmatpush.bf16.msra.mxu0 %v2672
        %2697 = vmatpush.bf16.msra.mxu0 %v2670
        %2698 = vmatpush.bf16.msra.mxu0 %v2668
        %2699 = vmatmul.bf16.gmra.mxu0 %v2659
        %v2700 = vpop.f32.mrf.mxu0
        %v2701 = vadd.f32 0.0, %v2700
        %v2702 = vpop.f32.mrf.mxu0
        %v2703 = vadd.f32 0.0, %v2702
        %2704 = vmatmul.bf16.gmra.mxu0 %v2660
        %v2705 = vpop.f32.mrf.mxu0
        %v2706 = vadd.f32 0.0, %v2705
        %v2707 = vpop.f32.mrf.mxu0
        %v2708 = vadd.f32 0.0, %v2707
        %2709 = vmatmul.bf16.gmra.mxu0 %v2661
        %v2710 = vpop.f32.mrf.mxu0
        %v2711 = vadd.f32 0.0, %v2710
        %v2712 = vpop.f32.mrf.mxu0
        %v2713 = vadd.f32 0.0, %v2712
        %2714 = vmatmul.bf16.gmra.mxu0 %v2662
        %v2715 = vpop.f32.mrf.mxu0
        %v2716 = vadd.f32 0.0, %v2715
        %v2717 = vpop.f32.mrf.mxu0
        %v2718 = vadd.f32 0.0, %v2717
        %2719 = vmatmul.bf16.gmra.mxu0 %v2663
        %v2720 = vpop.f32.mrf.mxu0
        %v2721 = vadd.f32 0.0, %v2720
        %v2722 = vpop.f32.mrf.mxu0
        %v2723 = vadd.f32 0.0, %v2722
        %2724 = vmatmul.bf16.gmra.mxu0 %v2664
        %v2725 = vpop.f32.mrf.mxu0
        %v2726 = vadd.f32 0.0, %v2725
        %v2727 = vpop.f32.mrf.mxu0
        %v2728 = vadd.f32 0.0, %v2727
        %2729 = vmatmul.bf16.gmra.mxu0 %v2665
        %v2730 = vpop.f32.mrf.mxu0
        %v2731 = vadd.f32 0.0, %v2730
        %v2732 = vpop.f32.mrf.mxu0
        %v2733 = vadd.f32 0.0, %v2732
        %2734 = vmatmul.bf16.gmra.mxu0 %v2666
        %v2735 = vpop.f32.mrf.mxu0
        %v2736 = vadd.f32 0.0, %v2735
        %v2737 = vpop.f32.mrf.mxu0
        %v2738 = vadd.f32 0.0, %v2737
        %2739 = vdwg.mxu0
        %v2740 = vrcp.pop %v2628
        %v2741 = vrcp.pop %v2630
        %v2742 = vrcp.pop %v2632
        %v2743 = vrcp.pop %v2634
        %v2744 = vrcp.pop %v2636
        %v2745 = vrcp.pop %v2638
        %v2746 = vrcp.pop %v2640
        %v2747 = vrcp.pop %v2642
        %v2748 = vrcp.pop %v2644
        %v2749 = vrcp.pop %v2646
        %v2750 = vrcp.pop %v2648
        %v2751 = vrcp.pop %v2650
        %v2752 = vrcp.pop %v2652
        %v2753 = vrcp.pop %v2654
        %v2754 = vrcp.pop %v2656
        %v2755 = vrcp.pop %v2658
        %v2756 = vmul.f32 %v2701, %v2740
        %v2757 = vmul.f32 %v2703, %v2741
        %v2758 = vmul.f32 %v2706, %v2742
        %v2759 = vmul.f32 %v2708, %v2743
        %v2760 = vmul.f32 %v2711, %v2744
        %v2761 = vmul.f32 %v2713, %v2745
        %v2762 = vmul.f32 %v2716, %v2746
        %v2763 = vmul.f32 %v2718, %v2747
        %v2764 = vmul.f32 %v2721, %v2748
        %v2765 = vmul.f32 %v2723, %v2749
        %v2766 = vmul.f32 %v2726, %v2750
        %v2767 = vmul.f32 %v2728, %v2751
        %v2768 = vmul.f32 %v2731, %v2752
        %v2769 = vmul.f32 %v2733, %v2753
        %v2770 = vmul.f32 %v2736, %v2754
        %v2771 = vmul.f32 %v2738, %v2755
        %2788 = vrot.lane.b32.xlu0 %v2104, 32
        %v2789 = vpop.permute.xlu0 %2788
        %2790 = vrot.lane.b32.xlu0 %v2105, 32
        %v2791 = vpop.permute.xlu0 %2790
        %2792 = vrot.lane.b32.xlu0 %v2106, 32
        %v2793 = vpop.permute.xlu0 %2792
        %2794 = vrot.lane.b32.xlu0 %v2107, 32
        %v2795 = vpop.permute.xlu0 %2794
        %2796 = vrot.lane.b32.xlu0 %v2108, 32
        %v2797 = vpop.permute.xlu0 %2796
        %2798 = vrot.lane.b32.xlu0 %v2109, 32
        %v2799 = vpop.permute.xlu0 %2798
        %2800 = vrot.lane.b32.xlu0 %v2110, 32
        %v2801 = vpop.permute.xlu0 %2800
        %2802 = vrot.lane.b32.xlu0 %v2111, 32
        %v2803 = vpop.permute.xlu0 %2802
        %2804 = vrot.lane.b32.xlu0 %v2112, 32
        %v2805 = vpop.permute.xlu0 %2804
        %2806 = vrot.lane.b32.xlu0 %v2113, 32
        %v2807 = vpop.permute.xlu0 %2806
        %2808 = vrot.lane.b32.xlu0 %v2114, 32
        %v2809 = vpop.permute.xlu0 %2808
        %2810 = vrot.lane.b32.xlu0 %v2115, 32
        %v2811 = vpop.permute.xlu0 %2810
        %2812 = vrot.lane.b32.xlu0 %v2116, 32
        %v2813 = vpop.permute.xlu0 %2812
        %2814 = vrot.lane.b32.xlu0 %v2117, 32
        %v2815 = vpop.permute.xlu0 %2814
        %2816 = vrot.lane.b32.xlu0 %v2118, 32
        %v2817 = vpop.permute.xlu0 %2816
        %2818 = vrot.lane.b32.xlu0 %v2119, 32
        %v2819 = vpop.permute.xlu0 %2818
        %2852 = vrot.lane.b32.xlu0 %v2430, 64
        %v2853 = vpop.permute.xlu0 %2852
        %2854 = vrot.lane.b32.xlu0 %v2431, 64
        %v2855 = vpop.permute.xlu0 %2854
        %2856 = vrot.lane.b32.xlu0 %v2432, 64
        %v2857 = vpop.permute.xlu0 %2856
        %2858 = vrot.lane.b32.xlu0 %v2433, 64
        %v2859 = vpop.permute.xlu0 %2858
        %2860 = vrot.lane.b32.xlu0 %v2434, 64
        %v2861 = vpop.permute.xlu0 %2860
        %2862 = vrot.lane.b32.xlu0 %v2435, 64
        %v2863 = vpop.permute.xlu0 %2862
        %2864 = vrot.lane.b32.xlu0 %v2436, 64
        %v2865 = vpop.permute.xlu0 %2864
        %2866 = vrot.lane.b32.xlu0 %v2437, 64
        %v2867 = vpop.permute.xlu0 %2866
        %2868 = vrot.lane.b32.xlu0 %v2438, 64
        %v2869 = vpop.permute.xlu0 %2868
        %2870 = vrot.lane.b32.xlu0 %v2439, 64
        %v2871 = vpop.permute.xlu0 %2870
        %2872 = vrot.lane.b32.xlu0 %v2440, 64
        %v2873 = vpop.permute.xlu0 %2872
        %2874 = vrot.lane.b32.xlu0 %v2441, 64
        %v2875 = vpop.permute.xlu0 %2874
        %2876 = vrot.lane.b32.xlu0 %v2442, 64
        %v2877 = vpop.permute.xlu0 %2876
        %2878 = vrot.lane.b32.xlu0 %v2443, 64
        %v2879 = vpop.permute.xlu0 %2878
        %2880 = vrot.lane.b32.xlu0 %v2444, 64
        %v2881 = vpop.permute.xlu0 %2880
        %2882 = vrot.lane.b32.xlu0 %v2445, 64
        %v2883 = vpop.permute.xlu0 %2882
        %2916 = vrot.lane.b32.xlu0 %v2756, 96
        %v2917 = vpop.permute.xlu0 %2916
        %2918 = vrot.lane.b32.xlu0 %v2757, 96
        %v2919 = vpop.permute.xlu0 %2918
        %2920 = vrot.lane.b32.xlu0 %v2758, 96
        %v2921 = vpop.permute.xlu0 %2920
        %2922 = vrot.lane.b32.xlu0 %v2759, 96
        %v2923 = vpop.permute.xlu0 %2922
        %2924 = vrot.lane.b32.xlu0 %v2760, 96
        %v2925 = vpop.permute.xlu0 %2924
        %2926 = vrot.lane.b32.xlu0 %v2761, 96
        %v2927 = vpop.permute.xlu0 %2926
        %2928 = vrot.lane.b32.xlu0 %v2762, 96
        %v2929 = vpop.permute.xlu0 %2928
        %2930 = vrot.lane.b32.xlu0 %v2763, 96
        %v2931 = vpop.permute.xlu0 %2930
        %2932 = vrot.lane.b32.xlu0 %v2764, 96
        %v2933 = vpop.permute.xlu0 %2932
        %2934 = vrot.lane.b32.xlu0 %v2765, 96
        %v2935 = vpop.permute.xlu0 %2934
        %2936 = vrot.lane.b32.xlu0 %v2766, 96
        %v2937 = vpop.permute.xlu0 %2936
        %2938 = vrot.lane.b32.xlu0 %v2767, 96
        %v2939 = vpop.permute.xlu0 %2938
        %2940 = vrot.lane.b32.xlu0 %v2768, 96
        %v2941 = vpop.permute.xlu0 %2940
        %2942 = vrot.lane.b32.xlu0 %v2769, 96
        %v2943 = vpop.permute.xlu0 %2942
        %2944 = vrot.lane.b32.xlu0 %v2770, 96
        %v2945 = vpop.permute.xlu0 %2944
        %2946 = vrot.lane.b32.xlu0 %v2771, 96
        %v2947 = vpop.permute.xlu0 %2946
        %v2964 = vsel %vm1471, %v1778, %v2789
        %v2965 = vsel %vm1471, %v1779, %v2791
        %v2966 = vsel %vm1471, %v1780, %v2793
        %v2967 = vsel %vm1471, %v1781, %v2795
        %v2968 = vsel %vm1471, %v1782, %v2797
        %v2969 = vsel %vm1471, %v1783, %v2799
        %v2970 = vsel %vm1471, %v1784, %v2801
        %v2971 = vsel %vm1471, %v1785, %v2803
        %v2972 = vsel %vm1471, %v1786, %v2805
        %v2973 = vsel %vm1471, %v1787, %v2807
        %v2974 = vsel %vm1471, %v1788, %v2809
        %v2975 = vsel %vm1471, %v1789, %v2811
        %v2976 = vsel %vm1471, %v1790, %v2813
        %v2977 = vsel %vm1471, %v1791, %v2815
        %v2978 = vsel %vm1471, %v1792, %v2817
        %v2979 = vsel %vm1471, %v1793, %v2819
        %vm2980 = vcmask 523264
        %v2981 = vsel %vm2980, %v2964, %v2853
        %v2982 = vsel %vm2980, %v2965, %v2855
        %v2983 = vsel %vm2980, %v2966, %v2857
        %v2984 = vsel %vm2980, %v2967, %v2859
        %v2985 = vsel %vm2980, %v2968, %v2861
        %v2986 = vsel %vm2980, %v2969, %v2863
        %v2987 = vsel %vm2980, %v2970, %v2865
        %v2988 = vsel %vm2980, %v2971, %v2867
        %v2989 = vsel %vm2980, %v2972, %v2869
        %v2990 = vsel %vm2980, %v2973, %v2871
        %v2991 = vsel %vm2980, %v2974, %v2873
        %v2992 = vsel %vm2980, %v2975, %v2875
        %v2993 = vsel %vm2980, %v2976, %v2877
        %v2994 = vsel %vm2980, %v2977, %v2879
        %v2995 = vsel %vm2980, %v2978, %v2881
        %v2996 = vsel %vm2980, %v2979, %v2883
        %vm2997 = vcmask 785408
        %v2998 = vsel %vm2997, %v2981, %v2917
        %v2999 = vsel %vm2997, %v2982, %v2919
        %v3000 = vsel %vm2997, %v2983, %v2921
        %v3001 = vsel %vm2997, %v2984, %v2923
        %v3002 = vsel %vm2997, %v2985, %v2925
        %v3003 = vsel %vm2997, %v2986, %v2927
        %v3004 = vsel %vm2997, %v2987, %v2929
        %v3005 = vsel %vm2997, %v2988, %v2931
        %v3006 = vsel %vm2997, %v2989, %v2933
        %v3007 = vsel %vm2997, %v2990, %v2935
        %v3008 = vsel %vm2997, %v2991, %v2937
        %v3009 = vsel %vm2997, %v2992, %v2939
        %v3010 = vsel %vm2997, %v2993, %v2941
        %v3011 = vsel %vm2997, %v2994, %v2943
        %v3012 = vsel %vm2997, %v2995, %v2945
        %v3013 = vsel %vm2997, %v2996, %v2947
        %v3014 = vpack.c.bf16 %v2999, %v2998
        %v3015 = vpack.c.bf16 %v3001, %v3000
        %v3016 = vpack.c.bf16 %v3003, %v3002
        %v3017 = vpack.c.bf16 %v3005, %v3004
        %v3018 = vpack.c.bf16 %v3007, %v3006
        %v3019 = vpack.c.bf16 %v3009, %v3008
        %v3020 = vpack.c.bf16 %v3011, %v3010
        %v3021 = vpack.c.bf16 %v3013, %v3012
        %v3022 = vld [vmem:[#allocation10] sm:$0xf]
        %v3023 = vld [vmem:[#allocation10 + $0x4] sm:$0xf]
        %v3024 = vld [vmem:[#allocation10 + $0x8] sm:$0xf]
        %v3025 = vld [vmem:[#allocation10 + $0xc] sm:$0xf]
        %v3026 = vld [vmem:[#allocation10 + $0x10] sm:$0xf]
        %v3027 = vld [vmem:[#allocation10 + $0x14] sm:$0xf]
        %v3028 = vld [vmem:[#allocation10 + $0x18] sm:$0xf]
        %v3029 = vld [vmem:[#allocation10 + $0x1c] sm:$0xf]
        %v3030 = vld [vmem:[#allocation10 + $0x20] sm:$0xf]
        %v3031 = vld [vmem:[#allocation10 + $0x24] sm:$0xf]
        %v3032 = vld [vmem:[#allocation10 + $0x28] sm:$0xf]
        %v3033 = vld [vmem:[#allocation10 + $0x2c] sm:$0xf]
        %v3034 = vld [vmem:[#allocation10 + $0x30] sm:$0xf]
        %v3035 = vld [vmem:[#allocation10 + $0x34] sm:$0xf]
        %v3036 = vld [vmem:[#allocation10 + $0x38] sm:$0xf]
        %v3037 = vld [vmem:[#allocation10 + $0x3c] sm:$0xf]
        %v3038 = vld [vmem:[%s5] sm:$0x1]
        %v3040 = vperm.slane %v3038, 0
        %v3058 = vunpack.c.l.b16 %v3022
        %v3059 = vunpack.c.l.b16 %v3023
        %v3060 = vunpack.c.l.b16 %v3024
        %v3061 = vunpack.c.l.b16 %v3025
        %v3062 = vunpack.c.l.b16 %v3026
        %v3063 = vunpack.c.l.b16 %v3027
        %v3064 = vunpack.c.l.b16 %v3028
        %v3065 = vunpack.c.l.b16 %v3029
        %v3066 = vunpack.c.l.b16 %v3030
        %v3067 = vunpack.c.l.b16 %v3031
        %v3068 = vunpack.c.l.b16 %v3032
        %v3069 = vunpack.c.l.b16 %v3033
        %v3070 = vunpack.c.l.b16 %v3034
        %v3071 = vunpack.c.l.b16 %v3035
        %v3072 = vunpack.c.l.b16 %v3036
        %v3073 = vunpack.c.l.b16 %v3037
        %v3074 = vpack.c.b16 %v3059, %v3058
        %v3075 = vpack.c.b16 %v3061, %v3060
        %v3076 = vpack.c.b16 %v3063, %v3062
        %v3077 = vpack.c.b16 %v3065, %v3064
        %v3078 = vpack.c.b16 %v3067, %v3066
        %v3079 = vpack.c.b16 %v3069, %v3068
        %v3080 = vpack.c.b16 %v3071, %v3070
        %v3081 = vpack.c.b16 %v3073, %v3072
        %3090 = vmatpush.bf16.msra.mxu0 %v3081
        %3091 = vmatpush.bf16.msra.mxu0 %v3080
        %3092 = vmatpush.bf16.msra.mxu0 %v3079
        %3093 = vmatpush.bf16.msra.mxu0 %v3078
        %3094 = vmatpush.bf16.msra.mxu0 %v3077
        %3095 = vmatpush.bf16.msra.mxu0 %v3076
        %3096 = vmatpush.bf16.msra.mxu0 %v3075
        %3097 = vmatpush.bf16.msra.mxu0 %v3074
        %3098 = vmatmul.bf16.gmra.mxu0 %v3014
        %v3099 = vpop.f32.mrf.mxu0
        %v3100 = vadd.f32 %v3040, %v3099
        %v3101 = vpop.f32.mrf.mxu0
        %v3102 = vadd.f32 %v3040, %v3101
        %3103 = vmatmul.bf16.gmra.mxu0 %v3015
        %v3104 = vpop.f32.mrf.mxu0
        %v3105 = vadd.f32 %v3040, %v3104
        %v3106 = vpop.f32.mrf.mxu0
        %v3107 = vadd.f32 %v3040, %v3106
        %3108 = vmatmul.bf16.gmra.mxu0 %v3016
        %v3109 = vpop.f32.mrf.mxu0
        %v3110 = vadd.f32 %v3040, %v3109
        %v3111 = vpop.f32.mrf.mxu0
        %v3112 = vadd.f32 %v3040, %v3111
        %3113 = vmatmul.bf16.gmra.mxu0 %v3017
        %v3114 = vpop.f32.mrf.mxu0
        %v3115 = vadd.f32 %v3040, %v3114
        %v3116 = vpop.f32.mrf.mxu0
        %v3117 = vadd.f32 %v3040, %v3116
        %3118 = vmatmul.bf16.gmra.mxu0 %v3018
        %v3119 = vpop.f32.mrf.mxu0
        %v3120 = vadd.f32 %v3040, %v3119
        %v3121 = vpop.f32.mrf.mxu0
        %v3122 = vadd.f32 %v3040, %v3121
        %3123 = vmatmul.bf16.gmra.mxu0 %v3019
        %v3124 = vpop.f32.mrf.mxu0
        %v3125 = vadd.f32 %v3040, %v3124
        %v3126 = vpop.f32.mrf.mxu0
        %v3127 = vadd.f32 %v3040, %v3126
        %3128 = vmatmul.bf16.gmra.mxu0 %v3020
        %v3129 = vpop.f32.mrf.mxu0
        %v3130 = vadd.f32 %v3040, %v3129
        %v3131 = vpop.f32.mrf.mxu0
        %v3132 = vadd.f32 %v3040, %v3131
        %3133 = vmatmul.bf16.gmra.mxu0 %v3021
        %v3134 = vpop.f32.mrf.mxu0
        %v3135 = vadd.f32 %v3040, %v3134
        %v3136 = vpop.f32.mrf.mxu0
        %v3137 = vadd.f32 %v3040, %v3136
        %3138 = vdwg.mxu0
        %v3139 = vadd.f32 %v601, %v3100
        %v3140 = vadd.f32 %v602, %v3102
        %v3141 = vadd.f32 %v603, %v3105
        %v3142 = vadd.f32 %v604, %v3107
        %v3143 = vadd.f32 %v605, %v3110
        %v3144 = vadd.f32 %v606, %v3112
        %v3145 = vadd.f32 %v607, %v3115
        %v3146 = vadd.f32 %v608, %v3117
        %v3147 = vadd.f32 %v609, %v3120
        %v3148 = vadd.f32 %v610, %v3122
        %v3149 = vadd.f32 %v611, %v3125
        %v3150 = vadd.f32 %v612, %v3127
        %v3151 = vadd.f32 %v613, %v3130
        %v3152 = vadd.f32 %v614, %v3132
        %v3153 = vadd.f32 %v615, %v3135
        %v3154 = vadd.f32 %v616, %v3137
        %v3155 = vld [vmem:[#allocation11] sm:$0x1]
        %v3156 = vld [vmem:[%s9] sm:$0x1]
        %3157 = vadd.xlane.f32.xlu0 %v3139
        %v3158 = vpop.xlane.xlu0 %3157
        %3159 = vadd.xlane.f32.xlu0 %v3140
        %v3160 = vpop.xlane.xlu0 %3159
        %3161 = vadd.xlane.f32.xlu0 %v3141
        %v3162 = vpop.xlane.xlu0 %3161
        %3163 = vadd.xlane.f32.xlu0 %v3142
        %v3164 = vpop.xlane.xlu0 %3163
        %3165 = vadd.xlane.f32.xlu0 %v3143
        %v3166 = vpop.xlane.xlu0 %3165
        %3167 = vadd.xlane.f32.xlu0 %v3144
        %v3168 = vpop.xlane.xlu0 %3167
        %3169 = vadd.xlane.f32.xlu0 %v3145
        %v3170 = vpop.xlane.xlu0 %3169
        %3171 = vadd.xlane.f32.xlu0 %v3146
        %v3172 = vpop.xlane.xlu0 %3171
        %3173 = vadd.xlane.f32.xlu0 %v3147
        %v3174 = vpop.xlane.xlu0 %3173
        %3175 = vadd.xlane.f32.xlu0 %v3148
        %v3176 = vpop.xlane.xlu0 %3175
        %3177 = vadd.xlane.f32.xlu0 %v3149
        %v3178 = vpop.xlane.xlu0 %3177
        %3179 = vadd.xlane.f32.xlu0 %v3150
        %v3180 = vpop.xlane.xlu0 %3179
        %3181 = vadd.xlane.f32.xlu0 %v3151
        %v3182 = vpop.xlane.xlu0 %3181
        %3183 = vadd.xlane.f32.xlu0 %v3152
        %v3184 = vpop.xlane.xlu0 %3183
        %3185 = vadd.xlane.f32.xlu0 %v3153
        %v3186 = vpop.xlane.xlu0 %3185
        %3187 = vadd.xlane.f32.xlu0 %v3154
        %v3188 = vpop.xlane.xlu0 %3187
        %v3189 = vmul.f32 %v3158, %v657
        %v3190 = vmul.f32 %v3160, %v657
        %v3191 = vmul.f32 %v3162, %v657
        %v3192 = vmul.f32 %v3164, %v657
        %v3193 = vmul.f32 %v3166, %v657
        %v3194 = vmul.f32 %v3168, %v657
        %v3195 = vmul.f32 %v3170, %v657
        %v3196 = vmul.f32 %v3172, %v657
        %v3197 = vmul.f32 %v3174, %v657
        %v3198 = vmul.f32 %v3176, %v657
        %v3199 = vmul.f32 %v3178, %v657
        %v3200 = vmul.f32 %v3180, %v657
        %v3201 = vmul.f32 %v3182, %v657
        %v3202 = vmul.f32 %v3184, %v657
        %v3203 = vmul.f32 %v3186, %v657
        %v3204 = vmul.f32 %v3188, %v657
        %v3205 = vsub.f32 %v3139, %v3189
        %v3206 = vsub.f32 %v3140, %v3190
        %v3207 = vsub.f32 %v3141, %v3191
        %v3208 = vsub.f32 %v3142, %v3192
        %v3209 = vsub.f32 %v3143, %v3193
        %v3210 = vsub.f32 %v3144, %v3194
        %v3211 = vsub.f32 %v3145, %v3195
        %v3212 = vsub.f32 %v3146, %v3196
        %v3213 = vsub.f32 %v3147, %v3197
        %v3214 = vsub.f32 %v3148, %v3198
        %v3215 = vsub.f32 %v3149, %v3199
        %v3216 = vsub.f32 %v3150, %v3200
        %v3217 = vsub.f32 %v3151, %v3201
        %v3218 = vsub.f32 %v3152, %v3202
        %v3219 = vsub.f32 %v3153, %v3203
        %v3220 = vsub.f32 %v3154, %v3204
        %v3221 = vmul.f32 %v3205, %v3205
        %v3222 = vmul.f32 %v3206, %v3206
        %v3223 = vmul.f32 %v3207, %v3207
        %v3224 = vmul.f32 %v3208, %v3208
        %v3225 = vmul.f32 %v3209, %v3209
        %v3226 = vmul.f32 %v3210, %v3210
        %v3227 = vmul.f32 %v3211, %v3211
        %v3228 = vmul.f32 %v3212, %v3212
        %v3229 = vmul.f32 %v3213, %v3213
        %v3230 = vmul.f32 %v3214, %v3214
        %v3231 = vmul.f32 %v3215, %v3215
        %v3232 = vmul.f32 %v3216, %v3216
        %v3233 = vmul.f32 %v3217, %v3217
        %v3234 = vmul.f32 %v3218, %v3218
        %v3235 = vmul.f32 %v3219, %v3219
        %v3236 = vmul.f32 %v3220, %v3220
        %3237 = vadd.xlane.f32.xlu0 %v3221
        %v3238 = vpop.xlane.xlu0 %3237
        %3239 = vadd.xlane.f32.xlu0 %v3222
        %v3240 = vpop.xlane.xlu0 %3239
        %3241 = vadd.xlane.f32.xlu0 %v3223
        %v3242 = vpop.xlane.xlu0 %3241
        %3243 = vadd.xlane.f32.xlu0 %v3224
        %v3244 = vpop.xlane.xlu0 %3243
        %3245 = vadd.xlane.f32.xlu0 %v3225
        %v3246 = vpop.xlane.xlu0 %3245
        %3247 = vadd.xlane.f32.xlu0 %v3226
        %v3248 = vpop.xlane.xlu0 %3247
        %3249 = vadd.xlane.f32.xlu0 %v3227
        %v3250 = vpop.xlane.xlu0 %3249
        %3251 = vadd.xlane.f32.xlu0 %v3228
        %v3252 = vpop.xlane.xlu0 %3251
        %3253 = vadd.xlane.f32.xlu0 %v3229
        %v3254 = vpop.xlane.xlu0 %3253
        %3255 = vadd.xlane.f32.xlu0 %v3230
        %v3256 = vpop.xlane.xlu0 %3255
        %3257 = vadd.xlane.f32.xlu0 %v3231
        %v3258 = vpop.xlane.xlu0 %3257
        %3259 = vadd.xlane.f32.xlu0 %v3232
        %v3260 = vpop.xlane.xlu0 %3259
        %3261 = vadd.xlane.f32.xlu0 %v3233
        %v3262 = vpop.xlane.xlu0 %3261
        %3263 = vadd.xlane.f32.xlu0 %v3234
        %v3264 = vpop.xlane.xlu0 %3263
        %3265 = vadd.xlane.f32.xlu0 %v3235
        %v3266 = vpop.xlane.xlu0 %3265
        %3267 = vadd.xlane.f32.xlu0 %v3236
        %v3268 = vpop.xlane.xlu0 %3267
        %v3269 = vmul.f32 %v3238, %v657
        %v3270 = vmul.f32 %v3240, %v657
        %v3271 = vmul.f32 %v3242, %v657
        %v3272 = vmul.f32 %v3244, %v657
        %v3273 = vmul.f32 %v3246, %v657
        %v3274 = vmul.f32 %v3248, %v657
        %v3275 = vmul.f32 %v3250, %v657
        %v3276 = vmul.f32 %v3252, %v657
        %v3277 = vmul.f32 %v3254, %v657
        %v3278 = vmul.f32 %v3256, %v657
        %v3279 = vmul.f32 %v3258, %v657
        %v3280 = vmul.f32 %v3260, %v657
        %v3281 = vmul.f32 %v3262, %v657
        %v3282 = vmul.f32 %v3264, %v657
        %v3283 = vmul.f32 %v3266, %v657
        %v3284 = vmul.f32 %v3268, %v657
        %v3285 = vadd.f32 %v3269, 1e-05
        %v3286 = vadd.f32 %v3270, 1e-05
        %v3287 = vadd.f32 %v3271, 1e-05
        %v3288 = vadd.f32 %v3272, 1e-05
        %v3289 = vadd.f32 %v3273, 1e-05
        %v3290 = vadd.f32 %v3274, 1e-05
        %v3291 = vadd.f32 %v3275, 1e-05
        %v3292 = vadd.f32 %v3276, 1e-05
        %v3293 = vadd.f32 %v3277, 1e-05
        %v3294 = vadd.f32 %v3278, 1e-05
        %v3295 = vadd.f32 %v3279, 1e-05
        %v3296 = vadd.f32 %v3280, 1e-05
        %v3297 = vadd.f32 %v3281, 1e-05
        %v3298 = vadd.f32 %v3282, 1e-05
        %v3299 = vadd.f32 %v3283, 1e-05
        %v3300 = vadd.f32 %v3284, 1e-05
        %v3301 = vrsqrt.pop %v3285
        %v3302 = vmul.f32 %v3301, %v3285
        %v3303 = vmul.f32 %v3302, %v3301
        %v3304 = vmul.f32 0.5, %v3303
        %v3305 = vsub.f32 1.5, %v3304
        %v3306 = vmul.f32 %v3301, %v3305
        %vm3307 = vweird.f32 %v3285
        %vm3308 = vweird.f32 %v3301
        %vm3309 = vmor %vm3307, %vm3308
        %v3310 = vsel %vm3309, %v3301, %v3306
        %v3311 = vrsqrt.pop %v3286
        %v3312 = vmul.f32 %v3311, %v3286
        %v3313 = vmul.f32 %v3312, %v3311
        %v3314 = vmul.f32 0.5, %v3313
        %v3315 = vsub.f32 1.5, %v3314
        %v3316 = vmul.f32 %v3311, %v3315
        %vm3317 = vweird.f32 %v3286
        %vm3318 = vweird.f32 %v3311
        %vm3319 = vmor %vm3317, %vm3318
        %v3320 = vsel %vm3319, %v3311, %v3316
        %v3321 = vrsqrt.pop %v3287
        %v3322 = vmul.f32 %v3321, %v3287
        %v3323 = vmul.f32 %v3322, %v3321
        %v3324 = vmul.f32 0.5, %v3323
        %v3325 = vsub.f32 1.5, %v3324
        %v3326 = vmul.f32 %v3321, %v3325
        %vm3327 = vweird.f32 %v3287
        %vm3328 = vweird.f32 %v3321
        %vm3329 = vmor %vm3327, %vm3328
        %v3330 = vsel %vm3329, %v3321, %v3326
        %v3331 = vrsqrt.pop %v3288
        %v3332 = vmul.f32 %v3331, %v3288
        %v3333 = vmul.f32 %v3332, %v3331
        %v3334 = vmul.f32 0.5, %v3333
        %v3335 = vsub.f32 1.5, %v3334
        %v3336 = vmul.f32 %v3331, %v3335
        %vm3337 = vweird.f32 %v3288
        %vm3338 = vweird.f32 %v3331
        %vm3339 = vmor %vm3337, %vm3338
        %v3340 = vsel %vm3339, %v3331, %v3336
        %v3341 = vrsqrt.pop %v3289
        %v3342 = vmul.f32 %v3341, %v3289
        %v3343 = vmul.f32 %v3342, %v3341
        %v3344 = vmul.f32 0.5, %v3343
        %v3345 = vsub.f32 1.5, %v3344
        %v3346 = vmul.f32 %v3341, %v3345
        %vm3347 = vweird.f32 %v3289
        %vm3348 = vweird.f32 %v3341
        %vm3349 = vmor %vm3347, %vm3348
        %v3350 = vsel %vm3349, %v3341, %v3346
        %v3351 = vrsqrt.pop %v3290
        %v3352 = vmul.f32 %v3351, %v3290
        %v3353 = vmul.f32 %v3352, %v3351
        %v3354 = vmul.f32 0.5, %v3353
        %v3355 = vsub.f32 1.5, %v3354
        %v3356 = vmul.f32 %v3351, %v3355
        %vm3357 = vweird.f32 %v3290
        %vm3358 = vweird.f32 %v3351
        %vm3359 = vmor %vm3357, %vm3358
        %v3360 = vsel %vm3359, %v3351, %v3356
        %v3361 = vrsqrt.pop %v3291
        %v3362 = vmul.f32 %v3361, %v3291
        %v3363 = vmul.f32 %v3362, %v3361
        %v3364 = vmul.f32 0.5, %v3363
        %v3365 = vsub.f32 1.5, %v3364
        %v3366 = vmul.f32 %v3361, %v3365
        %vm3367 = vweird.f32 %v3291
        %vm3368 = vweird.f32 %v3361
        %vm3369 = vmor %vm3367, %vm3368
        %v3370 = vsel %vm3369, %v3361, %v3366
        %v3371 = vrsqrt.pop %v3292
        %v3372 = vmul.f32 %v3371, %v3292
        %v3373 = vmul.f32 %v3372, %v3371
        %v3374 = vmul.f32 0.5, %v3373
        %v3375 = vsub.f32 1.5, %v3374
        %v3376 = vmul.f32 %v3371, %v3375
        %vm3377 = vweird.f32 %v3292
        %vm3378 = vweird.f32 %v3371
        %vm3379 = vmor %vm3377, %vm3378
        %v3380 = vsel %vm3379, %v3371, %v3376
        %v3381 = vrsqrt.pop %v3293
        %v3382 = vmul.f32 %v3381, %v3293
        %v3383 = vmul.f32 %v3382, %v3381
        %v3384 = vmul.f32 0.5, %v3383
        %v3385 = vsub.f32 1.5, %v3384
        %v3386 = vmul.f32 %v3381, %v3385
        %vm3387 = vweird.f32 %v3293
        %vm3388 = vweird.f32 %v3381
        %vm3389 = vmor %vm3387, %vm3388
        %v3390 = vsel %vm3389, %v3381, %v3386
        %v3391 = vrsqrt.pop %v3294
        %v3392 = vmul.f32 %v3391, %v3294
        %v3393 = vmul.f32 %v3392, %v3391
        %v3394 = vmul.f32 0.5, %v3393
        %v3395 = vsub.f32 1.5, %v3394
        %v3396 = vmul.f32 %v3391, %v3395
        %vm3397 = vweird.f32 %v3294
        %vm3398 = vweird.f32 %v3391
        %vm3399 = vmor %vm3397, %vm3398
        %v3400 = vsel %vm3399, %v3391, %v3396
        %v3401 = vrsqrt.pop %v3295
        %v3402 = vmul.f32 %v3401, %v3295
        %v3403 = vmul.f32 %v3402, %v3401
        %v3404 = vmul.f32 0.5, %v3403
        %v3405 = vsub.f32 1.5, %v3404
        %v3406 = vmul.f32 %v3401, %v3405
        %vm3407 = vweird.f32 %v3295
        %vm3408 = vweird.f32 %v3401
        %vm3409 = vmor %vm3407, %vm3408
        %v3410 = vsel %vm3409, %v3401, %v3406
        %v3411 = vrsqrt.pop %v3296
        %v3412 = vmul.f32 %v3411, %v3296
        %v3413 = vmul.f32 %v3412, %v3411
        %v3414 = vmul.f32 0.5, %v3413
        %v3415 = vsub.f32 1.5, %v3414
        %v3416 = vmul.f32 %v3411, %v3415
        %vm3417 = vweird.f32 %v3296
        %vm3418 = vweird.f32 %v3411
        %vm3419 = vmor %vm3417, %vm3418
        %v3420 = vsel %vm3419, %v3411, %v3416
        %v3421 = vrsqrt.pop %v3297
        %v3422 = vmul.f32 %v3421, %v3297
        %v3423 = vmul.f32 %v3422, %v3421
        %v3424 = vmul.f32 0.5, %v3423
        %v3425 = vsub.f32 1.5, %v3424
        %v3426 = vmul.f32 %v3421, %v3425
        %vm3427 = vweird.f32 %v3297
        %vm3428 = vweird.f32 %v3421
        %vm3429 = vmor %vm3427, %vm3428
        %v3430 = vsel %vm3429, %v3421, %v3426
        %v3431 = vrsqrt.pop %v3298
        %v3432 = vmul.f32 %v3431, %v3298
        %v3433 = vmul.f32 %v3432, %v3431
        %v3434 = vmul.f32 0.5, %v3433
        %v3435 = vsub.f32 1.5, %v3434
        %v3436 = vmul.f32 %v3431, %v3435
        %vm3437 = vweird.f32 %v3298
        %vm3438 = vweird.f32 %v3431
        %vm3439 = vmor %vm3437, %vm3438
        %v3440 = vsel %vm3439, %v3431, %v3436
        %v3441 = vrsqrt.pop %v3299
        %v3442 = vmul.f32 %v3441, %v3299
        %v3443 = vmul.f32 %v3442, %v3441
        %v3444 = vmul.f32 0.5, %v3443
        %v3445 = vsub.f32 1.5, %v3444
        %v3446 = vmul.f32 %v3441, %v3445
        %vm3447 = vweird.f32 %v3299
        %vm3448 = vweird.f32 %v3441
        %vm3449 = vmor %vm3447, %vm3448
        %v3450 = vsel %vm3449, %v3441, %v3446
        %v3451 = vrsqrt.pop %v3300
        %v3452 = vmul.f32 %v3451, %v3300
        %v3453 = vmul.f32 %v3452, %v3451
        %v3454 = vmul.f32 0.5, %v3453
        %v3455 = vsub.f32 1.5, %v3454
        %v3456 = vmul.f32 %v3451, %v3455
        %vm3457 = vweird.f32 %v3300
        %vm3458 = vweird.f32 %v3451
        %vm3459 = vmor %vm3457, %vm3458
        %v3460 = vsel %vm3459, %v3451, %v3456
        %v3461 = vmul.f32 %v3205, %v3310
        %v3462 = vmul.f32 %v3206, %v3320
        %v3463 = vmul.f32 %v3207, %v3330
        %v3464 = vmul.f32 %v3208, %v3340
        %v3465 = vmul.f32 %v3209, %v3350
        %v3466 = vmul.f32 %v3210, %v3360
        %v3467 = vmul.f32 %v3211, %v3370
        %v3468 = vmul.f32 %v3212, %v3380
        %v3469 = vmul.f32 %v3213, %v3390
        %v3470 = vmul.f32 %v3214, %v3400
        %v3471 = vmul.f32 %v3215, %v3410
        %v3472 = vmul.f32 %v3216, %v3420
        %v3473 = vmul.f32 %v3217, %v3430
        %v3474 = vmul.f32 %v3218, %v3440
        %v3475 = vmul.f32 %v3219, %v3450
        %v3476 = vmul.f32 %v3220, %v3460
        %v3478 = vperm.slane %v3155, 0
        %v3480 = vmul.f32 %v3461, %v3478
        %v3481 = vmul.f32 %v3462, %v3478
        %v3482 = vmul.f32 %v3463, %v3478
        %v3483 = vmul.f32 %v3464, %v3478
        %v3484 = vmul.f32 %v3465, %v3478
        %v3485 = vmul.f32 %v3466, %v3478
        %v3486 = vmul.f32 %v3467, %v3478
        %v3487 = vmul.f32 %v3468, %v3478
        %v3488 = vmul.f32 %v3469, %v3478
        %v3489 = vmul.f32 %v3470, %v3478
        %v3490 = vmul.f32 %v3471, %v3478
        %v3491 = vmul.f32 %v3472, %v3478
        %v3492 = vmul.f32 %v3473, %v3478
        %v3493 = vmul.f32 %v3474, %v3478
        %v3494 = vmul.f32 %v3475, %v3478
        %v3495 = vmul.f32 %v3476, %v3478
        %v3497 = vperm.slane %v3156, 0
        %v3499 = vadd.f32 %v3480, %v3497
        %v3500 = vadd.f32 %v3481, %v3497
        %v3501 = vadd.f32 %v3482, %v3497
        %v3502 = vadd.f32 %v3483, %v3497
        %v3503 = vadd.f32 %v3484, %v3497
        %v3504 = vadd.f32 %v3485, %v3497
        %v3505 = vadd.f32 %v3486, %v3497
        %v3506 = vadd.f32 %v3487, %v3497
        %v3507 = vadd.f32 %v3488, %v3497
        %v3508 = vadd.f32 %v3489, %v3497
        %v3509 = vadd.f32 %v3490, %v3497
        %v3510 = vadd.f32 %v3491, %v3497
        %v3511 = vadd.f32 %v3492, %v3497
        %v3512 = vadd.f32 %v3493, %v3497
        %v3513 = vadd.f32 %v3494, %v3497
        %v3514 = vadd.f32 %v3495, %v3497
        %v3515 = vpack.c.bf16 %v3500, %v3499
        %v3516 = vpack.c.bf16 %v3502, %v3501
        %v3517 = vpack.c.bf16 %v3504, %v3503
        %v3518 = vpack.c.bf16 %v3506, %v3505
        %v3519 = vpack.c.bf16 %v3508, %v3507
        %v3520 = vpack.c.bf16 %v3510, %v3509
        %v3521 = vpack.c.bf16 %v3512, %v3511
        %v3522 = vpack.c.bf16 %v3514, %v3513
        %v3523 = vld [vmem:[#allocation13] sm:$0xff]
        %v3524 = vld [vmem:[#allocation13 + $0x8] sm:$0xff]
        %v3525 = vld [vmem:[#allocation13 + $0x10] sm:$0xff]
        %v3526 = vld [vmem:[#allocation13 + $0x18] sm:$0xff]
        %v3527 = vld [vmem:[#allocation13 + $0x20] sm:$0xff]
        %v3528 = vld [vmem:[#allocation13 + $0x28] sm:$0xff]
        %v3529 = vld [vmem:[#allocation13 + $0x30] sm:$0xff]
        %v3530 = vld [vmem:[#allocation13 + $0x38] sm:$0xff]
        %v3531 = vld [vmem:[#allocation13 + $0x40] sm:$0xff]
        %v3532 = vld [vmem:[#allocation13 + $0x48] sm:$0xff]
        %v3533 = vld [vmem:[#allocation13 + $0x50] sm:$0xff]
        %v3534 = vld [vmem:[#allocation13 + $0x58] sm:$0xff]
        %v3535 = vld [vmem:[#allocation13 + $0x60] sm:$0xff]
        %v3536 = vld [vmem:[#allocation13 + $0x68] sm:$0xff]
        %v3537 = vld [vmem:[#allocation13 + $0x70] sm:$0xff]
        %v3538 = vld [vmem:[#allocation13 + $0x78] sm:$0xff]
        %v3539 = vld [vmem:[#allocation13 + $0x80] sm:$0xff]
        %v3540 = vld [vmem:[#allocation13 + $0x88] sm:$0xff]
        %v3541 = vld [vmem:[#allocation13 + $0x90] sm:$0xff]
        %v3542 = vld [vmem:[#allocation13 + $0x98] sm:$0xff]
        %v3543 = vld [vmem:[#allocation13 + $0xa0] sm:$0xff]
        %v3544 = vld [vmem:[#allocation13 + $0xa8] sm:$0xff]
        %v3545 = vld [vmem:[#allocation13 + $0xb0] sm:$0xff]
        %v3546 = vld [vmem:[#allocation13 + $0xb8] sm:$0xff]
        %v3547 = vld [vmem:[#allocation13 + $0xc0] sm:$0xff]
        %v3548 = vld [vmem:[#allocation13 + $0xc8] sm:$0xff]
        %v3549 = vld [vmem:[#allocation13 + $0xd0] sm:$0xff]
        %v3550 = vld [vmem:[#allocation13 + $0xd8] sm:$0xff]
        %v3551 = vld [vmem:[#allocation13 + $0xe0] sm:$0xff]
        %v3552 = vld [vmem:[#allocation13 + $0xe8] sm:$0xff]
        %v3553 = vld [vmem:[#allocation13 + $0xf0] sm:$0xff]
        %v3554 = vld [vmem:[#allocation13 + $0xf8] sm:$0xff]
        %v3555 = vld [vmem:[%s11] sm:$0xf]
        %v3557 = vperm.slane %v3555, 0
        %v3558 = vperm.slane %v3555, 1
        %v3559 = vperm.slane %v3555, 2
        %v3560 = vperm.slane %v3555, 3
        %v3597 = vunpack.c.l.b16 %v3523
        %v3598 = vunpack.c.h.b16 %v3523
        %v3599 = vunpack.c.l.b16 %v3524
        %v3600 = vunpack.c.h.b16 %v3524
        %v3601 = vunpack.c.l.b16 %v3525
        %v3602 = vunpack.c.h.b16 %v3525
        %v3603 = vunpack.c.l.b16 %v3526
        %v3604 = vunpack.c.h.b16 %v3526
        %v3605 = vunpack.c.l.b16 %v3527
        %v3606 = vunpack.c.h.b16 %v3527
        %v3607 = vunpack.c.l.b16 %v3528
        %v3608 = vunpack.c.h.b16 %v3528
        %v3609 = vunpack.c.l.b16 %v3529
        %v3610 = vunpack.c.h.b16 %v3529
        %v3611 = vunpack.c.l.b16 %v3530
        %v3612 = vunpack.c.h.b16 %v3530
        %v3613 = vunpack.c.l.b16 %v3531
        %v3614 = vunpack.c.h.b16 %v3531
        %v3615 = vunpack.c.l.b16 %v3532
        %v3616 = vunpack.c.h.b16 %v3532
        %v3617 = vunpack.c.l.b16 %v3533
        %v3618 = vunpack.c.h.b16 %v3533
        %v3619 = vunpack.c.l.b16 %v3534
        %v3620 = vunpack.c.h.b16 %v3534
        %v3621 = vunpack.c.l.b16 %v3535
        %v3622 = vunpack.c.h.b16 %v3535
        %v3623 = vunpack.c.l.b16 %v3536
        %v3624 = vunpack.c.h.b16 %v3536
        %v3625 = vunpack.c.l.b16 %v3537
        %v3626 = vunpack.c.h.b16 %v3537
        %v3627 = vunpack.c.l.b16 %v3538
        %v3628 = vunpack.c.h.b16 %v3538
        %v3629 = vunpack.c.l.b16 %v3539
        %v3630 = vunpack.c.h.b16 %v3539
        %v3631 = vunpack.c.l.b16 %v3540
        %v3632 = vunpack.c.h.b16 %v3540
        %v3633 = vunpack.c.l.b16 %v3541
        %v3634 = vunpack.c.h.b16 %v3541
        %v3635 = vunpack.c.l.b16 %v3542
        %v3636 = vunpack.c.h.b16 %v3542
        %v3637 = vunpack.c.l.b16 %v3543
        %v3638 = vunpack.c.h.b16 %v3543
        %v3639 = vunpack.c.l.b16 %v3544
        %v3640 = vunpack.c.h.b16 %v3544
        %v3641 = vunpack.c.l.b16 %v3545
        %v3642 = vunpack.c.h.b16 %v3545
        %v3643 = vunpack.c.l.b16 %v3546
        %v3644 = vunpack.c.h.b16 %v3546
        %v3645 = vunpack.c.l.b16 %v3547
        %v3646 = vunpack.c.h.b16 %v3547
        %v3647 = vunpack.c.l.b16 %v3548
        %v3648 = vunpack.c.h.b16 %v3548
        %v3649 = vunpack.c.l.b16 %v3549
        %v3650 = vunpack.c.h.b16 %v3549
        %v3651 = vunpack.c.l.b16 %v3550
        %v3652 = vunpack.c.h.b16 %v3550
        %v3653 = vunpack.c.l.b16 %v3551
        %v3654 = vunpack.c.h.b16 %v3551
        %v3655 = vunpack.c.l.b16 %v3552
        %v3656 = vunpack.c.h.b16 %v3552
        %v3657 = vunpack.c.l.b16 %v3553
        %v3658 = vunpack.c.h.b16 %v3553
        %v3659 = vunpack.c.l.b16 %v3554
        %v3660 = vunpack.c.h.b16 %v3554
        %v3661 = vpack.c.b16 %v3601, %v3597
        %v3662 = vpack.c.b16 %v3602, %v3598
        %v3663 = vpack.c.b16 %v3603, %v3599
        %v3664 = vpack.c.b16 %v3604, %v3600
        %v3665 = vpack.c.b16 %v3609, %v3605
        %v3666 = vpack.c.b16 %v3610, %v3606
        %v3667 = vpack.c.b16 %v3611, %v3607
        %v3668 = vpack.c.b16 %v3612, %v3608
        %v3669 = vpack.c.b16 %v3617, %v3613
        %v3670 = vpack.c.b16 %v3618, %v3614
        %v3671 = vpack.c.b16 %v3619, %v3615
        %v3672 = vpack.c.b16 %v3620, %v3616
        %v3673 = vpack.c.b16 %v3625, %v3621
        %v3674 = vpack.c.b16 %v3626, %v3622
        %v3675 = vpack.c.b16 %v3627, %v3623
        %v3676 = vpack.c.b16 %v3628, %v3624
        %v3677 = vpack.c.b16 %v3633, %v3629
        %v3678 = vpack.c.b16 %v3634, %v3630
        %v3679 = vpack.c.b16 %v3635, %v3631
        %v3680 = vpack.c.b16 %v3636, %v3632
        %v3681 = vpack.c.b16 %v3641, %v3637
        %v3682 = vpack.c.b16 %v3642, %v3638
        %v3683 = vpack.c.b16 %v3643, %v3639
        %v3684 = vpack.c.b16 %v3644, %v3640
        %v3685 = vpack.c.b16 %v3649, %v3645
        %v3686 = vpack.c.b16 %v3650, %v3646
        %v3687 = vpack.c.b16 %v3651, %v3647
        %v3688 = vpack.c.b16 %v3652, %v3648
        %v3689 = vpack.c.b16 %v3657, %v3653
        %v3690 = vpack.c.b16 %v3658, %v3654
        %v3691 = vpack.c.b16 %v3659, %v3655
        %v3692 = vpack.c.b16 %v3660, %v3656
        %3725 = vmatpush.bf16.msra.mxu0 %v3689
        %3726 = vmatpush.bf16.msra.mxu0 %v3685
        %3727 = vmatpush.bf16.msra.mxu0 %v3681
        %3728 = vmatpush.bf16.msra.mxu0 %v3677
        %3729 = vmatpush.bf16.msra.mxu0 %v3673
        %3730 = vmatpush.bf16.msra.mxu0 %v3669
        %3731 = vmatpush.bf16.msra.mxu0 %v3665
        %3732 = vmatpush.bf16.msra.mxu0 %v3661
        %3733 = vmatmul.bf16.gmra.mxu0 %v3515
        %v3734 = vpop.f32.mrf.mxu0
        %v3735 = vadd.f32 %v3557, %v3734
        %v3736 = vpop.f32.mrf.mxu0
        %v3737 = vadd.f32 %v3557, %v3736
        %3738 = vmatmul.bf16.gmra.mxu0 %v3516
        %v3739 = vpop.f32.mrf.mxu0
        %v3740 = vadd.f32 %v3557, %v3739
        %v3741 = vpop.f32.mrf.mxu0
        %v3742 = vadd.f32 %v3557, %v3741
        %3743 = vmatmul.bf16.gmra.mxu0 %v3517
        %v3744 = vpop.f32.mrf.mxu0
        %v3745 = vadd.f32 %v3557, %v3744
        %v3746 = vpop.f32.mrf.mxu0
        %v3747 = vadd.f32 %v3557, %v3746
        %3748 = vmatmul.bf16.gmra.mxu0 %v3518
        %v3749 = vpop.f32.mrf.mxu0
        %v3750 = vadd.f32 %v3557, %v3749
        %v3751 = vpop.f32.mrf.mxu0
        %v3752 = vadd.f32 %v3557, %v3751
        %3753 = vmatmul.bf16.gmra.mxu0 %v3519
        %v3754 = vpop.f32.mrf.mxu0
        %v3755 = vadd.f32 %v3557, %v3754
        %v3756 = vpop.f32.mrf.mxu0
        %v3757 = vadd.f32 %v3557, %v3756
        %3758 = vmatmul.bf16.gmra.mxu0 %v3520
        %v3759 = vpop.f32.mrf.mxu0
        %v3760 = vadd.f32 %v3557, %v3759
        %v3761 = vpop.f32.mrf.mxu0
        %v3762 = vadd.f32 %v3557, %v3761
        %3763 = vmatmul.bf16.gmra.mxu0 %v3521
        %v3764 = vpop.f32.mrf.mxu0
        %v3765 = vadd.f32 %v3557, %v3764
        %v3766 = vpop.f32.mrf.mxu0
        %v3767 = vadd.f32 %v3557, %v3766
        %3768 = vmatmul.bf16.gmra.mxu0 %v3522
        %v3769 = vpop.f32.mrf.mxu0
        %v3770 = vadd.f32 %v3557, %v3769
        %v3771 = vpop.f32.mrf.mxu0
        %v3772 = vadd.f32 %v3557, %v3771
        %3773 = vdwg.mxu0
        %3774 = vmatpush.bf16.msra.mxu0 %v3690
        %3775 = vmatpush.bf16.msra.mxu0 %v3686
        %3776 = vmatpush.bf16.msra.mxu0 %v3682
        %3777 = vmatpush.bf16.msra.mxu0 %v3678
        %3778 = vmatpush.bf16.msra.mxu0 %v3674
        %3779 = vmatpush.bf16.msra.mxu0 %v3670
        %3780 = vmatpush.bf16.msra.mxu0 %v3666
        %3781 = vmatpush.bf16.msra.mxu0 %v3662
        %3782 = vmatmul.bf16.gmra.mxu0 %v3515
        %v3783 = vpop.f32.mrf.mxu0
        %v3784 = vadd.f32 %v3558, %v3783
        %v3785 = vpop.f32.mrf.mxu0
        %v3786 = vadd.f32 %v3558, %v3785
        %3787 = vmatmul.bf16.gmra.mxu0 %v3516
        %v3788 = vpop.f32.mrf.mxu0
        %v3789 = vadd.f32 %v3558, %v3788
        %v3790 = vpop.f32.mrf.mxu0
        %v3791 = vadd.f32 %v3558, %v3790
        %3792 = vmatmul.bf16.gmra.mxu0 %v3517
        %v3793 = vpop.f32.mrf.mxu0
        %v3794 = vadd.f32 %v3558, %v3793
        %v3795 = vpop.f32.mrf.mxu0
        %v3796 = vadd.f32 %v3558, %v3795
        %3797 = vmatmul.bf16.gmra.mxu0 %v3518
        %v3798 = vpop.f32.mrf.mxu0
        %v3799 = vadd.f32 %v3558, %v3798
        %v3800 = vpop.f32.mrf.mxu0
        %v3801 = vadd.f32 %v3558, %v3800
        %3802 = vmatmul.bf16.gmra.mxu0 %v3519
        %v3803 = vpop.f32.mrf.mxu0
        %v3804 = vadd.f32 %v3558, %v3803
        %v3805 = vpop.f32.mrf.mxu0
        %v3806 = vadd.f32 %v3558, %v3805
        %3807 = vmatmul.bf16.gmra.mxu0 %v3520
        %v3808 = vpop.f32.mrf.mxu0
        %v3809 = vadd.f32 %v3558, %v3808
        %v3810 = vpop.f32.mrf.mxu0
        %v3811 = vadd.f32 %v3558, %v3810
        %3812 = vmatmul.bf16.gmra.mxu0 %v3521
        %v3813 = vpop.f32.mrf.mxu0
        %v3814 = vadd.f32 %v3558, %v3813
        %v3815 = vpop.f32.mrf.mxu0
        %v3816 = vadd.f32 %v3558, %v3815
        %3817 = vmatmul.bf16.gmra.mxu0 %v3522
        %v3818 = vpop.f32.mrf.mxu0
        %v3819 = vadd.f32 %v3558, %v3818
        %v3820 = vpop.f32.mrf.mxu0
        %v3821 = vadd.f32 %v3558, %v3820
        %3822 = vdwg.mxu0
        %3823 = vmatpush.bf16.msra.mxu0 %v3691
        %3824 = vmatpush.bf16.msra.mxu0 %v3687
        %3825 = vmatpush.bf16.msra.mxu0 %v3683
        %3826 = vmatpush.bf16.msra.mxu0 %v3679
        %3827 = vmatpush.bf16.msra.mxu0 %v3675
        %3828 = vmatpush.bf16.msra.mxu0 %v3671
        %3829 = vmatpush.bf16.msra.mxu0 %v3667
        %3830 = vmatpush.bf16.msra.mxu0 %v3663
        %3831 = vmatmul.bf16.gmra.mxu0 %v3515
        %v3832 = vpop.f32.mrf.mxu0
        %v3833 = vadd.f32 %v3559, %v3832
        %v3834 = vpop.f32.mrf.mxu0
        %v3835 = vadd.f32 %v3559, %v3834
        %3836 = vmatmul.bf16.gmra.mxu0 %v3516
        %v3837 = vpop.f32.mrf.mxu0
        %v3838 = vadd.f32 %v3559, %v3837
        %v3839 = vpop.f32.mrf.mxu0
        %v3840 = vadd.f32 %v3559, %v3839
        %3841 = vmatmul.bf16.gmra.mxu0 %v3517
        %v3842 = vpop.f32.mrf.mxu0
        %v3843 = vadd.f32 %v3559, %v3842
        %v3844 = vpop.f32.mrf.mxu0
        %v3845 = vadd.f32 %v3559, %v3844
        %3846 = vmatmul.bf16.gmra.mxu0 %v3518
        %v3847 = vpop.f32.mrf.mxu0
        %v3848 = vadd.f32 %v3559, %v3847
        %v3849 = vpop.f32.mrf.mxu0
        %v3850 = vadd.f32 %v3559, %v3849
        %3851 = vmatmul.bf16.gmra.mxu0 %v3519
        %v3852 = vpop.f32.mrf.mxu0
        %v3853 = vadd.f32 %v3559, %v3852
        %v3854 = vpop.f32.mrf.mxu0
        %v3855 = vadd.f32 %v3559, %v3854
        %3856 = vmatmul.bf16.gmra.mxu0 %v3520
        %v3857 = vpop.f32.mrf.mxu0
        %v3858 = vadd.f32 %v3559, %v3857
        %v3859 = vpop.f32.mrf.mxu0
        %v3860 = vadd.f32 %v3559, %v3859
        %3861 = vmatmul.bf16.gmra.mxu0 %v3521
        %v3862 = vpop.f32.mrf.mxu0
        %v3863 = vadd.f32 %v3559, %v3862
        %v3864 = vpop.f32.mrf.mxu0
        %v3865 = vadd.f32 %v3559, %v3864
        %3866 = vmatmul.bf16.gmra.mxu0 %v3522
        %v3867 = vpop.f32.mrf.mxu0
        %v3868 = vadd.f32 %v3559, %v3867
        %v3869 = vpop.f32.mrf.mxu0
        %v3870 = vadd.f32 %v3559, %v3869
        %3871 = vdwg.mxu0
        %3872 = vmatpush.bf16.msra.mxu0 %v3692
        %3873 = vmatpush.bf16.msra.mxu0 %v3688
        %3874 = vmatpush.bf16.msra.mxu0 %v3684
        %3875 = vmatpush.bf16.msra.mxu0 %v3680
        %3876 = vmatpush.bf16.msra.mxu0 %v3676
        %3877 = vmatpush.bf16.msra.mxu0 %v3672
        %3878 = vmatpush.bf16.msra.mxu0 %v3668
        %3879 = vmatpush.bf16.msra.mxu0 %v3664
        %3880 = vmatmul.bf16.gmra.mxu0 %v3515
        %v3881 = vpop.f32.mrf.mxu0
        %v3882 = vadd.f32 %v3560, %v3881
        %v3883 = vpop.f32.mrf.mxu0
        %v3884 = vadd.f32 %v3560, %v3883
        %3885 = vmatmul.bf16.gmra.mxu0 %v3516
        %v3886 = vpop.f32.mrf.mxu0
        %v3887 = vadd.f32 %v3560, %v3886
        %v3888 = vpop.f32.mrf.mxu0
        %v3889 = vadd.f32 %v3560, %v3888
        %3890 = vmatmul.bf16.gmra.mxu0 %v3517
        %v3891 = vpop.f32.mrf.mxu0
        %v3892 = vadd.f32 %v3560, %v3891
        %v3893 = vpop.f32.mrf.mxu0
        %v3894 = vadd.f32 %v3560, %v3893
        %3895 = vmatmul.bf16.gmra.mxu0 %v3518
        %v3896 = vpop.f32.mrf.mxu0
        %v3897 = vadd.f32 %v3560, %v3896
        %v3898 = vpop.f32.mrf.mxu0
        %v3899 = vadd.f32 %v3560, %v3898
        %3900 = vmatmul.bf16.gmra.mxu0 %v3519
        %v3901 = vpop.f32.mrf.mxu0
        %v3902 = vadd.f32 %v3560, %v3901
        %v3903 = vpop.f32.mrf.mxu0
        %v3904 = vadd.f32 %v3560, %v3903
        %3905 = vmatmul.bf16.gmra.mxu0 %v3520
        %v3906 = vpop.f32.mrf.mxu0
        %v3907 = vadd.f32 %v3560, %v3906
        %v3908 = vpop.f32.mrf.mxu0
        %v3909 = vadd.f32 %v3560, %v3908
        %3910 = vmatmul.bf16.gmra.mxu0 %v3521
        %v3911 = vpop.f32.mrf.mxu0
        %v3912 = vadd.f32 %v3560, %v3911
        %v3913 = vpop.f32.mrf.mxu0
        %v3914 = vadd.f32 %v3560, %v3913
        %3915 = vmatmul.bf16.gmra.mxu0 %v3522
        %v3916 = vpop.f32.mrf.mxu0
        %v3917 = vadd.f32 %v3560, %v3916
        %v3918 = vpop.f32.mrf.mxu0
        %v3919 = vadd.f32 %v3560, %v3918
        %3920 = vdwg.mxu0
        %v3921 = vpack.c.bf16 %v3784, %v3735
        %v3922 = vpack.c.bf16 %v3882, %v3833
        %v3923 = vpack.c.bf16 %v3786, %v3737
        %v3924 = vpack.c.bf16 %v3884, %v3835
        %v3925 = vpack.c.bf16 %v3789, %v3740
        %v3926 = vpack.c.bf16 %v3887, %v3838
        %v3927 = vpack.c.bf16 %v3791, %v3742
        %v3928 = vpack.c.bf16 %v3889, %v3840
        %v3929 = vpack.c.bf16 %v3794, %v3745
        %v3930 = vpack.c.bf16 %v3892, %v3843
        %v3931 = vpack.c.bf16 %v3796, %v3747
        %v3932 = vpack.c.bf16 %v3894, %v3845
        %v3933 = vpack.c.bf16 %v3799, %v3750
        %v3934 = vpack.c.bf16 %v3897, %v3848
        %v3935 = vpack.c.bf16 %v3801, %v3752
        %v3936 = vpack.c.bf16 %v3899, %v3850
        %v3937 = vpack.c.bf16 %v3804, %v3755
        %v3938 = vpack.c.bf16 %v3902, %v3853
        %v3939 = vpack.c.bf16 %v3806, %v3757
        %v3940 = vpack.c.bf16 %v3904, %v3855
        %v3941 = vpack.c.bf16 %v3809, %v3760
        %v3942 = vpack.c.bf16 %v3907, %v3858
        %v3943 = vpack.c.bf16 %v3811, %v3762
        %v3944 = vpack.c.bf16 %v3909, %v3860
        %v3945 = vpack.c.bf16 %v3814, %v3765
        %v3946 = vpack.c.bf16 %v3912, %v3863
        %v3947 = vpack.c.bf16 %v3816, %v3767
        %v3948 = vpack.c.bf16 %v3914, %v3865
        %v3949 = vpack.c.bf16 %v3819, %v3770
        %v3950 = vpack.c.bf16 %v3917, %v3868
        %v3951 = vpack.c.bf16 %v3821, %v3772
        %v3952 = vpack.c.bf16 %v3919, %v3870
        %v3953 = vunpack.c.l.bf16 %v3921
        %v3954 = vunpack.c.h.bf16 %v3921
        %v3955 = vunpack.c.l.bf16 %v3922
        %v3956 = vunpack.c.h.bf16 %v3922
        %v3957 = vunpack.c.l.bf16 %v3923
        %v3958 = vunpack.c.h.bf16 %v3923
        %v3959 = vunpack.c.l.bf16 %v3924
        %v3960 = vunpack.c.h.bf16 %v3924
        %v3961 = vunpack.c.l.bf16 %v3925
        %v3962 = vunpack.c.h.bf16 %v3925
        %v3963 = vunpack.c.l.bf16 %v3926
        %v3964 = vunpack.c.h.bf16 %v3926
        %v3965 = vunpack.c.l.bf16 %v3927
        %v3966 = vunpack.c.h.bf16 %v3927
        %v3967 = vunpack.c.l.bf16 %v3928
        %v3968 = vunpack.c.h.bf16 %v3928
        %v3969 = vunpack.c.l.bf16 %v3929
        %v3970 = vunpack.c.h.bf16 %v3929
        %v3971 = vunpack.c.l.bf16 %v3930
        %v3972 = vunpack.c.h.bf16 %v3930
        %v3973 = vunpack.c.l.bf16 %v3931
        %v3974 = vunpack.c.h.bf16 %v3931
        %v3975 = vunpack.c.l.bf16 %v3932
        %v3976 = vunpack.c.h.bf16 %v3932
        %v3977 = vunpack.c.l.bf16 %v3933
        %v3978 = vunpack.c.h.bf16 %v3933
        %v3979 = vunpack.c.l.bf16 %v3934
        %v3980 = vunpack.c.h.bf16 %v3934
        %v3981 = vunpack.c.l.bf16 %v3935
        %v3982 = vunpack.c.h.bf16 %v3935
        %v3983 = vunpack.c.l.bf16 %v3936
        %v3984 = vunpack.c.h.bf16 %v3936
        %v3985 = vunpack.c.l.bf16 %v3937
        %v3986 = vunpack.c.h.bf16 %v3937
        %v3987 = vunpack.c.l.bf16 %v3938
        %v3988 = vunpack.c.h.bf16 %v3938
        %v3989 = vunpack.c.l.bf16 %v3939
        %v3990 = vunpack.c.h.bf16 %v3939
        %v3991 = vunpack.c.l.bf16 %v3940
        %v3992 = vunpack.c.h.bf16 %v3940
        %v3993 = vunpack.c.l.bf16 %v3941
        %v3994 = vunpack.c.h.bf16 %v3941
        %v3995 = vunpack.c.l.bf16 %v3942
        %v3996 = vunpack.c.h.bf16 %v3942
        %v3997 = vunpack.c.l.bf16 %v3943
        %v3998 = vunpack.c.h.bf16 %v3943
        %v3999 = vunpack.c.l.bf16 %v3944
        %v4000 = vunpack.c.h.bf16 %v3944
        %v4001 = vunpack.c.l.bf16 %v3945
        %v4002 = vunpack.c.h.bf16 %v3945
        %v4003 = vunpack.c.l.bf16 %v3946
        %v4004 = vunpack.c.h.bf16 %v3946
        %v4005 = vunpack.c.l.bf16 %v3947
        %v4006 = vunpack.c.h.bf16 %v3947
        %v4007 = vunpack.c.l.bf16 %v3948
        %v4008 = vunpack.c.h.bf16 %v3948
        %v4009 = vunpack.c.l.bf16 %v3949
        %v4010 = vunpack.c.h.bf16 %v3949
        %v4011 = vunpack.c.l.bf16 %v3950
        %v4012 = vunpack.c.h.bf16 %v3950
        %v4013 = vunpack.c.l.bf16 %v3951
        %v4014 = vunpack.c.h.bf16 %v3951
        %v4015 = vunpack.c.l.bf16 %v3952
        %v4016 = vunpack.c.h.bf16 %v3952
        %v4017 = vmul.f32 %v3953, 0.5
        %v4018 = vmul.f32 %v3954, 0.5
        %v4019 = vmul.f32 %v3955, 0.5
        %v4020 = vmul.f32 %v3956, 0.5
        %v4021 = vmul.f32 %v3957, 0.5
        %v4022 = vmul.f32 %v3958, 0.5
        %v4023 = vmul.f32 %v3959, 0.5
        %v4024 = vmul.f32 %v3960, 0.5
        %v4025 = vmul.f32 %v3961, 0.5
        %v4026 = vmul.f32 %v3962, 0.5
        %v4027 = vmul.f32 %v3963, 0.5
        %v4028 = vmul.f32 %v3964, 0.5
        %v4029 = vmul.f32 %v3965, 0.5
        %v4030 = vmul.f32 %v3966, 0.5
        %v4031 = vmul.f32 %v3967, 0.5
        %v4032 = vmul.f32 %v3968, 0.5
        %v4033 = vmul.f32 %v3969, 0.5
        %v4034 = vmul.f32 %v3970, 0.5
        %v4035 = vmul.f32 %v3971, 0.5
        %v4036 = vmul.f32 %v3972, 0.5
        %v4037 = vmul.f32 %v3973, 0.5
        %v4038 = vmul.f32 %v3974, 0.5
        %v4039 = vmul.f32 %v3975, 0.5
        %v4040 = vmul.f32 %v3976, 0.5
        %v4041 = vmul.f32 %v3977, 0.5
        %v4042 = vmul.f32 %v3978, 0.5
        %v4043 = vmul.f32 %v3979, 0.5
        %v4044 = vmul.f32 %v3980, 0.5
        %v4045 = vmul.f32 %v3981, 0.5
        %v4046 = vmul.f32 %v3982, 0.5
        %v4047 = vmul.f32 %v3983, 0.5
        %v4048 = vmul.f32 %v3984, 0.5
        %v4049 = vmul.f32 %v3985, 0.5
        %v4050 = vmul.f32 %v3986, 0.5
        %v4051 = vmul.f32 %v3987, 0.5
        %v4052 = vmul.f32 %v3988, 0.5
        %v4053 = vmul.f32 %v3989, 0.5
        %v4054 = vmul.f32 %v3990, 0.5
        %v4055 = vmul.f32 %v3991, 0.5
        %v4056 = vmul.f32 %v3992, 0.5
        %v4057 = vmul.f32 %v3993, 0.5
        %v4058 = vmul.f32 %v3994, 0.5
        %v4059 = vmul.f32 %v3995, 0.5
        %v4060 = vmul.f32 %v3996, 0.5
        %v4061 = vmul.f32 %v3997, 0.5
        %v4062 = vmul.f32 %v3998, 0.5
        %v4063 = vmul.f32 %v3999, 0.5
        %v4064 = vmul.f32 %v4000, 0.5
        %v4065 = vmul.f32 %v4001, 0.5
        %v4066 = vmul.f32 %v4002, 0.5
        %v4067 = vmul.f32 %v4003, 0.5
        %v4068 = vmul.f32 %v4004, 0.5
        %v4069 = vmul.f32 %v4005, 0.5
        %v4070 = vmul.f32 %v4006, 0.5
        %v4071 = vmul.f32 %v4007, 0.5
        %v4072 = vmul.f32 %v4008, 0.5
        %v4073 = vmul.f32 %v4009, 0.5
        %v4074 = vmul.f32 %v4010, 0.5
        %v4075 = vmul.f32 %v4011, 0.5
        %v4076 = vmul.f32 %v4012, 0.5
        %v4077 = vmul.f32 %v4013, 0.5
        %v4078 = vmul.f32 %v4014, 0.5
        %v4079 = vmul.f32 %v4015, 0.5
        %v4080 = vmul.f32 %v4016, 0.5
        %v4081 = vpack.c.bf16 %v4018, %v4017
        %v4082 = vpack.c.bf16 %v4020, %v4019
        %v4083 = vpack.c.bf16 %v4022, %v4021
        %v4084 = vpack.c.bf16 %v4024, %v4023
        %v4085 = vpack.c.bf16 %v4026, %v4025
        %v4086 = vpack.c.bf16 %v4028, %v4027
        %v4087 = vpack.c.bf16 %v4030, %v4029
        %v4088 = vpack.c.bf16 %v4032, %v4031
        %v4089 = vpack.c.bf16 %v4034, %v4033
        %v4090 = vpack.c.bf16 %v4036, %v4035
        %v4091 = vpack.c.bf16 %v4038, %v4037
        %v4092 = vpack.c.bf16 %v4040, %v4039
        %v4093 = vpack.c.bf16 %v4042, %v4041
        %v4094 = vpack.c.bf16 %v4044, %v4043
        %v4095 = vpack.c.bf16 %v4046, %v4045
        %v4096 = vpack.c.bf16 %v4048, %v4047
        %v4097 = vpack.c.bf16 %v4050, %v4049
        %v4098 = vpack.c.bf16 %v4052, %v4051
        %v4099 = vpack.c.bf16 %v4054, %v4053
        %v4100 = vpack.c.bf16 %v4056, %v4055
        %v4101 = vpack.c.bf16 %v4058, %v4057
        %v4102 = vpack.c.bf16 %v4060, %v4059
        %v4103 = vpack.c.bf16 %v4062, %v4061
        %v4104 = vpack.c.bf16 %v4064, %v4063
        %v4105 = vpack.c.bf16 %v4066, %v4065
        %v4106 = vpack.c.bf16 %v4068, %v4067
        %v4107 = vpack.c.bf16 %v4070, %v4069
        %v4108 = vpack.c.bf16 %v4072, %v4071
        %v4109 = vpack.c.bf16 %v4074, %v4073
        %v4110 = vpack.c.bf16 %v4076, %v4075
        %v4111 = vpack.c.bf16 %v4078, %v4077
        %v4112 = vpack.c.bf16 %v4080, %v4079
        %v4113 = vmul.f32 %v3953, %v3953
        %v4114 = vmul.f32 %v3954, %v3954
        %v4115 = vmul.f32 %v3955, %v3955
        %v4116 = vmul.f32 %v3956, %v3956
        %v4117 = vmul.f32 %v3957, %v3957
        %v4118 = vmul.f32 %v3958, %v3958
        %v4119 = vmul.f32 %v3959, %v3959
        %v4120 = vmul.f32 %v3960, %v3960
        %v4121 = vmul.f32 %v3961, %v3961
        %v4122 = vmul.f32 %v3962, %v3962
        %v4123 = vmul.f32 %v3963, %v3963
        %v4124 = vmul.f32 %v3964, %v3964
        %v4125 = vmul.f32 %v3965, %v3965
        %v4126 = vmul.f32 %v3966, %v3966
        %v4127 = vmul.f32 %v3967, %v3967
        %v4128 = vmul.f32 %v3968, %v3968
        %v4129 = vmul.f32 %v3969, %v3969
        %v4130 = vmul.f32 %v3970, %v3970
        %v4131 = vmul.f32 %v3971, %v3971
        %v4132 = vmul.f32 %v3972, %v3972
        %v4133 = vmul.f32 %v3973, %v3973
        %v4134 = vmul.f32 %v3974, %v3974
        %v4135 = vmul.f32 %v3975, %v3975
        %v4136 = vmul.f32 %v3976, %v3976
        %v4137 = vmul.f32 %v3977, %v3977
        %v4138 = vmul.f32 %v3978, %v3978
        %v4139 = vmul.f32 %v3979, %v3979
        %v4140 = vmul.f32 %v3980, %v3980
        %v4141 = vmul.f32 %v3981, %v3981
        %v4142 = vmul.f32 %v3982, %v3982
        %v4143 = vmul.f32 %v3983, %v3983
        %v4144 = vmul.f32 %v3984, %v3984
        %v4145 = vmul.f32 %v3985, %v3985
        %v4146 = vmul.f32 %v3986, %v3986
        %v4147 = vmul.f32 %v3987, %v3987
        %v4148 = vmul.f32 %v3988, %v3988
        %v4149 = vmul.f32 %v3989, %v3989
        %v4150 = vmul.f32 %v3990, %v3990
        %v4151 = vmul.f32 %v3991, %v3991
        %v4152 = vmul.f32 %v3992, %v3992
        %v4153 = vmul.f32 %v3993, %v3993
        %v4154 = vmul.f32 %v3994, %v3994
        %v4155 = vmul.f32 %v3995, %v3995
        %v4156 = vmul.f32 %v3996, %v3996
        %v4157 = vmul.f32 %v3997, %v3997
        %v4158 = vmul.f32 %v3998, %v3998
        %v4159 = vmul.f32 %v3999, %v3999
        %v4160 = vmul.f32 %v4000, %v4000
        %v4161 = vmul.f32 %v4001, %v4001
        %v4162 = vmul.f32 %v4002, %v4002
        %v4163 = vmul.f32 %v4003, %v4003
        %v4164 = vmul.f32 %v4004, %v4004
        %v4165 = vmul.f32 %v4005, %v4005
        %v4166 = vmul.f32 %v4006, %v4006
        %v4167 = vmul.f32 %v4007, %v4007
        %v4168 = vmul.f32 %v4008, %v4008
        %v4169 = vmul.f32 %v4009, %v4009
        %v4170 = vmul.f32 %v4010, %v4010
        %v4171 = vmul.f32 %v4011, %v4011
        %v4172 = vmul.f32 %v4012, %v4012
        %v4173 = vmul.f32 %v4013, %v4013
        %v4174 = vmul.f32 %v4014, %v4014
        %v4175 = vmul.f32 %v4015, %v4015
        %v4176 = vmul.f32 %v4016, %v4016
        %v4177 = vpack.c.bf16 %v4114, %v4113
        %v4178 = vpack.c.bf16 %v4116, %v4115
        %v4179 = vpack.c.bf16 %v4118, %v4117
        %v4180 = vpack.c.bf16 %v4120, %v4119
        %v4181 = vpack.c.bf16 %v4122, %v4121
        %v4182 = vpack.c.bf16 %v4124, %v4123
        %v4183 = vpack.c.bf16 %v4126, %v4125
        %v4184 = vpack.c.bf16 %v4128, %v4127
        %v4185 = vpack.c.bf16 %v4130, %v4129
        %v4186 = vpack.c.bf16 %v4132, %v4131
        %v4187 = vpack.c.bf16 %v4134, %v4133
        %v4188 = vpack.c.bf16 %v4136, %v4135
        %v4189 = vpack.c.bf16 %v4138, %v4137
        %v4190 = vpack.c.bf16 %v4140, %v4139
        %v4191 = vpack.c.bf16 %v4142, %v4141
        %v4192 = vpack.c.bf16 %v4144, %v4143
        %v4193 = vpack.c.bf16 %v4146, %v4145
        %v4194 = vpack.c.bf16 %v4148, %v4147
        %v4195 = vpack.c.bf16 %v4150, %v4149
        %v4196 = vpack.c.bf16 %v4152, %v4151
        %v4197 = vpack.c.bf16 %v4154, %v4153
        %v4198 = vpack.c.bf16 %v4156, %v4155
        %v4199 = vpack.c.bf16 %v4158, %v4157
        %v4200 = vpack.c.bf16 %v4160, %v4159
        %v4201 = vpack.c.bf16 %v4162, %v4161
        %v4202 = vpack.c.bf16 %v4164, %v4163
        %v4203 = vpack.c.bf16 %v4166, %v4165
        %v4204 = vpack.c.bf16 %v4168, %v4167
        %v4205 = vpack.c.bf16 %v4170, %v4169
        %v4206 = vpack.c.bf16 %v4172, %v4171
        %v4207 = vpack.c.bf16 %v4174, %v4173
        %v4208 = vpack.c.bf16 %v4176, %v4175
        %v4209 = vunpack.c.l.bf16 %v4177
        %v4210 = vunpack.c.h.bf16 %v4177
        %v4211 = vunpack.c.l.bf16 %v4178
        %v4212 = vunpack.c.h.bf16 %v4178
        %v4213 = vunpack.c.l.bf16 %v4179
        %v4214 = vunpack.c.h.bf16 %v4179
        %v4215 = vunpack.c.l.bf16 %v4180
        %v4216 = vunpack.c.h.bf16 %v4180
        %v4217 = vunpack.c.l.bf16 %v4181
        %v4218 = vunpack.c.h.bf16 %v4181
        %v4219 = vunpack.c.l.bf16 %v4182
        %v4220 = vunpack.c.h.bf16 %v4182
        %v4221 = vunpack.c.l.bf16 %v4183
        %v4222 = vunpack.c.h.bf16 %v4183
        %v4223 = vunpack.c.l.bf16 %v4184
        %v4224 = vunpack.c.h.bf16 %v4184
        %v4225 = vunpack.c.l.bf16 %v4185
        %v4226 = vunpack.c.h.bf16 %v4185
        %v4227 = vunpack.c.l.bf16 %v4186
        %v4228 = vunpack.c.h.bf16 %v4186
        %v4229 = vunpack.c.l.bf16 %v4187
        %v4230 = vunpack.c.h.bf16 %v4187
        %v4231 = vunpack.c.l.bf16 %v4188
        %v4232 = vunpack.c.h.bf16 %v4188
        %v4233 = vunpack.c.l.bf16 %v4189
        %v4234 = vunpack.c.h.bf16 %v4189
        %v4235 = vunpack.c.l.bf16 %v4190
        %v4236 = vunpack.c.h.bf16 %v4190
        %v4237 = vunpack.c.l.bf16 %v4191
        %v4238 = vunpack.c.h.bf16 %v4191
        %v4239 = vunpack.c.l.bf16 %v4192
        %v4240 = vunpack.c.h.bf16 %v4192
        %v4241 = vunpack.c.l.bf16 %v4193
        %v4242 = vunpack.c.h.bf16 %v4193
        %v4243 = vunpack.c.l.bf16 %v4194
        %v4244 = vunpack.c.h.bf16 %v4194
        %v4245 = vunpack.c.l.bf16 %v4195
        %v4246 = vunpack.c.h.bf16 %v4195
        %v4247 = vunpack.c.l.bf16 %v4196
        %v4248 = vunpack.c.h.bf16 %v4196
        %v4249 = vunpack.c.l.bf16 %v4197
        %v4250 = vunpack.c.h.bf16 %v4197
        %v4251 = vunpack.c.l.bf16 %v4198
        %v4252 = vunpack.c.h.bf16 %v4198
        %v4253 = vunpack.c.l.bf16 %v4199
        %v4254 = vunpack.c.h.bf16 %v4199
        %v4255 = vunpack.c.l.bf16 %v4200
        %v4256 = vunpack.c.h.bf16 %v4200
        %v4257 = vunpack.c.l.bf16 %v4201
        %v4258 = vunpack.c.h.bf16 %v4201
        %v4259 = vunpack.c.l.bf16 %v4202
        %v4260 = vunpack.c.h.bf16 %v4202
        %v4261 = vunpack.c.l.bf16 %v4203
        %v4262 = vunpack.c.h.bf16 %v4203
        %v4263 = vunpack.c.l.bf16 %v4204
        %v4264 = vunpack.c.h.bf16 %v4204
        %v4265 = vunpack.c.l.bf16 %v4205
        %v4266 = vunpack.c.h.bf16 %v4205
        %v4267 = vunpack.c.l.bf16 %v4206
        %v4268 = vunpack.c.h.bf16 %v4206
        %v4269 = vunpack.c.l.bf16 %v4207
        %v4270 = vunpack.c.h.bf16 %v4207
        %v4271 = vunpack.c.l.bf16 %v4208
        %v4272 = vunpack.c.h.bf16 %v4208
        %v4273 = vmul.f32 %v4209, %v3953
        %v4274 = vmul.f32 %v4210, %v3954
        %v4275 = vmul.f32 %v4211, %v3955
        %v4276 = vmul.f32 %v4212, %v3956
        %v4277 = vmul.f32 %v4213, %v3957
        %v4278 = vmul.f32 %v4214, %v3958
        %v4279 = vmul.f32 %v4215, %v3959
        %v4280 = vmul.f32 %v4216, %v3960
        %v4281 = vmul.f32 %v4217, %v3961
        %v4282 = vmul.f32 %v4218, %v3962
        %v4283 = vmul.f32 %v4219, %v3963
        %v4284 = vmul.f32 %v4220, %v3964
        %v4285 = vmul.f32 %v4221, %v3965
        %v4286 = vmul.f32 %v4222, %v3966
        %v4287 = vmul.f32 %v4223, %v3967
        %v4288 = vmul.f32 %v4224, %v3968
        %v4289 = vmul.f32 %v4225, %v3969
        %v4290 = vmul.f32 %v4226, %v3970
        %v4291 = vmul.f32 %v4227, %v3971
        %v4292 = vmul.f32 %v4228, %v3972
        %v4293 = vmul.f32 %v4229, %v3973
        %v4294 = vmul.f32 %v4230, %v3974
        %v4295 = vmul.f32 %v4231, %v3975
        %v4296 = vmul.f32 %v4232, %v3976
        %v4297 = vmul.f32 %v4233, %v3977
        %v4298 = vmul.f32 %v4234, %v3978
        %v4299 = vmul.f32 %v4235, %v3979
        %v4300 = vmul.f32 %v4236, %v3980
        %v4301 = vmul.f32 %v4237, %v3981
        %v4302 = vmul.f32 %v4238, %v3982
        %v4303 = vmul.f32 %v4239, %v3983
        %v4304 = vmul.f32 %v4240, %v3984
        %v4305 = vmul.f32 %v4241, %v3985
        %v4306 = vmul.f32 %v4242, %v3986
        %v4307 = vmul.f32 %v4243, %v3987
        %v4308 = vmul.f32 %v4244, %v3988
        %v4309 = vmul.f32 %v4245, %v3989
        %v4310 = vmul.f32 %v4246, %v3990
        %v4311 = vmul.f32 %v4247, %v3991
        %v4312 = vmul.f32 %v4248, %v3992
        %v4313 = vmul.f32 %v4249, %v3993
        %v4314 = vmul.f32 %v4250, %v3994
        %v4315 = vmul.f32 %v4251, %v3995
        %v4316 = vmul.f32 %v4252, %v3996
        %v4317 = vmul.f32 %v4253, %v3997
        %v4318 = vmul.f32 %v4254, %v3998
        %v4319 = vmul.f32 %v4255, %v3999
        %v4320 = vmul.f32 %v4256, %v4000
        %v4321 = vmul.f32 %v4257, %v4001
        %v4322 = vmul.f32 %v4258, %v4002
        %v4323 = vmul.f32 %v4259, %v4003
        %v4324 = vmul.f32 %v4260, %v4004
        %v4325 = vmul.f32 %v4261, %v4005
        %v4326 = vmul.f32 %v4262, %v4006
        %v4327 = vmul.f32 %v4263, %v4007
        %v4328 = vmul.f32 %v4264, %v4008
        %v4329 = vmul.f32 %v4265, %v4009
        %v4330 = vmul.f32 %v4266, %v4010
        %v4331 = vmul.f32 %v4267, %v4011
        %v4332 = vmul.f32 %v4268, %v4012
        %v4333 = vmul.f32 %v4269, %v4013
        %v4334 = vmul.f32 %v4270, %v4014
        %v4335 = vmul.f32 %v4271, %v4015
        %v4336 = vmul.f32 %v4272, %v4016
        %v4337 = vpack.c.bf16 %v4274, %v4273
        %v4338 = vpack.c.bf16 %v4276, %v4275
        %v4339 = vpack.c.bf16 %v4278, %v4277
        %v4340 = vpack.c.bf16 %v4280, %v4279
        %v4341 = vpack.c.bf16 %v4282, %v4281
        %v4342 = vpack.c.bf16 %v4284, %v4283
        %v4343 = vpack.c.bf16 %v4286, %v4285
        %v4344 = vpack.c.bf16 %v4288, %v4287
        %v4345 = vpack.c.bf16 %v4290, %v4289
        %v4346 = vpack.c.bf16 %v4292, %v4291
        %v4347 = vpack.c.bf16 %v4294, %v4293
        %v4348 = vpack.c.bf16 %v4296, %v4295
        %v4349 = vpack.c.bf16 %v4298, %v4297
        %v4350 = vpack.c.bf16 %v4300, %v4299
        %v4351 = vpack.c.bf16 %v4302, %v4301
        %v4352 = vpack.c.bf16 %v4304, %v4303
        %v4353 = vpack.c.bf16 %v4306, %v4305
        %v4354 = vpack.c.bf16 %v4308, %v4307
        %v4355 = vpack.c.bf16 %v4310, %v4309
        %v4356 = vpack.c.bf16 %v4312, %v4311
        %v4357 = vpack.c.bf16 %v4314, %v4313
        %v4358 = vpack.c.bf16 %v4316, %v4315
        %v4359 = vpack.c.bf16 %v4318, %v4317
        %v4360 = vpack.c.bf16 %v4320, %v4319
        %v4361 = vpack.c.bf16 %v4322, %v4321
        %v4362 = vpack.c.bf16 %v4324, %v4323
        %v4363 = vpack.c.bf16 %v4326, %v4325
        %v4364 = vpack.c.bf16 %v4328, %v4327
        %v4365 = vpack.c.bf16 %v4330, %v4329
        %v4366 = vpack.c.bf16 %v4332, %v4331
        %v4367 = vpack.c.bf16 %v4334, %v4333
        %v4368 = vpack.c.bf16 %v4336, %v4335
        %v4369 = vunpack.c.l.bf16 %v4337
        %v4370 = vunpack.c.h.bf16 %v4337
        %v4371 = vunpack.c.l.bf16 %v4338
        %v4372 = vunpack.c.h.bf16 %v4338
        %v4373 = vunpack.c.l.bf16 %v4339
        %v4374 = vunpack.c.h.bf16 %v4339
        %v4375 = vunpack.c.l.bf16 %v4340
        %v4376 = vunpack.c.h.bf16 %v4340
        %v4377 = vunpack.c.l.bf16 %v4341
        %v4378 = vunpack.c.h.bf16 %v4341
        %v4379 = vunpack.c.l.bf16 %v4342
        %v4380 = vunpack.c.h.bf16 %v4342
        %v4381 = vunpack.c.l.bf16 %v4343
        %v4382 = vunpack.c.h.bf16 %v4343
        %v4383 = vunpack.c.l.bf16 %v4344
        %v4384 = vunpack.c.h.bf16 %v4344
        %v4385 = vunpack.c.l.bf16 %v4345
        %v4386 = vunpack.c.h.bf16 %v4345
        %v4387 = vunpack.c.l.bf16 %v4346
        %v4388 = vunpack.c.h.bf16 %v4346
        %v4389 = vunpack.c.l.bf16 %v4347
        %v4390 = vunpack.c.h.bf16 %v4347
        %v4391 = vunpack.c.l.bf16 %v4348
        %v4392 = vunpack.c.h.bf16 %v4348
        %v4393 = vunpack.c.l.bf16 %v4349
        %v4394 = vunpack.c.h.bf16 %v4349
        %v4395 = vunpack.c.l.bf16 %v4350
        %v4396 = vunpack.c.h.bf16 %v4350
        %v4397 = vunpack.c.l.bf16 %v4351
        %v4398 = vunpack.c.h.bf16 %v4351
        %v4399 = vunpack.c.l.bf16 %v4352
        %v4400 = vunpack.c.h.bf16 %v4352
        %v4401 = vunpack.c.l.bf16 %v4353
        %v4402 = vunpack.c.h.bf16 %v4353
        %v4403 = vunpack.c.l.bf16 %v4354
        %v4404 = vunpack.c.h.bf16 %v4354
        %v4405 = vunpack.c.l.bf16 %v4355
        %v4406 = vunpack.c.h.bf16 %v4355
        %v4407 = vunpack.c.l.bf16 %v4356
        %v4408 = vunpack.c.h.bf16 %v4356
        %v4409 = vunpack.c.l.bf16 %v4357
        %v4410 = vunpack.c.h.bf16 %v4357
        %v4411 = vunpack.c.l.bf16 %v4358
        %v4412 = vunpack.c.h.bf16 %v4358
        %v4413 = vunpack.c.l.bf16 %v4359
        %v4414 = vunpack.c.h.bf16 %v4359
        %v4415 = vunpack.c.l.bf16 %v4360
        %v4416 = vunpack.c.h.bf16 %v4360
        %v4417 = vunpack.c.l.bf16 %v4361
        %v4418 = vunpack.c.h.bf16 %v4361
        %v4419 = vunpack.c.l.bf16 %v4362
        %v4420 = vunpack.c.h.bf16 %v4362
        %v4421 = vunpack.c.l.bf16 %v4363
        %v4422 = vunpack.c.h.bf16 %v4363
        %v4423 = vunpack.c.l.bf16 %v4364
        %v4424 = vunpack.c.h.bf16 %v4364
        %v4425 = vunpack.c.l.bf16 %v4365
        %v4426 = vunpack.c.h.bf16 %v4365
        %v4427 = vunpack.c.l.bf16 %v4366
        %v4428 = vunpack.c.h.bf16 %v4366
        %v4429 = vunpack.c.l.bf16 %v4367
        %v4430 = vunpack.c.h.bf16 %v4367
        %v4431 = vunpack.c.l.bf16 %v4368
        %v4432 = vunpack.c.h.bf16 %v4368
        %v4433 = vmul.f32 %v4369, 0.044677734
        %v4434 = vmul.f32 %v4370, 0.044677734
        %v4435 = vmul.f32 %v4371, 0.044677734
        %v4436 = vmul.f32 %v4372, 0.044677734
        %v4437 = vmul.f32 %v4373, 0.044677734
        %v4438 = vmul.f32 %v4374, 0.044677734
        %v4439 = vmul.f32 %v4375, 0.044677734
        %v4440 = vmul.f32 %v4376, 0.044677734
        %v4441 = vmul.f32 %v4377, 0.044677734
        %v4442 = vmul.f32 %v4378, 0.044677734
        %v4443 = vmul.f32 %v4379, 0.044677734
        %v4444 = vmul.f32 %v4380, 0.044677734
        %v4445 = vmul.f32 %v4381, 0.044677734
        %v4446 = vmul.f32 %v4382, 0.044677734
        %v4447 = vmul.f32 %v4383, 0.044677734
        %v4448 = vmul.f32 %v4384, 0.044677734
        %v4449 = vmul.f32 %v4385, 0.044677734
        %v4450 = vmul.f32 %v4386, 0.044677734
        %v4451 = vmul.f32 %v4387, 0.044677734
        %v4452 = vmul.f32 %v4388, 0.044677734
        %v4453 = vmul.f32 %v4389, 0.044677734
        %v4454 = vmul.f32 %v4390, 0.044677734
        %v4455 = vmul.f32 %v4391, 0.044677734
        %v4456 = vmul.f32 %v4392, 0.044677734
        %v4457 = vmul.f32 %v4393, 0.044677734
        %v4458 = vmul.f32 %v4394, 0.044677734
        %v4459 = vmul.f32 %v4395, 0.044677734
        %v4460 = vmul.f32 %v4396, 0.044677734
        %v4461 = vmul.f32 %v4397, 0.044677734
        %v4462 = vmul.f32 %v4398, 0.044677734
        %v4463 = vmul.f32 %v4399, 0.044677734
        %v4464 = vmul.f32 %v4400, 0.044677734
        %v4465 = vmul.f32 %v4401, 0.044677734
        %v4466 = vmul.f32 %v4402, 0.044677734
        %v4467 = vmul.f32 %v4403, 0.044677734
        %v4468 = vmul.f32 %v4404, 0.044677734
        %v4469 = vmul.f32 %v4405, 0.044677734
        %v4470 = vmul.f32 %v4406, 0.044677734
        %v4471 = vmul.f32 %v4407, 0.044677734
        %v4472 = vmul.f32 %v4408, 0.044677734
        %v4473 = vmul.f32 %v4409, 0.044677734
        %v4474 = vmul.f32 %v4410, 0.044677734
        %v4475 = vmul.f32 %v4411, 0.044677734
        %v4476 = vmul.f32 %v4412, 0.044677734
        %v4477 = vmul.f32 %v4413, 0.044677734
        %v4478 = vmul.f32 %v4414, 0.044677734
        %v4479 = vmul.f32 %v4415, 0.044677734
        %v4480 = vmul.f32 %v4416, 0.044677734
        %v4481 = vmul.f32 %v4417, 0.044677734
        %v4482 = vmul.f32 %v4418, 0.044677734
        %v4483 = vmul.f32 %v4419, 0.044677734
        %v4484 = vmul.f32 %v4420, 0.044677734
        %v4485 = vmul.f32 %v4421, 0.044677734
        %v4486 = vmul.f32 %v4422, 0.044677734
        %v4487 = vmul.f32 %v4423, 0.044677734
        %v4488 = vmul.f32 %v4424, 0.044677734
        %v4489 = vmul.f32 %v4425, 0.044677734
        %v4490 = vmul.f32 %v4426, 0.044677734
        %v4491 = vmul.f32 %v4427, 0.044677734
        %v4492 = vmul.f32 %v4428, 0.044677734
        %v4493 = vmul.f32 %v4429, 0.044677734
        %v4494 = vmul.f32 %v4430, 0.044677734
        %v4495 = vmul.f32 %v4431, 0.044677734
        %v4496 = vmul.f32 %v4432, 0.044677734
        %v4497 = vpack.c.bf16 %v4434, %v4433
        %v4498 = vpack.c.bf16 %v4436, %v4435
        %v4499 = vpack.c.bf16 %v4438, %v4437
        %v4500 = vpack.c.bf16 %v4440, %v4439
        %v4501 = vpack.c.bf16 %v4442, %v4441
        %v4502 = vpack.c.bf16 %v4444, %v4443
        %v4503 = vpack.c.bf16 %v4446, %v4445
        %v4504 = vpack.c.bf16 %v4448, %v4447
        %v4505 = vpack.c.bf16 %v4450, %v4449
        %v4506 = vpack.c.bf16 %v4452, %v4451
        %v4507 = vpack.c.bf16 %v4454, %v4453
        %v4508 = vpack.c.bf16 %v4456, %v4455
        %v4509 = vpack.c.bf16 %v4458, %v4457
        %v4510 = vpack.c.bf16 %v4460, %v4459
        %v4511 = vpack.c.bf16 %v4462, %v4461
        %v4512 = vpack.c.bf16 %v4464, %v4463
        %v4513 = vpack.c.bf16 %v4466, %v4465
        %v4514 = vpack.c.bf16 %v4468, %v4467
        %v4515 = vpack.c.bf16 %v4470, %v4469
        %v4516 = vpack.c.bf16 %v4472, %v4471
        %v4517 = vpack.c.bf16 %v4474, %v4473
        %v4518 = vpack.c.bf16 %v4476, %v4475
        %v4519 = vpack.c.bf16 %v4478, %v4477
        %v4520 = vpack.c.bf16 %v4480, %v4479
        %v4521 = vpack.c.bf16 %v4482, %v4481
        %v4522 = vpack.c.bf16 %v4484, %v4483
        %v4523 = vpack.c.bf16 %v4486, %v4485
        %v4524 = vpack.c.bf16 %v4488, %v4487
        %v4525 = vpack.c.bf16 %v4490, %v4489
        %v4526 = vpack.c.bf16 %v4492, %v4491
        %v4527 = vpack.c.bf16 %v4494, %v4493
        %v4528 = vpack.c.bf16 %v4496, %v4495
        %v4529 = vunpack.c.l.bf16 %v4497
        %v4530 = vunpack.c.h.bf16 %v4497
        %v4531 = vunpack.c.l.bf16 %v4498
        %v4532 = vunpack.c.h.bf16 %v4498
        %v4533 = vunpack.c.l.bf16 %v4499
        %v4534 = vunpack.c.h.bf16 %v4499
        %v4535 = vunpack.c.l.bf16 %v4500
        %v4536 = vunpack.c.h.bf16 %v4500
        %v4537 = vunpack.c.l.bf16 %v4501
        %v4538 = vunpack.c.h.bf16 %v4501
        %v4539 = vunpack.c.l.bf16 %v4502
        %v4540 = vunpack.c.h.bf16 %v4502
        %v4541 = vunpack.c.l.bf16 %v4503
        %v4542 = vunpack.c.h.bf16 %v4503
        %v4543 = vunpack.c.l.bf16 %v4504
        %v4544 = vunpack.c.h.bf16 %v4504
        %v4545 = vunpack.c.l.bf16 %v4505
        %v4546 = vunpack.c.h.bf16 %v4505
        %v4547 = vunpack.c.l.bf16 %v4506
        %v4548 = vunpack.c.h.bf16 %v4506
        %v4549 = vunpack.c.l.bf16 %v4507
        %v4550 = vunpack.c.h.bf16 %v4507
        %v4551 = vunpack.c.l.bf16 %v4508
        %v4552 = vunpack.c.h.bf16 %v4508
        %v4553 = vunpack.c.l.bf16 %v4509
        %v4554 = vunpack.c.h.bf16 %v4509
        %v4555 = vunpack.c.l.bf16 %v4510
        %v4556 = vunpack.c.h.bf16 %v4510
        %v4557 = vunpack.c.l.bf16 %v4511
        %v4558 = vunpack.c.h.bf16 %v4511
        %v4559 = vunpack.c.l.bf16 %v4512
        %v4560 = vunpack.c.h.bf16 %v4512
        %v4561 = vunpack.c.l.bf16 %v4513
        %v4562 = vunpack.c.h.bf16 %v4513
        %v4563 = vunpack.c.l.bf16 %v4514
        %v4564 = vunpack.c.h.bf16 %v4514
        %v4565 = vunpack.c.l.bf16 %v4515
        %v4566 = vunpack.c.h.bf16 %v4515
        %v4567 = vunpack.c.l.bf16 %v4516
        %v4568 = vunpack.c.h.bf16 %v4516
        %v4569 = vunpack.c.l.bf16 %v4517
        %v4570 = vunpack.c.h.bf16 %v4517
        %v4571 = vunpack.c.l.bf16 %v4518
        %v4572 = vunpack.c.h.bf16 %v4518
        %v4573 = vunpack.c.l.bf16 %v4519
        %v4574 = vunpack.c.h.bf16 %v4519
        %v4575 = vunpack.c.l.bf16 %v4520
        %v4576 = vunpack.c.h.bf16 %v4520
        %v4577 = vunpack.c.l.bf16 %v4521
        %v4578 = vunpack.c.h.bf16 %v4521
        %v4579 = vunpack.c.l.bf16 %v4522
        %v4580 = vunpack.c.h.bf16 %v4522
        %v4581 = vunpack.c.l.bf16 %v4523
        %v4582 = vunpack.c.h.bf16 %v4523
        %v4583 = vunpack.c.l.bf16 %v4524
        %v4584 = vunpack.c.h.bf16 %v4524
        %v4585 = vunpack.c.l.bf16 %v4525
        %v4586 = vunpack.c.h.bf16 %v4525
        %v4587 = vunpack.c.l.bf16 %v4526
        %v4588 = vunpack.c.h.bf16 %v4526
        %v4589 = vunpack.c.l.bf16 %v4527
        %v4590 = vunpack.c.h.bf16 %v4527
        %v4591 = vunpack.c.l.bf16 %v4528
        %v4592 = vunpack.c.h.bf16 %v4528
        %v4593 = vadd.f32 %v3953, %v4529
        %v4594 = vadd.f32 %v3954, %v4530
        %v4595 = vadd.f32 %v3955, %v4531
        %v4596 = vadd.f32 %v3956, %v4532
        %v4597 = vadd.f32 %v3957, %v4533
        %v4598 = vadd.f32 %v3958, %v4534
        %v4599 = vadd.f32 %v3959, %v4535
        %v4600 = vadd.f32 %v3960, %v4536
        %v4601 = vadd.f32 %v3961, %v4537
        %v4602 = vadd.f32 %v3962, %v4538
        %v4603 = vadd.f32 %v3963, %v4539
        %v4604 = vadd.f32 %v3964, %v4540
        %v4605 = vadd.f32 %v3965, %v4541
        %v4606 = vadd.f32 %v3966, %v4542
        %v4607 = vadd.f32 %v3967, %v4543
        %v4608 = vadd.f32 %v3968, %v4544
        %v4609 = vadd.f32 %v3969, %v4545
        %v4610 = vadd.f32 %v3970, %v4546
        %v4611 = vadd.f32 %v3971, %v4547
        %v4612 = vadd.f32 %v3972, %v4548
        %v4613 = vadd.f32 %v3973, %v4549
        %v4614 = vadd.f32 %v3974, %v4550
        %v4615 = vadd.f32 %v3975, %v4551
        %v4616 = vadd.f32 %v3976, %v4552
        %v4617 = vadd.f32 %v3977, %v4553
        %v4618 = vadd.f32 %v3978, %v4554
        %v4619 = vadd.f32 %v3979, %v4555
        %v4620 = vadd.f32 %v3980, %v4556
        %v4621 = vadd.f32 %v3981, %v4557
        %v4622 = vadd.f32 %v3982, %v4558
        %v4623 = vadd.f32 %v3983, %v4559
        %v4624 = vadd.f32 %v3984, %v4560
        %v4625 = vadd.f32 %v3985, %v4561
        %v4626 = vadd.f32 %v3986, %v4562
        %v4627 = vadd.f32 %v3987, %v4563
        %v4628 = vadd.f32 %v3988, %v4564
        %v4629 = vadd.f32 %v3989, %v4565
        %v4630 = vadd.f32 %v3990, %v4566
        %v4631 = vadd.f32 %v3991, %v4567
        %v4632 = vadd.f32 %v3992, %v4568
        %v4633 = vadd.f32 %v3993, %v4569
        %v4634 = vadd.f32 %v3994, %v4570
        %v4635 = vadd.f32 %v3995, %v4571
        %v4636 = vadd.f32 %v3996, %v4572
        %v4637 = vadd.f32 %v3997, %v4573
        %v4638 = vadd.f32 %v3998, %v4574
        %v4639 = vadd.f32 %v3999, %v4575
        %v4640 = vadd.f32 %v4000, %v4576
        %v4641 = vadd.f32 %v4001, %v4577
        %v4642 = vadd.f32 %v4002, %v4578
        %v4643 = vadd.f32 %v4003, %v4579
        %v4644 = vadd.f32 %v4004, %v4580
        %v4645 = vadd.f32 %v4005, %v4581
        %v4646 = vadd.f32 %v4006, %v4582
        %v4647 = vadd.f32 %v4007, %v4583
        %v4648 = vadd.f32 %v4008, %v4584
        %v4649 = vadd.f32 %v4009, %v4585
        %v4650 = vadd.f32 %v4010, %v4586
        %v4651 = vadd.f32 %v4011, %v4587
        %v4652 = vadd.f32 %v4012, %v4588
        %v4653 = vadd.f32 %v4013, %v4589
        %v4654 = vadd.f32 %v4014, %v4590
        %v4655 = vadd.f32 %v4015, %v4591
        %v4656 = vadd.f32 %v4016, %v4592
        %v4657 = vpack.c.bf16 %v4594, %v4593
        %v4658 = vpack.c.bf16 %v4596, %v4595
        %v4659 = vpack.c.bf16 %v4598, %v4597
        %v4660 = vpack.c.bf16 %v4600, %v4599
        %v4661 = vpack.c.bf16 %v4602, %v4601
        %v4662 = vpack.c.bf16 %v4604, %v4603
        %v4663 = vpack.c.bf16 %v4606, %v4605
        %v4664 = vpack.c.bf16 %v4608, %v4607
        %v4665 = vpack.c.bf16 %v4610, %v4609
        %v4666 = vpack.c.bf16 %v4612, %v4611
        %v4667 = vpack.c.bf16 %v4614, %v4613
        %v4668 = vpack.c.bf16 %v4616, %v4615
        %v4669 = vpack.c.bf16 %v4618, %v4617
        %v4670 = vpack.c.bf16 %v4620, %v4619
        %v4671 = vpack.c.bf16 %v4622, %v4621
        %v4672 = vpack.c.bf16 %v4624, %v4623
        %v4673 = vpack.c.bf16 %v4626, %v4625
        %v4674 = vpack.c.bf16 %v4628, %v4627
        %v4675 = vpack.c.bf16 %v4630, %v4629
        %v4676 = vpack.c.bf16 %v4632, %v4631
        %v4677 = vpack.c.bf16 %v4634, %v4633
        %v4678 = vpack.c.bf16 %v4636, %v4635
        %v4679 = vpack.c.bf16 %v4638, %v4637
        %v4680 = vpack.c.bf16 %v4640, %v4639
        %v4681 = vpack.c.bf16 %v4642, %v4641
        %v4682 = vpack.c.bf16 %v4644, %v4643
        %v4683 = vpack.c.bf16 %v4646, %v4645
        %v4684 = vpack.c.bf16 %v4648, %v4647
        %v4685 = vpack.c.bf16 %v4650, %v4649
        %v4686 = vpack.c.bf16 %v4652, %v4651
        %v4687 = vpack.c.bf16 %v4654, %v4653
        %v4688 = vpack.c.bf16 %v4656, %v4655
        %v4689 = vunpack.c.l.bf16 %v4657
        %v4690 = vunpack.c.h.bf16 %v4657
        %v4691 = vunpack.c.l.bf16 %v4658
        %v4692 = vunpack.c.h.bf16 %v4658
        %v4693 = vunpack.c.l.bf16 %v4659
        %v4694 = vunpack.c.h.bf16 %v4659
        %v4695 = vunpack.c.l.bf16 %v4660
        %v4696 = vunpack.c.h.bf16 %v4660
        %v4697 = vunpack.c.l.bf16 %v4661
        %v4698 = vunpack.c.h.bf16 %v4661
        %v4699 = vunpack.c.l.bf16 %v4662
        %v4700 = vunpack.c.h.bf16 %v4662
        %v4701 = vunpack.c.l.bf16 %v4663
        %v4702 = vunpack.c.h.bf16 %v4663
        %v4703 = vunpack.c.l.bf16 %v4664
        %v4704 = vunpack.c.h.bf16 %v4664
        %v4705 = vunpack.c.l.bf16 %v4665
        %v4706 = vunpack.c.h.bf16 %v4665
        %v4707 = vunpack.c.l.bf16 %v4666
        %v4708 = vunpack.c.h.bf16 %v4666
        %v4709 = vunpack.c.l.bf16 %v4667
        %v4710 = vunpack.c.h.bf16 %v4667
        %v4711 = vunpack.c.l.bf16 %v4668
        %v4712 = vunpack.c.h.bf16 %v4668
        %v4713 = vunpack.c.l.bf16 %v4669
        %v4714 = vunpack.c.h.bf16 %v4669
        %v4715 = vunpack.c.l.bf16 %v4670
        %v4716 = vunpack.c.h.bf16 %v4670
        %v4717 = vunpack.c.l.bf16 %v4671
        %v4718 = vunpack.c.h.bf16 %v4671
        %v4719 = vunpack.c.l.bf16 %v4672
        %v4720 = vunpack.c.h.bf16 %v4672
        %v4721 = vunpack.c.l.bf16 %v4673
        %v4722 = vunpack.c.h.bf16 %v4673
        %v4723 = vunpack.c.l.bf16 %v4674
        %v4724 = vunpack.c.h.bf16 %v4674
        %v4725 = vunpack.c.l.bf16 %v4675
        %v4726 = vunpack.c.h.bf16 %v4675
        %v4727 = vunpack.c.l.bf16 %v4676
        %v4728 = vunpack.c.h.bf16 %v4676
        %v4729 = vunpack.c.l.bf16 %v4677
        %v4730 = vunpack.c.h.bf16 %v4677
        %v4731 = vunpack.c.l.bf16 %v4678
        %v4732 = vunpack.c.h.bf16 %v4678
        %v4733 = vunpack.c.l.bf16 %v4679
        %v4734 = vunpack.c.h.bf16 %v4679
        %v4735 = vunpack.c.l.bf16 %v4680
        %v4736 = vunpack.c.h.bf16 %v4680
        %v4737 = vunpack.c.l.bf16 %v4681
        %v4738 = vunpack.c.h.bf16 %v4681
        %v4739 = vunpack.c.l.bf16 %v4682
        %v4740 = vunpack.c.h.bf16 %v4682
        %v4741 = vunpack.c.l.bf16 %v4683
        %v4742 = vunpack.c.h.bf16 %v4683
        %v4743 = vunpack.c.l.bf16 %v4684
        %v4744 = vunpack.c.h.bf16 %v4684
        %v4745 = vunpack.c.l.bf16 %v4685
        %v4746 = vunpack.c.h.bf16 %v4685
        %v4747 = vunpack.c.l.bf16 %v4686
        %v4748 = vunpack.c.h.bf16 %v4686
        %v4749 = vunpack.c.l.bf16 %v4687
        %v4750 = vunpack.c.h.bf16 %v4687
        %v4751 = vunpack.c.l.bf16 %v4688
        %v4752 = vunpack.c.h.bf16 %v4688
        %v4753 = vmul.f32 %v4689, 0.796875
        %v4754 = vmul.f32 %v4690, 0.796875
        %v4755 = vmul.f32 %v4691, 0.796875
        %v4756 = vmul.f32 %v4692, 0.796875
        %v4757 = vmul.f32 %v4693, 0.796875
        %v4758 = vmul.f32 %v4694, 0.796875
        %v4759 = vmul.f32 %v4695, 0.796875
        %v4760 = vmul.f32 %v4696, 0.796875
        %v4761 = vmul.f32 %v4697, 0.796875
        %v4762 = vmul.f32 %v4698, 0.796875
        %v4763 = vmul.f32 %v4699, 0.796875
        %v4764 = vmul.f32 %v4700, 0.796875
        %v4765 = vmul.f32 %v4701, 0.796875
        %v4766 = vmul.f32 %v4702, 0.796875
        %v4767 = vmul.f32 %v4703, 0.796875
        %v4768 = vmul.f32 %v4704, 0.796875
        %v4769 = vmul.f32 %v4705, 0.796875
        %v4770 = vmul.f32 %v4706, 0.796875
        %v4771 = vmul.f32 %v4707, 0.796875
        %v4772 = vmul.f32 %v4708, 0.796875
        %v4773 = vmul.f32 %v4709, 0.796875
        %v4774 = vmul.f32 %v4710, 0.796875
        %v4775 = vmul.f32 %v4711, 0.796875
        %v4776 = vmul.f32 %v4712, 0.796875
        %v4777 = vmul.f32 %v4713, 0.796875
        %v4778 = vmul.f32 %v4714, 0.796875
        %v4779 = vmul.f32 %v4715, 0.796875
        %v4780 = vmul.f32 %v4716, 0.796875
        %v4781 = vmul.f32 %v4717, 0.796875
        %v4782 = vmul.f32 %v4718, 0.796875
        %v4783 = vmul.f32 %v4719, 0.796875
        %v4784 = vmul.f32 %v4720, 0.796875
        %v4785 = vmul.f32 %v4721, 0.796875
        %v4786 = vmul.f32 %v4722, 0.796875
        %v4787 = vmul.f32 %v4723, 0.796875
        %v4788 = vmul.f32 %v4724, 0.796875
        %v4789 = vmul.f32 %v4725, 0.796875
        %v4790 = vmul.f32 %v4726, 0.796875
        %v4791 = vmul.f32 %v4727, 0.796875
        %v4792 = vmul.f32 %v4728, 0.796875
        %v4793 = vmul.f32 %v4729, 0.796875
        %v4794 = vmul.f32 %v4730, 0.796875
        %v4795 = vmul.f32 %v4731, 0.796875
        %v4796 = vmul.f32 %v4732, 0.796875
        %v4797 = vmul.f32 %v4733, 0.796875
        %v4798 = vmul.f32 %v4734, 0.796875
        %v4799 = vmul.f32 %v4735, 0.796875
        %v4800 = vmul.f32 %v4736, 0.796875
        %v4801 = vmul.f32 %v4737, 0.796875
        %v4802 = vmul.f32 %v4738, 0.796875
        %v4803 = vmul.f32 %v4739, 0.796875
        %v4804 = vmul.f32 %v4740, 0.796875
        %v4805 = vmul.f32 %v4741, 0.796875
        %v4806 = vmul.f32 %v4742, 0.796875
        %v4807 = vmul.f32 %v4743, 0.796875
        %v4808 = vmul.f32 %v4744, 0.796875
        %v4809 = vmul.f32 %v4745, 0.796875
        %v4810 = vmul.f32 %v4746, 0.796875
        %v4811 = vmul.f32 %v4747, 0.796875
        %v4812 = vmul.f32 %v4748, 0.796875
        %v4813 = vmul.f32 %v4749, 0.796875
        %v4814 = vmul.f32 %v4750, 0.796875
        %v4815 = vmul.f32 %v4751, 0.796875
        %v4816 = vmul.f32 %v4752, 0.796875
        %v4817 = vpack.c.bf16 %v4754, %v4753
        %v4818 = vpack.c.bf16 %v4756, %v4755
        %v4819 = vpack.c.bf16 %v4758, %v4757
        %v4820 = vpack.c.bf16 %v4760, %v4759
        %v4821 = vpack.c.bf16 %v4762, %v4761
        %v4822 = vpack.c.bf16 %v4764, %v4763
        %v4823 = vpack.c.bf16 %v4766, %v4765
        %v4824 = vpack.c.bf16 %v4768, %v4767
        %v4825 = vpack.c.bf16 %v4770, %v4769
        %v4826 = vpack.c.bf16 %v4772, %v4771
        %v4827 = vpack.c.bf16 %v4774, %v4773
        %v4828 = vpack.c.bf16 %v4776, %v4775
        %v4829 = vpack.c.bf16 %v4778, %v4777
        %v4830 = vpack.c.bf16 %v4780, %v4779
        %v4831 = vpack.c.bf16 %v4782, %v4781
        %v4832 = vpack.c.bf16 %v4784, %v4783
        %v4833 = vpack.c.bf16 %v4786, %v4785
        %v4834 = vpack.c.bf16 %v4788, %v4787
        %v4835 = vpack.c.bf16 %v4790, %v4789
        %v4836 = vpack.c.bf16 %v4792, %v4791
        %v4837 = vpack.c.bf16 %v4794, %v4793
        %v4838 = vpack.c.bf16 %v4796, %v4795
        %v4839 = vpack.c.bf16 %v4798, %v4797
        %v4840 = vpack.c.bf16 %v4800, %v4799
        %v4841 = vpack.c.bf16 %v4802, %v4801
        %v4842 = vpack.c.bf16 %v4804, %v4803
        %v4843 = vpack.c.bf16 %v4806, %v4805
        %v4844 = vpack.c.bf16 %v4808, %v4807
        %v4845 = vpack.c.bf16 %v4810, %v4809
        %v4846 = vpack.c.bf16 %v4812, %v4811
        %v4847 = vpack.c.bf16 %v4814, %v4813
        %v4848 = vpack.c.bf16 %v4816, %v4815
        %v4849 = vunpack.c.l.bf16 %v4817
        %v4850 = vunpack.c.h.bf16 %v4817
        %v4851 = vunpack.c.l.bf16 %v4818
        %v4852 = vunpack.c.h.bf16 %v4818
        %v4853 = vunpack.c.l.bf16 %v4819
        %v4854 = vunpack.c.h.bf16 %v4819
        %v4855 = vunpack.c.l.bf16 %v4820
        %v4856 = vunpack.c.h.bf16 %v4820
        %v4857 = vunpack.c.l.bf16 %v4821
        %v4858 = vunpack.c.h.bf16 %v4821
        %v4859 = vunpack.c.l.bf16 %v4822
        %v4860 = vunpack.c.h.bf16 %v4822
        %v4861 = vunpack.c.l.bf16 %v4823
        %v4862 = vunpack.c.h.bf16 %v4823
        %v4863 = vunpack.c.l.bf16 %v4824
        %v4864 = vunpack.c.h.bf16 %v4824
        %v4865 = vunpack.c.l.bf16 %v4825
        %v4866 = vunpack.c.h.bf16 %v4825
        %v4867 = vunpack.c.l.bf16 %v4826
        %v4868 = vunpack.c.h.bf16 %v4826
        %v4869 = vunpack.c.l.bf16 %v4827
        %v4870 = vunpack.c.h.bf16 %v4827
        %v4871 = vunpack.c.l.bf16 %v4828
        %v4872 = vunpack.c.h.bf16 %v4828
        %v4873 = vunpack.c.l.bf16 %v4829
        %v4874 = vunpack.c.h.bf16 %v4829
        %v4875 = vunpack.c.l.bf16 %v4830
        %v4876 = vunpack.c.h.bf16 %v4830
        %v4877 = vunpack.c.l.bf16 %v4831
        %v4878 = vunpack.c.h.bf16 %v4831
        %v4879 = vunpack.c.l.bf16 %v4832
        %v4880 = vunpack.c.h.bf16 %v4832
        %v4881 = vunpack.c.l.bf16 %v4833
        %v4882 = vunpack.c.h.bf16 %v4833
        %v4883 = vunpack.c.l.bf16 %v4834
        %v4884 = vunpack.c.h.bf16 %v4834
        %v4885 = vunpack.c.l.bf16 %v4835
        %v4886 = vunpack.c.h.bf16 %v4835
        %v4887 = vunpack.c.l.bf16 %v4836
        %v4888 = vunpack.c.h.bf16 %v4836
        %v4889 = vunpack.c.l.bf16 %v4837
        %v4890 = vunpack.c.h.bf16 %v4837
        %v4891 = vunpack.c.l.bf16 %v4838
        %v4892 = vunpack.c.h.bf16 %v4838
        %v4893 = vunpack.c.l.bf16 %v4839
        %v4894 = vunpack.c.h.bf16 %v4839
        %v4895 = vunpack.c.l.bf16 %v4840
        %v4896 = vunpack.c.h.bf16 %v4840
        %v4897 = vunpack.c.l.bf16 %v4841
        %v4898 = vunpack.c.h.bf16 %v4841
        %v4899 = vunpack.c.l.bf16 %v4842
        %v4900 = vunpack.c.h.bf16 %v4842
        %v4901 = vunpack.c.l.bf16 %v4843
        %v4902 = vunpack.c.h.bf16 %v4843
        %v4903 = vunpack.c.l.bf16 %v4844
        %v4904 = vunpack.c.h.bf16 %v4844
        %v4905 = vunpack.c.l.bf16 %v4845
        %v4906 = vunpack.c.h.bf16 %v4845
        %v4907 = vunpack.c.l.bf16 %v4846
        %v4908 = vunpack.c.h.bf16 %v4846
        %v4909 = vunpack.c.l.bf16 %v4847
        %v4910 = vunpack.c.h.bf16 %v4847
        %v4911 = vunpack.c.l.bf16 %v4848
        %v4912 = vunpack.c.h.bf16 %v4848
        %v4913 = vtanh.pop %v4849
        %v4914 = vtanh.pop %v4850
        %v4915 = vtanh.pop %v4851
        %v4916 = vtanh.pop %v4852
        %v4917 = vtanh.pop %v4853
        %v4918 = vtanh.pop %v4854
        %v4919 = vtanh.pop %v4855
        %v4920 = vtanh.pop %v4856
        %v4921 = vtanh.pop %v4857
        %v4922 = vtanh.pop %v4858
        %v4923 = vtanh.pop %v4859
        %v4924 = vtanh.pop %v4860
        %v4925 = vtanh.pop %v4861
        %v4926 = vtanh.pop %v4862
        %v4927 = vtanh.pop %v4863
        %v4928 = vtanh.pop %v4864
        %v4929 = vtanh.pop %v4865
        %v4930 = vtanh.pop %v4866
        %v4931 = vtanh.pop %v4867
        %v4932 = vtanh.pop %v4868
        %v4933 = vtanh.pop %v4869
        %v4934 = vtanh.pop %v4870
        %v4935 = vtanh.pop %v4871
        %v4936 = vtanh.pop %v4872
        %v4937 = vtanh.pop %v4873
        %v4938 = vtanh.pop %v4874
        %v4939 = vtanh.pop %v4875
        %v4940 = vtanh.pop %v4876
        %v4941 = vtanh.pop %v4877
        %v4942 = vtanh.pop %v4878
        %v4943 = vtanh.pop %v4879
        %v4944 = vtanh.pop %v4880
        %v4945 = vtanh.pop %v4881
        %v4946 = vtanh.pop %v4882
        %v4947 = vtanh.pop %v4883
        %v4948 = vtanh.pop %v4884
        %v4949 = vtanh.pop %v4885
        %v4950 = vtanh.pop %v4886
        %v4951 = vtanh.pop %v4887
        %v4952 = vtanh.pop %v4888
        %v4953 = vtanh.pop %v4889
        %v4954 = vtanh.pop %v4890
        %v4955 = vtanh.pop %v4891
        %v4956 = vtanh.pop %v4892
        %v4957 = vtanh.pop %v4893
        %v4958 = vtanh.pop %v4894
        %v4959 = vtanh.pop %v4895
        %v4960 = vtanh.pop %v4896
        %v4961 = vtanh.pop %v4897
        %v4962 = vtanh.pop %v4898
        %v4963 = vtanh.pop %v4899
        %v4964 = vtanh.pop %v4900
        %v4965 = vtanh.pop %v4901
        %v4966 = vtanh.pop %v4902
        %v4967 = vtanh.pop %v4903
        %v4968 = vtanh.pop %v4904
        %v4969 = vtanh.pop %v4905
        %v4970 = vtanh.pop %v4906
        %v4971 = vtanh.pop %v4907
        %v4972 = vtanh.pop %v4908
        %v4973 = vtanh.pop %v4909
        %v4974 = vtanh.pop %v4910
        %v4975 = vtanh.pop %v4911
        %v4976 = vtanh.pop %v4912
        %v4977 = vpack.c.bf16 %v4914, %v4913
        %v4978 = vpack.c.bf16 %v4916, %v4915
        %v4979 = vpack.c.bf16 %v4918, %v4917
        %v4980 = vpack.c.bf16 %v4920, %v4919
        %v4981 = vpack.c.bf16 %v4922, %v4921
        %v4982 = vpack.c.bf16 %v4924, %v4923
        %v4983 = vpack.c.bf16 %v4926, %v4925
        %v4984 = vpack.c.bf16 %v4928, %v4927
        %v4985 = vpack.c.bf16 %v4930, %v4929
        %v4986 = vpack.c.bf16 %v4932, %v4931
        %v4987 = vpack.c.bf16 %v4934, %v4933
        %v4988 = vpack.c.bf16 %v4936, %v4935
        %v4989 = vpack.c.bf16 %v4938, %v4937
        %v4990 = vpack.c.bf16 %v4940, %v4939
        %v4991 = vpack.c.bf16 %v4942, %v4941
        %v4992 = vpack.c.bf16 %v4944, %v4943
        %v4993 = vpack.c.bf16 %v4946, %v4945
        %v4994 = vpack.c.bf16 %v4948, %v4947
        %v4995 = vpack.c.bf16 %v4950, %v4949
        %v4996 = vpack.c.bf16 %v4952, %v4951
        %v4997 = vpack.c.bf16 %v4954, %v4953
        %v4998 = vpack.c.bf16 %v4956, %v4955
        %v4999 = vpack.c.bf16 %v4958, %v4957
        %v5000 = vpack.c.bf16 %v4960, %v4959
        %v5001 = vpack.c.bf16 %v4962, %v4961
        %v5002 = vpack.c.bf16 %v4964, %v4963
        %v5003 = vpack.c.bf16 %v4966, %v4965
        %v5004 = vpack.c.bf16 %v4968, %v4967
        %v5005 = vpack.c.bf16 %v4970, %v4969
        %v5006 = vpack.c.bf16 %v4972, %v4971
        %v5007 = vpack.c.bf16 %v4974, %v4973
        %v5008 = vpack.c.bf16 %v4976, %v4975
        %v5009 = vunpack.c.l.bf16 %v4977
        %v5010 = vunpack.c.h.bf16 %v4977
        %v5011 = vunpack.c.l.bf16 %v4978
        %v5012 = vunpack.c.h.bf16 %v4978
        %v5013 = vunpack.c.l.bf16 %v4979
        %v5014 = vunpack.c.h.bf16 %v4979
        %v5015 = vunpack.c.l.bf16 %v4980
        %v5016 = vunpack.c.h.bf16 %v4980
        %v5017 = vunpack.c.l.bf16 %v4981
        %v5018 = vunpack.c.h.bf16 %v4981
        %v5019 = vunpack.c.l.bf16 %v4982
        %v5020 = vunpack.c.h.bf16 %v4982
        %v5021 = vunpack.c.l.bf16 %v4983
        %v5022 = vunpack.c.h.bf16 %v4983
        %v5023 = vunpack.c.l.bf16 %v4984
        %v5024 = vunpack.c.h.bf16 %v4984
        %v5025 = vunpack.c.l.bf16 %v4985
        %v5026 = vunpack.c.h.bf16 %v4985
        %v5027 = vunpack.c.l.bf16 %v4986
        %v5028 = vunpack.c.h.bf16 %v4986
        %v5029 = vunpack.c.l.bf16 %v4987
        %v5030 = vunpack.c.h.bf16 %v4987
        %v5031 = vunpack.c.l.bf16 %v4988
        %v5032 = vunpack.c.h.bf16 %v4988
        %v5033 = vunpack.c.l.bf16 %v4989
        %v5034 = vunpack.c.h.bf16 %v4989
        %v5035 = vunpack.c.l.bf16 %v4990
        %v5036 = vunpack.c.h.bf16 %v4990
        %v5037 = vunpack.c.l.bf16 %v4991
        %v5038 = vunpack.c.h.bf16 %v4991
        %v5039 = vunpack.c.l.bf16 %v4992
        %v5040 = vunpack.c.h.bf16 %v4992
        %v5041 = vunpack.c.l.bf16 %v4993
        %v5042 = vunpack.c.h.bf16 %v4993
        %v5043 = vunpack.c.l.bf16 %v4994
        %v5044 = vunpack.c.h.bf16 %v4994
        %v5045 = vunpack.c.l.bf16 %v4995
        %v5046 = vunpack.c.h.bf16 %v4995
        %v5047 = vunpack.c.l.bf16 %v4996
        %v5048 = vunpack.c.h.bf16 %v4996
        %v5049 = vunpack.c.l.bf16 %v4997
        %v5050 = vunpack.c.h.bf16 %v4997
        %v5051 = vunpack.c.l.bf16 %v4998
        %v5052 = vunpack.c.h.bf16 %v4998
        %v5053 = vunpack.c.l.bf16 %v4999
        %v5054 = vunpack.c.h.bf16 %v4999
        %v5055 = vunpack.c.l.bf16 %v5000
        %v5056 = vunpack.c.h.bf16 %v5000
        %v5057 = vunpack.c.l.bf16 %v5001
        %v5058 = vunpack.c.h.bf16 %v5001
        %v5059 = vunpack.c.l.bf16 %v5002
        %v5060 = vunpack.c.h.bf16 %v5002
        %v5061 = vunpack.c.l.bf16 %v5003
        %v5062 = vunpack.c.h.bf16 %v5003
        %v5063 = vunpack.c.l.bf16 %v5004
        %v5064 = vunpack.c.h.bf16 %v5004
        %v5065 = vunpack.c.l.bf16 %v5005
        %v5066 = vunpack.c.h.bf16 %v5005
        %v5067 = vunpack.c.l.bf16 %v5006
        %v5068 = vunpack.c.h.bf16 %v5006
        %v5069 = vunpack.c.l.bf16 %v5007
        %v5070 = vunpack.c.h.bf16 %v5007
        %v5071 = vunpack.c.l.bf16 %v5008
        %v5072 = vunpack.c.h.bf16 %v5008
        %v5073 = vadd.f32 %v5009, 1.0
        %v5074 = vadd.f32 %v5010, 1.0
        %v5075 = vadd.f32 %v5011, 1.0
        %v5076 = vadd.f32 %v5012, 1.0
        %v5077 = vadd.f32 %v5013, 1.0
        %v5078 = vadd.f32 %v5014, 1.0
        %v5079 = vadd.f32 %v5015, 1.0
        %v5080 = vadd.f32 %v5016, 1.0
        %v5081 = vadd.f32 %v5017, 1.0
        %v5082 = vadd.f32 %v5018, 1.0
        %v5083 = vadd.f32 %v5019, 1.0
        %v5084 = vadd.f32 %v5020, 1.0
        %v5085 = vadd.f32 %v5021, 1.0
        %v5086 = vadd.f32 %v5022, 1.0
        %v5087 = vadd.f32 %v5023, 1.0
        %v5088 = vadd.f32 %v5024, 1.0
        %v5089 = vadd.f32 %v5025, 1.0
        %v5090 = vadd.f32 %v5026, 1.0
        %v5091 = vadd.f32 %v5027, 1.0
        %v5092 = vadd.f32 %v5028, 1.0
        %v5093 = vadd.f32 %v5029, 1.0
        %v5094 = vadd.f32 %v5030, 1.0
        %v5095 = vadd.f32 %v5031, 1.0
        %v5096 = vadd.f32 %v5032, 1.0
        %v5097 = vadd.f32 %v5033, 1.0
        %v5098 = vadd.f32 %v5034, 1.0
        %v5099 = vadd.f32 %v5035, 1.0
        %v5100 = vadd.f32 %v5036, 1.0
        %v5101 = vadd.f32 %v5037, 1.0
        %v5102 = vadd.f32 %v5038, 1.0
        %v5103 = vadd.f32 %v5039, 1.0
        %v5104 = vadd.f32 %v5040, 1.0
        %v5105 = vadd.f32 %v5041, 1.0
        %v5106 = vadd.f32 %v5042, 1.0
        %v5107 = vadd.f32 %v5043, 1.0
        %v5108 = vadd.f32 %v5044, 1.0
        %v5109 = vadd.f32 %v5045, 1.0
        %v5110 = vadd.f32 %v5046, 1.0
        %v5111 = vadd.f32 %v5047, 1.0
        %v5112 = vadd.f32 %v5048, 1.0
        %v5113 = vadd.f32 %v5049, 1.0
        %v5114 = vadd.f32 %v5050, 1.0
        %v5115 = vadd.f32 %v5051, 1.0
        %v5116 = vadd.f32 %v5052, 1.0
        %v5117 = vadd.f32 %v5053, 1.0
        %v5118 = vadd.f32 %v5054, 1.0
        %v5119 = vadd.f32 %v5055, 1.0
        %v5120 = vadd.f32 %v5056, 1.0
        %v5121 = vadd.f32 %v5057, 1.0
        %v5122 = vadd.f32 %v5058, 1.0
        %v5123 = vadd.f32 %v5059, 1.0
        %v5124 = vadd.f32 %v5060, 1.0
        %v5125 = vadd.f32 %v5061, 1.0
        %v5126 = vadd.f32 %v5062, 1.0
        %v5127 = vadd.f32 %v5063, 1.0
        %v5128 = vadd.f32 %v5064, 1.0
        %v5129 = vadd.f32 %v5065, 1.0
        %v5130 = vadd.f32 %v5066, 1.0
        %v5131 = vadd.f32 %v5067, 1.0
        %v5132 = vadd.f32 %v5068, 1.0
        %v5133 = vadd.f32 %v5069, 1.0
        %v5134 = vadd.f32 %v5070, 1.0
        %v5135 = vadd.f32 %v5071, 1.0
        %v5136 = vadd.f32 %v5072, 1.0
        %v5137 = vpack.c.bf16 %v5074, %v5073
        %v5138 = vpack.c.bf16 %v5076, %v5075
        %v5139 = vpack.c.bf16 %v5078, %v5077
        %v5140 = vpack.c.bf16 %v5080, %v5079
        %v5141 = vpack.c.bf16 %v5082, %v5081
        %v5142 = vpack.c.bf16 %v5084, %v5083
        %v5143 = vpack.c.bf16 %v5086, %v5085
        %v5144 = vpack.c.bf16 %v5088, %v5087
        %v5145 = vpack.c.bf16 %v5090, %v5089
        %v5146 = vpack.c.bf16 %v5092, %v5091
        %v5147 = vpack.c.bf16 %v5094, %v5093
        %v5148 = vpack.c.bf16 %v5096, %v5095
        %v5149 = vpack.c.bf16 %v5098, %v5097
        %v5150 = vpack.c.bf16 %v5100, %v5099
        %v5151 = vpack.c.bf16 %v5102, %v5101
        %v5152 = vpack.c.bf16 %v5104, %v5103
        %v5153 = vpack.c.bf16 %v5106, %v5105
        %v5154 = vpack.c.bf16 %v5108, %v5107
        %v5155 = vpack.c.bf16 %v5110, %v5109
        %v5156 = vpack.c.bf16 %v5112, %v5111
        %v5157 = vpack.c.bf16 %v5114, %v5113
        %v5158 = vpack.c.bf16 %v5116, %v5115
        %v5159 = vpack.c.bf16 %v5118, %v5117
        %v5160 = vpack.c.bf16 %v5120, %v5119
        %v5161 = vpack.c.bf16 %v5122, %v5121
        %v5162 = vpack.c.bf16 %v5124, %v5123
        %v5163 = vpack.c.bf16 %v5126, %v5125
        %v5164 = vpack.c.bf16 %v5128, %v5127
        %v5165 = vpack.c.bf16 %v5130, %v5129
        %v5166 = vpack.c.bf16 %v5132, %v5131
        %v5167 = vpack.c.bf16 %v5134, %v5133
        %v5168 = vpack.c.bf16 %v5136, %v5135
        %v5169 = vunpack.c.l.bf16 %v4081
        %v5170 = vunpack.c.h.bf16 %v4081
        %v5171 = vunpack.c.l.bf16 %v4082
        %v5172 = vunpack.c.h.bf16 %v4082
        %v5173 = vunpack.c.l.bf16 %v4083
        %v5174 = vunpack.c.h.bf16 %v4083
        %v5175 = vunpack.c.l.bf16 %v4084
        %v5176 = vunpack.c.h.bf16 %v4084
        %v5177 = vunpack.c.l.bf16 %v4085
        %v5178 = vunpack.c.h.bf16 %v4085
        %v5179 = vunpack.c.l.bf16 %v4086
        %v5180 = vunpack.c.h.bf16 %v4086
        %v5181 = vunpack.c.l.bf16 %v4087
        %v5182 = vunpack.c.h.bf16 %v4087
        %v5183 = vunpack.c.l.bf16 %v4088
        %v5184 = vunpack.c.h.bf16 %v4088
        %v5185 = vunpack.c.l.bf16 %v4089
        %v5186 = vunpack.c.h.bf16 %v4089
        %v5187 = vunpack.c.l.bf16 %v4090
        %v5188 = vunpack.c.h.bf16 %v4090
        %v5189 = vunpack.c.l.bf16 %v4091
        %v5190 = vunpack.c.h.bf16 %v4091
        %v5191 = vunpack.c.l.bf16 %v4092
        %v5192 = vunpack.c.h.bf16 %v4092
        %v5193 = vunpack.c.l.bf16 %v4093
        %v5194 = vunpack.c.h.bf16 %v4093
        %v5195 = vunpack.c.l.bf16 %v4094
        %v5196 = vunpack.c.h.bf16 %v4094
        %v5197 = vunpack.c.l.bf16 %v4095
        %v5198 = vunpack.c.h.bf16 %v4095
        %v5199 = vunpack.c.l.bf16 %v4096
        %v5200 = vunpack.c.h.bf16 %v4096
        %v5201 = vunpack.c.l.bf16 %v4097
        %v5202 = vunpack.c.h.bf16 %v4097
        %v5203 = vunpack.c.l.bf16 %v4098
        %v5204 = vunpack.c.h.bf16 %v4098
        %v5205 = vunpack.c.l.bf16 %v4099
        %v5206 = vunpack.c.h.bf16 %v4099
        %v5207 = vunpack.c.l.bf16 %v4100
        %v5208 = vunpack.c.h.bf16 %v4100
        %v5209 = vunpack.c.l.bf16 %v4101
        %v5210 = vunpack.c.h.bf16 %v4101
        %v5211 = vunpack.c.l.bf16 %v4102
        %v5212 = vunpack.c.h.bf16 %v4102
        %v5213 = vunpack.c.l.bf16 %v4103
        %v5214 = vunpack.c.h.bf16 %v4103
        %v5215 = vunpack.c.l.bf16 %v4104
        %v5216 = vunpack.c.h.bf16 %v4104
        %v5217 = vunpack.c.l.bf16 %v4105
        %v5218 = vunpack.c.h.bf16 %v4105
        %v5219 = vunpack.c.l.bf16 %v4106
        %v5220 = vunpack.c.h.bf16 %v4106
        %v5221 = vunpack.c.l.bf16 %v4107
        %v5222 = vunpack.c.h.bf16 %v4107
        %v5223 = vunpack.c.l.bf16 %v4108
        %v5224 = vunpack.c.h.bf16 %v4108
        %v5225 = vunpack.c.l.bf16 %v4109
        %v5226 = vunpack.c.h.bf16 %v4109
        %v5227 = vunpack.c.l.bf16 %v4110
        %v5228 = vunpack.c.h.bf16 %v4110
        %v5229 = vunpack.c.l.bf16 %v4111
        %v5230 = vunpack.c.h.bf16 %v4111
        %v5231 = vunpack.c.l.bf16 %v4112
        %v5232 = vunpack.c.h.bf16 %v4112
        %v5233 = vunpack.c.l.bf16 %v5137
        %v5234 = vunpack.c.h.bf16 %v5137
        %v5235 = vunpack.c.l.bf16 %v5138
        %v5236 = vunpack.c.h.bf16 %v5138
        %v5237 = vunpack.c.l.bf16 %v5139
        %v5238 = vunpack.c.h.bf16 %v5139
        %v5239 = vunpack.c.l.bf16 %v5140
        %v5240 = vunpack.c.h.bf16 %v5140
        %v5241 = vunpack.c.l.bf16 %v5141
        %v5242 = vunpack.c.h.bf16 %v5141
        %v5243 = vunpack.c.l.bf16 %v5142
        %v5244 = vunpack.c.h.bf16 %v5142
        %v5245 = vunpack.c.l.bf16 %v5143
        %v5246 = vunpack.c.h.bf16 %v5143
        %v5247 = vunpack.c.l.bf16 %v5144
        %v5248 = vunpack.c.h.bf16 %v5144
        %v5249 = vunpack.c.l.bf16 %v5145
        %v5250 = vunpack.c.h.bf16 %v5145
        %v5251 = vunpack.c.l.bf16 %v5146
        %v5252 = vunpack.c.h.bf16 %v5146
        %v5253 = vunpack.c.l.bf16 %v5147
        %v5254 = vunpack.c.h.bf16 %v5147
        %v5255 = vunpack.c.l.bf16 %v5148
        %v5256 = vunpack.c.h.bf16 %v5148
        %v5257 = vunpack.c.l.bf16 %v5149
        %v5258 = vunpack.c.h.bf16 %v5149
        %v5259 = vunpack.c.l.bf16 %v5150
        %v5260 = vunpack.c.h.bf16 %v5150
        %v5261 = vunpack.c.l.bf16 %v5151
        %v5262 = vunpack.c.h.bf16 %v5151
        %v5263 = vunpack.c.l.bf16 %v5152
        %v5264 = vunpack.c.h.bf16 %v5152
        %v5265 = vunpack.c.l.bf16 %v5153
        %v5266 = vunpack.c.h.bf16 %v5153
        %v5267 = vunpack.c.l.bf16 %v5154
        %v5268 = vunpack.c.h.bf16 %v5154
        %v5269 = vunpack.c.l.bf16 %v5155
        %v5270 = vunpack.c.h.bf16 %v5155
        %v5271 = vunpack.c.l.bf16 %v5156
        %v5272 = vunpack.c.h.bf16 %v5156
        %v5273 = vunpack.c.l.bf16 %v5157
        %v5274 = vunpack.c.h.bf16 %v5157
        %v5275 = vunpack.c.l.bf16 %v5158
        %v5276 = vunpack.c.h.bf16 %v5158
        %v5277 = vunpack.c.l.bf16 %v5159
        %v5278 = vunpack.c.h.bf16 %v5159
        %v5279 = vunpack.c.l.bf16 %v5160
        %v5280 = vunpack.c.h.bf16 %v5160
        %v5281 = vunpack.c.l.bf16 %v5161
        %v5282 = vunpack.c.h.bf16 %v5161
        %v5283 = vunpack.c.l.bf16 %v5162
        %v5284 = vunpack.c.h.bf16 %v5162
        %v5285 = vunpack.c.l.bf16 %v5163
        %v5286 = vunpack.c.h.bf16 %v5163
        %v5287 = vunpack.c.l.bf16 %v5164
        %v5288 = vunpack.c.h.bf16 %v5164
        %v5289 = vunpack.c.l.bf16 %v5165
        %v5290 = vunpack.c.h.bf16 %v5165
        %v5291 = vunpack.c.l.bf16 %v5166
        %v5292 = vunpack.c.h.bf16 %v5166
        %v5293 = vunpack.c.l.bf16 %v5167
        %v5294 = vunpack.c.h.bf16 %v5167
        %v5295 = vunpack.c.l.bf16 %v5168
        %v5296 = vunpack.c.h.bf16 %v5168
        %v5297 = vmul.f32 %v5169, %v5233
        %v5298 = vmul.f32 %v5170, %v5234
        %v5299 = vmul.f32 %v5171, %v5235
        %v5300 = vmul.f32 %v5172, %v5236
        %v5301 = vmul.f32 %v5173, %v5237
        %v5302 = vmul.f32 %v5174, %v5238
        %v5303 = vmul.f32 %v5175, %v5239
        %v5304 = vmul.f32 %v5176, %v5240
        %v5305 = vmul.f32 %v5177, %v5241
        %v5306 = vmul.f32 %v5178, %v5242
        %v5307 = vmul.f32 %v5179, %v5243
        %v5308 = vmul.f32 %v5180, %v5244
        %v5309 = vmul.f32 %v5181, %v5245
        %v5310 = vmul.f32 %v5182, %v5246
        %v5311 = vmul.f32 %v5183, %v5247
        %v5312 = vmul.f32 %v5184, %v5248
        %v5313 = vmul.f32 %v5185, %v5249
        %v5314 = vmul.f32 %v5186, %v5250
        %v5315 = vmul.f32 %v5187, %v5251
        %v5316 = vmul.f32 %v5188, %v5252
        %v5317 = vmul.f32 %v5189, %v5253
        %v5318 = vmul.f32 %v5190, %v5254
        %v5319 = vmul.f32 %v5191, %v5255
        %v5320 = vmul.f32 %v5192, %v5256
        %v5321 = vmul.f32 %v5193, %v5257
        %v5322 = vmul.f32 %v5194, %v5258
        %v5323 = vmul.f32 %v5195, %v5259
        %v5324 = vmul.f32 %v5196, %v5260
        %v5325 = vmul.f32 %v5197, %v5261
        %v5326 = vmul.f32 %v5198, %v5262
        %v5327 = vmul.f32 %v5199, %v5263
        %v5328 = vmul.f32 %v5200, %v5264
        %v5329 = vmul.f32 %v5201, %v5265
        %v5330 = vmul.f32 %v5202, %v5266
        %v5331 = vmul.f32 %v5203, %v5267
        %v5332 = vmul.f32 %v5204, %v5268
        %v5333 = vmul.f32 %v5205, %v5269
        %v5334 = vmul.f32 %v5206, %v5270
        %v5335 = vmul.f32 %v5207, %v5271
        %v5336 = vmul.f32 %v5208, %v5272
        %v5337 = vmul.f32 %v5209, %v5273
        %v5338 = vmul.f32 %v5210, %v5274
        %v5339 = vmul.f32 %v5211, %v5275
        %v5340 = vmul.f32 %v5212, %v5276
        %v5341 = vmul.f32 %v5213, %v5277
        %v5342 = vmul.f32 %v5214, %v5278
        %v5343 = vmul.f32 %v5215, %v5279
        %v5344 = vmul.f32 %v5216, %v5280
        %v5345 = vmul.f32 %v5217, %v5281
        %v5346 = vmul.f32 %v5218, %v5282
        %v5347 = vmul.f32 %v5219, %v5283
        %v5348 = vmul.f32 %v5220, %v5284
        %v5349 = vmul.f32 %v5221, %v5285
        %v5350 = vmul.f32 %v5222, %v5286
        %v5351 = vmul.f32 %v5223, %v5287
        %v5352 = vmul.f32 %v5224, %v5288
        %v5353 = vmul.f32 %v5225, %v5289
        %v5354 = vmul.f32 %v5226, %v5290
        %v5355 = vmul.f32 %v5227, %v5291
        %v5356 = vmul.f32 %v5228, %v5292
        %v5357 = vmul.f32 %v5229, %v5293
        %v5358 = vmul.f32 %v5230, %v5294
        %v5359 = vmul.f32 %v5231, %v5295
        %v5360 = vmul.f32 %v5232, %v5296
        %v5361 = vpack.c.bf16 %v5301, %v5297
        %v5362 = vpack.c.bf16 %v5302, %v5298
        %v5363 = vpack.c.bf16 %v5303, %v5299
        %v5364 = vpack.c.bf16 %v5304, %v5300
        %v5365 = vpack.c.bf16 %v5309, %v5305
        %v5366 = vpack.c.bf16 %v5310, %v5306
        %v5367 = vpack.c.bf16 %v5311, %v5307
        %v5368 = vpack.c.bf16 %v5312, %v5308
        %v5369 = vpack.c.bf16 %v5317, %v5313
        %v5370 = vpack.c.bf16 %v5318, %v5314
        %v5371 = vpack.c.bf16 %v5319, %v5315
        %v5372 = vpack.c.bf16 %v5320, %v5316
        %v5373 = vpack.c.bf16 %v5325, %v5321
        %v5374 = vpack.c.bf16 %v5326, %v5322
        %v5375 = vpack.c.bf16 %v5327, %v5323
        %v5376 = vpack.c.bf16 %v5328, %v5324
        %v5377 = vpack.c.bf16 %v5333, %v5329
        %v5378 = vpack.c.bf16 %v5334, %v5330
        %v5379 = vpack.c.bf16 %v5335, %v5331
        %v5380 = vpack.c.bf16 %v5336, %v5332
        %v5381 = vpack.c.bf16 %v5341, %v5337
        %v5382 = vpack.c.bf16 %v5342, %v5338
        %v5383 = vpack.c.bf16 %v5343, %v5339
        %v5384 = vpack.c.bf16 %v5344, %v5340
        %v5385 = vpack.c.bf16 %v5349, %v5345
        %v5386 = vpack.c.bf16 %v5350, %v5346
        %v5387 = vpack.c.bf16 %v5351, %v5347
        %v5388 = vpack.c.bf16 %v5352, %v5348
        %v5389 = vpack.c.bf16 %v5357, %v5353
        %v5390 = vpack.c.bf16 %v5358, %v5354
        %v5391 = vpack.c.bf16 %v5359, %v5355
        %v5392 = vpack.c.bf16 %v5360, %v5356
        %v5393 = vld [vmem:[#allocation14] sm:$0xf]
        %v5394 = vld [vmem:[#allocation14 + $0x4] sm:$0xf]
        %v5395 = vld [vmem:[#allocation14 + $0x8] sm:$0xf]
        %v5396 = vld [vmem:[#allocation14 + $0xc] sm:$0xf]
        %v5397 = vld [vmem:[#allocation14 + $0x10] sm:$0xf]
        %v5398 = vld [vmem:[#allocation14 + $0x14] sm:$0xf]
        %v5399 = vld [vmem:[#allocation14 + $0x18] sm:$0xf]
        %v5400 = vld [vmem:[#allocation14 + $0x1c] sm:$0xf]
        %v5401 = vld [vmem:[#allocation14 + $0x20] sm:$0xf]
        %v5402 = vld [vmem:[#allocation14 + $0x24] sm:$0xf]
        %v5403 = vld [vmem:[#allocation14 + $0x28] sm:$0xf]
        %v5404 = vld [vmem:[#allocation14 + $0x2c] sm:$0xf]
        %v5405 = vld [vmem:[#allocation14 + $0x30] sm:$0xf]
        %v5406 = vld [vmem:[#allocation14 + $0x34] sm:$0xf]
        %v5407 = vld [vmem:[#allocation14 + $0x38] sm:$0xf]
        %v5408 = vld [vmem:[#allocation14 + $0x3c] sm:$0xf]
        %v5409 = vld [vmem:[#allocation14 + $0x40] sm:$0xf]
        %v5410 = vld [vmem:[#allocation14 + $0x44] sm:$0xf]
        %v5411 = vld [vmem:[#allocation14 + $0x48] sm:$0xf]
        %v5412 = vld [vmem:[#allocation14 + $0x4c] sm:$0xf]
        %v5413 = vld [vmem:[#allocation14 + $0x50] sm:$0xf]
        %v5414 = vld [vmem:[#allocation14 + $0x54] sm:$0xf]
        %v5415 = vld [vmem:[#allocation14 + $0x58] sm:$0xf]
        %v5416 = vld [vmem:[#allocation14 + $0x5c] sm:$0xf]
        %v5417 = vld [vmem:[#allocation14 + $0x60] sm:$0xf]
        %v5418 = vld [vmem:[#allocation14 + $0x64] sm:$0xf]
        %v5419 = vld [vmem:[#allocation14 + $0x68] sm:$0xf]
        %v5420 = vld [vmem:[#allocation14 + $0x6c] sm:$0xf]
        %v5421 = vld [vmem:[#allocation14 + $0x70] sm:$0xf]
        %v5422 = vld [vmem:[#allocation14 + $0x74] sm:$0xf]
        %v5423 = vld [vmem:[#allocation14 + $0x78] sm:$0xf]
        %v5424 = vld [vmem:[#allocation14 + $0x7c] sm:$0xf]
        %v5425 = vld [vmem:[#allocation14 + $0x80] sm:$0xf]
        %v5426 = vld [vmem:[#allocation14 + $0x84] sm:$0xf]
        %v5427 = vld [vmem:[#allocation14 + $0x88] sm:$0xf]
        %v5428 = vld [vmem:[#allocation14 + $0x8c] sm:$0xf]
        %v5429 = vld [vmem:[#allocation14 + $0x90] sm:$0xf]
        %v5430 = vld [vmem:[#allocation14 + $0x94] sm:$0xf]
        %v5431 = vld [vmem:[#allocation14 + $0x98] sm:$0xf]
        %v5432 = vld [vmem:[#allocation14 + $0x9c] sm:$0xf]
        %v5433 = vld [vmem:[#allocation14 + $0xa0] sm:$0xf]
        %v5434 = vld [vmem:[#allocation14 + $0xa4] sm:$0xf]
        %v5435 = vld [vmem:[#allocation14 + $0xa8] sm:$0xf]
        %v5436 = vld [vmem:[#allocation14 + $0xac] sm:$0xf]
        %v5437 = vld [vmem:[#allocation14 + $0xb0] sm:$0xf]
        %v5438 = vld [vmem:[#allocation14 + $0xb4] sm:$0xf]
        %v5439 = vld [vmem:[#allocation14 + $0xb8] sm:$0xf]
        %v5440 = vld [vmem:[#allocation14 + $0xbc] sm:$0xf]
        %v5441 = vld [vmem:[#allocation14 + $0xc0] sm:$0xf]
        %v5442 = vld [vmem:[#allocation14 + $0xc4] sm:$0xf]
        %v5443 = vld [vmem:[#allocation14 + $0xc8] sm:$0xf]
        %v5444 = vld [vmem:[#allocation14 + $0xcc] sm:$0xf]
        %v5445 = vld [vmem:[#allocation14 + $0xd0] sm:$0xf]
        %v5446 = vld [vmem:[#allocation14 + $0xd4] sm:$0xf]
        %v5447 = vld [vmem:[#allocation14 + $0xd8] sm:$0xf]
        %v5448 = vld [vmem:[#allocation14 + $0xdc] sm:$0xf]
        %v5449 = vld [vmem:[#allocation14 + $0xe0] sm:$0xf]
        %v5450 = vld [vmem:[#allocation14 + $0xe4] sm:$0xf]
        %v5451 = vld [vmem:[#allocation14 + $0xe8] sm:$0xf]
        %v5452 = vld [vmem:[#allocation14 + $0xec] sm:$0xf]
        %v5453 = vld [vmem:[#allocation14 + $0xf0] sm:$0xf]
        %v5454 = vld [vmem:[#allocation14 + $0xf4] sm:$0xf]
        %v5455 = vld [vmem:[#allocation14 + $0xf8] sm:$0xf]
        %v5456 = vld [vmem:[#allocation14 + $0xfc] sm:$0xf]
        %v5457 = vld [vmem:[%s13] sm:$0x1]
        %v5459 = vperm.slane %v5457, 0
        %v5525 = vunpack.c.l.b16 %v5393
        %v5526 = vunpack.c.l.b16 %v5394
        %v5527 = vunpack.c.l.b16 %v5395
        %v5528 = vunpack.c.l.b16 %v5396
        %v5529 = vunpack.c.l.b16 %v5397
        %v5530 = vunpack.c.l.b16 %v5398
        %v5531 = vunpack.c.l.b16 %v5399
        %v5532 = vunpack.c.l.b16 %v5400
        %v5533 = vunpack.c.l.b16 %v5401
        %v5534 = vunpack.c.l.b16 %v5402
        %v5535 = vunpack.c.l.b16 %v5403
        %v5536 = vunpack.c.l.b16 %v5404
        %v5537 = vunpack.c.l.b16 %v5405
        %v5538 = vunpack.c.l.b16 %v5406
        %v5539 = vunpack.c.l.b16 %v5407
        %v5540 = vunpack.c.l.b16 %v5408
        %v5541 = vunpack.c.l.b16 %v5409
        %v5542 = vunpack.c.l.b16 %v5410
        %v5543 = vunpack.c.l.b16 %v5411
        %v5544 = vunpack.c.l.b16 %v5412
        %v5545 = vunpack.c.l.b16 %v5413
        %v5546 = vunpack.c.l.b16 %v5414
        %v5547 = vunpack.c.l.b16 %v5415
        %v5548 = vunpack.c.l.b16 %v5416
        %v5549 = vunpack.c.l.b16 %v5417
        %v5550 = vunpack.c.l.b16 %v5418
        %v5551 = vunpack.c.l.b16 %v5419
        %v5552 = vunpack.c.l.b16 %v5420
        %v5553 = vunpack.c.l.b16 %v5421
        %v5554 = vunpack.c.l.b16 %v5422
        %v5555 = vunpack.c.l.b16 %v5423
        %v5556 = vunpack.c.l.b16 %v5424
        %v5557 = vunpack.c.l.b16 %v5425
        %v5558 = vunpack.c.l.b16 %v5426
        %v5559 = vunpack.c.l.b16 %v5427
        %v5560 = vunpack.c.l.b16 %v5428
        %v5561 = vunpack.c.l.b16 %v5429
        %v5562 = vunpack.c.l.b16 %v5430
        %v5563 = vunpack.c.l.b16 %v5431
        %v5564 = vunpack.c.l.b16 %v5432
        %v5565 = vunpack.c.l.b16 %v5433
        %v5566 = vunpack.c.l.b16 %v5434
        %v5567 = vunpack.c.l.b16 %v5435
        %v5568 = vunpack.c.l.b16 %v5436
        %v5569 = vunpack.c.l.b16 %v5437
        %v5570 = vunpack.c.l.b16 %v5438
        %v5571 = vunpack.c.l.b16 %v5439
        %v5572 = vunpack.c.l.b16 %v5440
        %v5573 = vunpack.c.l.b16 %v5441
        %v5574 = vunpack.c.l.b16 %v5442
        %v5575 = vunpack.c.l.b16 %v5443
        %v5576 = vunpack.c.l.b16 %v5444
        %v5577 = vunpack.c.l.b16 %v5445
        %v5578 = vunpack.c.l.b16 %v5446
        %v5579 = vunpack.c.l.b16 %v5447
        %v5580 = vunpack.c.l.b16 %v5448
        %v5581 = vunpack.c.l.b16 %v5449
        %v5582 = vunpack.c.l.b16 %v5450
        %v5583 = vunpack.c.l.b16 %v5451
        %v5584 = vunpack.c.l.b16 %v5452
        %v5585 = vunpack.c.l.b16 %v5453
        %v5586 = vunpack.c.l.b16 %v5454
        %v5587 = vunpack.c.l.b16 %v5455
        %v5588 = vunpack.c.l.b16 %v5456
        %v5589 = vpack.c.b16 %v5526, %v5525
        %v5590 = vpack.c.b16 %v5528, %v5527
        %v5591 = vpack.c.b16 %v5530, %v5529
        %v5592 = vpack.c.b16 %v5532, %v5531
        %v5593 = vpack.c.b16 %v5534, %v5533
        %v5594 = vpack.c.b16 %v5536, %v5535
        %v5595 = vpack.c.b16 %v5538, %v5537
        %v5596 = vpack.c.b16 %v5540, %v5539
        %v5597 = vpack.c.b16 %v5542, %v5541
        %v5598 = vpack.c.b16 %v5544, %v5543
        %v5599 = vpack.c.b16 %v5546, %v5545
        %v5600 = vpack.c.b16 %v5548, %v5547
        %v5601 = vpack.c.b16 %v5550, %v5549
        %v5602 = vpack.c.b16 %v5552, %v5551
        %v5603 = vpack.c.b16 %v5554, %v5553
        %v5604 = vpack.c.b16 %v5556, %v5555
        %v5605 = vpack.c.b16 %v5558, %v5557
        %v5606 = vpack.c.b16 %v5560, %v5559
        %v5607 = vpack.c.b16 %v5562, %v5561
        %v5608 = vpack.c.b16 %v5564, %v5563
        %v5609 = vpack.c.b16 %v5566, %v5565
        %v5610 = vpack.c.b16 %v5568, %v5567
        %v5611 = vpack.c.b16 %v5570, %v5569
        %v5612 = vpack.c.b16 %v5572, %v5571
        %v5613 = vpack.c.b16 %v5574, %v5573
        %v5614 = vpack.c.b16 %v5576, %v5575
        %v5615 = vpack.c.b16 %v5578, %v5577
        %v5616 = vpack.c.b16 %v5580, %v5579
        %v5617 = vpack.c.b16 %v5582, %v5581
        %v5618 = vpack.c.b16 %v5584, %v5583
        %v5619 = vpack.c.b16 %v5586, %v5585
        %v5620 = vpack.c.b16 %v5588, %v5587
        %5653 = vmatpush.bf16.msra.mxu0 %v5596
        %5654 = vmatpush.bf16.msra.mxu0 %v5595
        %5655 = vmatpush.bf16.msra.mxu0 %v5594
        %5656 = vmatpush.bf16.msra.mxu0 %v5593
        %5657 = vmatpush.bf16.msra.mxu0 %v5592
        %5658 = vmatpush.bf16.msra.mxu0 %v5591
        %5659 = vmatpush.bf16.msra.mxu0 %v5590
        %5660 = vmatpush.bf16.msra.mxu0 %v5589
        %5661 = vmatmul.bf16.gmra.mxu0 %v5361
        %v5662 = vpop.f32.mrf.mxu0
        %v5663 = vadd.f32 %v5459, %v5662
        %v5664 = vpop.f32.mrf.mxu0
        %v5665 = vadd.f32 %v5459, %v5664
        %5666 = vmatmul.bf16.gmra.mxu0 %v5365
        %v5667 = vpop.f32.mrf.mxu0
        %v5668 = vadd.f32 %v5459, %v5667
        %v5669 = vpop.f32.mrf.mxu0
        %v5670 = vadd.f32 %v5459, %v5669
        %5671 = vmatmul.bf16.gmra.mxu0 %v5369
        %v5672 = vpop.f32.mrf.mxu0
        %v5673 = vadd.f32 %v5459, %v5672
        %v5674 = vpop.f32.mrf.mxu0
        %v5675 = vadd.f32 %v5459, %v5674
        %5676 = vmatmul.bf16.gmra.mxu0 %v5373
        %v5677 = vpop.f32.mrf.mxu0
        %v5678 = vadd.f32 %v5459, %v5677
        %v5679 = vpop.f32.mrf.mxu0
        %v5680 = vadd.f32 %v5459, %v5679
        %5681 = vmatmul.bf16.gmra.mxu0 %v5377
        %v5682 = vpop.f32.mrf.mxu0
        %v5683 = vadd.f32 %v5459, %v5682
        %v5684 = vpop.f32.mrf.mxu0
        %v5685 = vadd.f32 %v5459, %v5684
        %5686 = vmatmul.bf16.gmra.mxu0 %v5381
        %v5687 = vpop.f32.mrf.mxu0
        %v5688 = vadd.f32 %v5459, %v5687
        %v5689 = vpop.f32.mrf.mxu0
        %v5690 = vadd.f32 %v5459, %v5689
        %5691 = vmatmul.bf16.gmra.mxu0 %v5385
        %v5692 = vpop.f32.mrf.mxu0
        %v5693 = vadd.f32 %v5459, %v5692
        %v5694 = vpop.f32.mrf.mxu0
        %v5695 = vadd.f32 %v5459, %v5694
        %5696 = vmatmul.bf16.gmra.mxu0 %v5389
        %v5697 = vpop.f32.mrf.mxu0
        %v5698 = vadd.f32 %v5459, %v5697
        %v5699 = vpop.f32.mrf.mxu0
        %v5700 = vadd.f32 %v5459, %v5699
        %5701 = vdwg.mxu0
        %5702 = vmatpush.bf16.msra.mxu0 %v5604
        %5703 = vmatpush.bf16.msra.mxu0 %v5603
        %5704 = vmatpush.bf16.msra.mxu0 %v5602
        %5705 = vmatpush.bf16.msra.mxu0 %v5601
        %5706 = vmatpush.bf16.msra.mxu0 %v5600
        %5707 = vmatpush.bf16.msra.mxu0 %v5599
        %5708 = vmatpush.bf16.msra.mxu0 %v5598
        %5709 = vmatpush.bf16.msra.mxu0 %v5597
        %5710 = vmatmul.bf16.gmra.mxu0 %v5362
        %v5711 = vpop.f32.mrf.mxu0
        %v5712 = vadd.f32 %v5663, %v5711
        %v5713 = vpop.f32.mrf.mxu0
        %v5714 = vadd.f32 %v5665, %v5713
        %5715 = vmatmul.bf16.gmra.mxu0 %v5366
        %v5716 = vpop.f32.mrf.mxu0
        %v5717 = vadd.f32 %v5668, %v5716
        %v5718 = vpop.f32.mrf.mxu0
        %v5719 = vadd.f32 %v5670, %v5718
        %5720 = vmatmul.bf16.gmra.mxu0 %v5370
        %v5721 = vpop.f32.mrf.mxu0
        %v5722 = vadd.f32 %v5673, %v5721
        %v5723 = vpop.f32.mrf.mxu0
        %v5724 = vadd.f32 %v5675, %v5723
        %5725 = vmatmul.bf16.gmra.mxu0 %v5374
        %v5726 = vpop.f32.mrf.mxu0
        %v5727 = vadd.f32 %v5678, %v5726
        %v5728 = vpop.f32.mrf.mxu0
        %v5729 = vadd.f32 %v5680, %v5728
        %5730 = vmatmul.bf16.gmra.mxu0 %v5378
        %v5731 = vpop.f32.mrf.mxu0
        %v5732 = vadd.f32 %v5683, %v5731
        %v5733 = vpop.f32.mrf.mxu0
        %v5734 = vadd.f32 %v5685, %v5733
        %5735 = vmatmul.bf16.gmra.mxu0 %v5382
        %v5736 = vpop.f32.mrf.mxu0
        %v5737 = vadd.f32 %v5688, %v5736
        %v5738 = vpop.f32.mrf.mxu0
        %v5739 = vadd.f32 %v5690, %v5738
        %5740 = vmatmul.bf16.gmra.mxu0 %v5386
        %v5741 = vpop.f32.mrf.mxu0
        %v5742 = vadd.f32 %v5693, %v5741
        %v5743 = vpop.f32.mrf.mxu0
        %v5744 = vadd.f32 %v5695, %v5743
        %5745 = vmatmul.bf16.gmra.mxu0 %v5390
        %v5746 = vpop.f32.mrf.mxu0
        %v5747 = vadd.f32 %v5698, %v5746
        %v5748 = vpop.f32.mrf.mxu0
        %v5749 = vadd.f32 %v5700, %v5748
        %5750 = vdwg.mxu0
        %5751 = vmatpush.bf16.msra.mxu0 %v5612
        %5752 = vmatpush.bf16.msra.mxu0 %v5611
        %5753 = vmatpush.bf16.msra.mxu0 %v5610
        %5754 = vmatpush.bf16.msra.mxu0 %v5609
        %5755 = vmatpush.bf16.msra.mxu0 %v5608
        %5756 = vmatpush.bf16.msra.mxu0 %v5607
        %5757 = vmatpush.bf16.msra.mxu0 %v5606
        %5758 = vmatpush.bf16.msra.mxu0 %v5605
        %5759 = vmatmul.bf16.gmra.mxu0 %v5363
        %v5760 = vpop.f32.mrf.mxu0
        %v5761 = vadd.f32 %v5712, %v5760
        %v5762 = vpop.f32.mrf.mxu0
        %v5763 = vadd.f32 %v5714, %v5762
        %5764 = vmatmul.bf16.gmra.mxu0 %v5367
        %v5765 = vpop.f32.mrf.mxu0
        %v5766 = vadd.f32 %v5717, %v5765
        %v5767 = vpop.f32.mrf.mxu0
        %v5768 = vadd.f32 %v5719, %v5767
        %5769 = vmatmul.bf16.gmra.mxu0 %v5371
        %v5770 = vpop.f32.mrf.mxu0
        %v5771 = vadd.f32 %v5722, %v5770
        %v5772 = vpop.f32.mrf.mxu0
        %v5773 = vadd.f32 %v5724, %v5772
        %5774 = vmatmul.bf16.gmra.mxu0 %v5375
        %v5775 = vpop.f32.mrf.mxu0
        %v5776 = vadd.f32 %v5727, %v5775
        %v5777 = vpop.f32.mrf.mxu0
        %v5778 = vadd.f32 %v5729, %v5777
        %5779 = vmatmul.bf16.gmra.mxu0 %v5379
        %v5780 = vpop.f32.mrf.mxu0
        %v5781 = vadd.f32 %v5732, %v5780
        %v5782 = vpop.f32.mrf.mxu0
        %v5783 = vadd.f32 %v5734, %v5782
        %5784 = vmatmul.bf16.gmra.mxu0 %v5383
        %v5785 = vpop.f32.mrf.mxu0
        %v5786 = vadd.f32 %v5737, %v5785
        %v5787 = vpop.f32.mrf.mxu0
        %v5788 = vadd.f32 %v5739, %v5787
        %5789 = vmatmul.bf16.gmra.mxu0 %v5387
        %v5790 = vpop.f32.mrf.mxu0
        %v5791 = vadd.f32 %v5742, %v5790
        %v5792 = vpop.f32.mrf.mxu0
        %v5793 = vadd.f32 %v5744, %v5792
        %5794 = vmatmul.bf16.gmra.mxu0 %v5391
        %v5795 = vpop.f32.mrf.mxu0
        %v5796 = vadd.f32 %v5747, %v5795
        %v5797 = vpop.f32.mrf.mxu0
        %v5798 = vadd.f32 %v5749, %v5797
        %5799 = vdwg.mxu0
        %5800 = vmatpush.bf16.msra.mxu0 %v5620
        %5801 = vmatpush.bf16.msra.mxu0 %v5619
        %5802 = vmatpush.bf16.msra.mxu0 %v5618
        %5803 = vmatpush.bf16.msra.mxu0 %v5617
        %5804 = vmatpush.bf16.msra.mxu0 %v5616
        %5805 = vmatpush.bf16.msra.mxu0 %v5615
        %5806 = vmatpush.bf16.msra.mxu0 %v5614
        %5807 = vmatpush.bf16.msra.mxu0 %v5613
        %5808 = vmatmul.bf16.gmra.mxu0 %v5364
        %v5809 = vpop.f32.mrf.mxu0
        %v5810 = vadd.f32 %v5761, %v5809
        %v5811 = vpop.f32.mrf.mxu0
        %v5812 = vadd.f32 %v5763, %v5811
        %5813 = vmatmul.bf16.gmra.mxu0 %v5368
        %v5814 = vpop.f32.mrf.mxu0
        %v5815 = vadd.f32 %v5766, %v5814
        %v5816 = vpop.f32.mrf.mxu0
        %v5817 = vadd.f32 %v5768, %v5816
        %5818 = vmatmul.bf16.gmra.mxu0 %v5372
        %v5819 = vpop.f32.mrf.mxu0
        %v5820 = vadd.f32 %v5771, %v5819
        %v5821 = vpop.f32.mrf.mxu0
        %v5822 = vadd.f32 %v5773, %v5821
        %5823 = vmatmul.bf16.gmra.mxu0 %v5376
        %v5824 = vpop.f32.mrf.mxu0
        %v5825 = vadd.f32 %v5776, %v5824
        %v5826 = vpop.f32.mrf.mxu0
        %v5827 = vadd.f32 %v5778, %v5826
        %5828 = vmatmul.bf16.gmra.mxu0 %v5380
        %v5829 = vpop.f32.mrf.mxu0
        %v5830 = vadd.f32 %v5781, %v5829
        %v5831 = vpop.f32.mrf.mxu0
        %v5832 = vadd.f32 %v5783, %v5831
        %5833 = vmatmul.bf16.gmra.mxu0 %v5384
        %v5834 = vpop.f32.mrf.mxu0
        %v5835 = vadd.f32 %v5786, %v5834
        %v5836 = vpop.f32.mrf.mxu0
        %v5837 = vadd.f32 %v5788, %v5836
        %5838 = vmatmul.bf16.gmra.mxu0 %v5388
        %v5839 = vpop.f32.mrf.mxu0
        %v5840 = vadd.f32 %v5791, %v5839
        %v5841 = vpop.f32.mrf.mxu0
        %v5842 = vadd.f32 %v5793, %v5841
        %5843 = vmatmul.bf16.gmra.mxu0 %v5392
        %v5844 = vpop.f32.mrf.mxu0
        %v5845 = vadd.f32 %v5796, %v5844
        %v5846 = vpop.f32.mrf.mxu0
        %v5847 = vadd.f32 %v5798, %v5846
        %5848 = vdwg.mxu0
        %v5849 = vadd.f32 %v3139, %v5810
        %v5850 = vadd.f32 %v3140, %v5812
        %v5851 = vadd.f32 %v3141, %v5815
        %v5852 = vadd.f32 %v3142, %v5817
        %v5853 = vadd.f32 %v3143, %v5820
        %v5854 = vadd.f32 %v3144, %v5822
        %v5855 = vadd.f32 %v3145, %v5825
        %v5856 = vadd.f32 %v3146, %v5827
        %v5857 = vadd.f32 %v3147, %v5830
        %v5858 = vadd.f32 %v3148, %v5832
        %v5859 = vadd.f32 %v3149, %v5835
        %v5860 = vadd.f32 %v3150, %v5837
        %v5861 = vadd.f32 %v3151, %v5840
        %v5862 = vadd.f32 %v3152, %v5842
        %v5863 = vadd.f32 %v3153, %v5845
        %v5864 = vadd.f32 %v3154, %v5847
        %5865 = vst [vmem:[%s599] sm:$0xff] %v5849
        %5866 = vst [vmem:[%s599 + $0x8] sm:$0xff] %v5850
        %5867 = vst [vmem:[%s599 + $0x10] sm:$0xff] %v5851
        %5868 = vst [vmem:[%s599 + $0x18] sm:$0xff] %v5852
        %5869 = vst [vmem:[%s599 + $0x20] sm:$0xff] %v5853
        %5870 = vst [vmem:[%s599 + $0x28] sm:$0xff] %v5854
        %5871 = vst [vmem:[%s599 + $0x30] sm:$0xff] %v5855
        %5872 = vst [vmem:[%s599 + $0x38] sm:$0xff] %v5856
        %5873 = vst [vmem:[%s599 + $0x40] sm:$0xff] %v5857
        %5874 = vst [vmem:[%s599 + $0x48] sm:$0xff] %v5858
        %5875 = vst [vmem:[%s599 + $0x50] sm:$0xff] %v5859
        %5876 = vst [vmem:[%s599 + $0x58] sm:$0xff] %v5860
        %5877 = vst [vmem:[%s599 + $0x60] sm:$0xff] %v5861
        %5878 = vst [vmem:[%s599 + $0x68] sm:$0xff] %v5862
        %5879 = vst [vmem:[%s599 + $0x70] sm:$0xff] %v5863
        %5880 = vst [vmem:[%s599 + $0x78] sm:$0xff] %v5864
        %s5881 = sand.u32 %s342, 1
        %s5882 = scalar_lea.sflag [#allocation4], %s5881
        %s5883 = sand.u32 %s342, 1
        %s5884 = smul.addr %s5883, 128
        %s5885 = scalar_lea.vmem [#allocation16], %s5884
        // Predicated region
        $region109: #{tpu_custom_call.1} parent=75 // pred_check
          %p5886 = pneg %p352
        $region110: #{tpu_custom_call.1} parent=75 // pred_check_branch
          %5888 = sbr.rel (%p5886) target = $region112
        $region111: #{tpu_custom_call.1} parent=75 // pred_region
          %5890 = vsyncadd %s5882, 0
          %s5891 = smul.addr %s35, 16
          %s5892 = smul.addr %s5891, 8
          %s5893 = scalar_lea.hbm %s14, %s5892
          %s5894 = sshll.u32 %s5885, 4
          %s5895 = int_to_ptr.vmem [resolvable:$true] %s5894
          %s5896 = sshll.u32 %s5893, 4
          %s5897 = int_to_ptr.hbm [resolvable:$true] %s5896
          %5902 = dma.vmem_to_hbm [thread:$0]  %s5895, 2048, %s5897, %s5882, 128, 128, 8
        $region112: #{tpu_custom_call.1} parent=75 // pred_fallthru
          _
      $region76: #{tpu_custom_call.1} parent=5 // pred_fallthru
        _
      %p5903 = scmp.le.s32.totalorder 2, %s30
      // Predicated region
      $region113: #{tpu_custom_call.1} parent=5 // pred_check
        %p5904 = pneg %p5903
      $region114: #{tpu_custom_call.1} parent=5 // pred_check_branch
        %5906 = sbr.rel (%p5904) target = $region116
      $region115: #{tpu_custom_call.1} parent=5 // pred_region
        %s5907 = ssub.s32 %s30, 2
        // Predicated region
        $region117: #{tpu_custom_call.1} parent=115 // pred_check
          %p5908 = pneg %p358
        $region118: #{tpu_custom_call.1} parent=115 // pred_check_branch
          %5910 = sbr.rel (%p5908) target = $region120
        $region119: #{tpu_custom_call.1} parent=115 // pred_region
          %s5911 = sand.u32 %s343, 1
          %s5912 = scalar_lea.sflag [#allocation4], %s5911
          %s5913 = sand.u32 %s343, 1
          %s5914 = smul.addr %s5913, 128
          %s5915 = scalar_lea.vmem [#allocation16], %s5914
          %5917 = dma.done %s5912, 2048
        $region120: #{tpu_custom_call.1} parent=115 // pred_fallthru
          _
      $region116: #{tpu_custom_call.1} parent=5 // pred_fallthru
        _
    $region6: #{tpu_custom_call.1} parent=1 // loop_footer
      %s34 = sadd.s32 1, %s30
    $region7: #{tpu_custom_call.1} parent=1 // loop_footer_branch
      %29 = sbr.rel target = $region3
    $region8: #{tpu_custom_call.1} parent=1 // loop_exit
      _
    %5918 = vsyncpa [#allocation3], 1
    %s5919 = scalar_lea.sflag [#allocation3], 1
    %5920 = vsyncpa %s5919, 1
    %5921 = vsyncpa [#allocation6], 1
    %5922 = vsyncpa [#allocation9], 1
    %5923 = vsyncpa [#allocation12], 1
    %5924 = vsyncpa [#allocation15], 1
    %5925 = vsyncpa [#allocation4], 1
    %s5926 = scalar_lea.sflag [#allocation4], 1
    %5927 = vsyncpa %s5926, 1

</llo_original>
